<compile_context>
chip_gen: v7x
topology: tpu7x:2x2x1
jax: 0.10.0
libtpu: 0.0.40
codegen_flags: <defaults>
</compile_context>

<pallas_src>
import numpy as np
import jax
import jax.numpy as jnp
from jax.experimental import pallas as pl
from jax.experimental.pallas import tpu as pltpu


ACT_DTYPE = jnp.bfloat16          # activation / MXU-weight dtype (bf16 MXU on v6e/v7x)


def _vmem_limit_bytes():
    """Generation-dependent VMEM limit: ~3/4 of physical capacity, capped at 96 MiB."""
    try:
        cap = int(pltpu.get_tpu_info().vmem_capacity_bytes)
    except Exception:
        cap = 64 * 1024 * 1024    # conservative default (v7x-sized)
    return max(32 * 1024 * 1024, min(cap * 3 // 4, 96 * 1024 * 1024))


# ----------------------------- Pallas kernels ------------------------------

def _build_im2col_patches(x_ref, xp_ref, pat_ref):
    """Zero the 1-px halo, copy the interior, and write the 9 taps into the patches scratch.

    x_ref:   (1, H, W, Cin)        bf16 input block
    xp_ref:  (1, H+2, W+2, Cin)    bf16 VMEM scratch (zero-padded input)
    pat_ref: (H*W, 9*Cin)          bf16 VMEM scratch (im2col matrix)
    """
    _, H, W, Cin = x_ref.shape
    # Zero only the halo (rows 0 / H+1, cols 0 / W+1); the interior is overwritten below.
    zrow = jnp.zeros((1, 1, W + 2, Cin), xp_ref.dtype)
    zcol = jnp.zeros((1, H + 2, 1, Cin), xp_ref.dtype)
    xp_ref[:, 0:1, :, :] = zrow
    xp_ref[:, H + 1:H + 2, :, :] = zrow
    xp_ref[:, :, 0:1, :] = zcol
    xp_ref[:, :, W + 1:W + 2, :] = zcol
    xp_ref[:, 1:H + 1, 1:W + 1, :] = x_ref[...]            # bf16 -> bf16, no cast
    # Per-tap stores into the preallocated patches matrix (no concat relayout).
    for kh in range(3):
        for kw in range(3):
            t = kh * 3 + kw
            pat_ref[:, t * Cin:(t + 1) * Cin] = (
                xp_ref[:, kh:kh + H, kw:kw + W, :].reshape(H * W, Cin))


def conv3x3_bn_relu_kernel(x_ref, w_ref, s_ref, b_ref, o_ref, xp_ref, pat_ref):
    """3x3 conv (stride 1, pad 1) + folded-BN affine + ReLU via one im2col MXU matmul."""
    _, H, W, _ = x_ref.shape
    Cout = o_ref.shape[-1]
    _build_im2col_patches(x_ref, xp_ref, pat_ref)
    acc = jnp.dot(pat_ref[...], w_ref[...], preferred_element_type=jnp.float32)
    y = jnp.maximum(acc * s_ref[...] + b_ref[...], 0.0)
    o_ref[...] = y.reshape(1, H, W, Cout).astype(o_ref.dtype)


def conv3x3_bn_relu_wg_kernel(x_ref, w_ref, s_ref, b_ref, wg_ref, sg_ref, bg_ref,
                              o_ref, xp_ref, pat_ref):
    """DownsampleLayer conv3 (+BN+ReLU) fused with the AttentionBlock's Wg (1x1 conv + BN).

    The stride-2 subsample along H is taken on the im2col rows *before* the matmuls
    (leading-dim vreg selection only): half the conv-3 / Wg flops and half the writeback.
    The stride-2 subsample along W is left to the cheap Ci-channel caller-side slice.
    """
    _, _, W, _ = x_ref.shape
    _, Hh, _, Ci = o_ref.shape
    _build_im2col_patches(x_ref, xp_ref, pat_ref)
    K = pat_ref.shape[-1]
    # im2col rows are output pixels (h*W + w); keep even h only (== stride-2 conv rows).
    pat_even = pat_ref[...].reshape(Hh, 2, W, K)[:, 0].reshape(Hh * W, K)
    acc = jnp.dot(pat_even, w_ref[...], preferred_element_type=jnp.float32)
    y3 = jnp.maximum(acc * s_ref[...] + b_ref[...], 0.0).astype(wg_ref.dtype)
    g1 = (jnp.dot(y3, wg_ref[...], preferred_element_type=jnp.float32)
          * sg_ref[...] + bg_ref[...])
    o_ref[...] = g1.reshape(1, Hh, W, Ci).astype(o_ref.dtype)


def attn_gate_kernel(x_ref, g_ref, wx_ref, sx_ref, bx_ref, wpsi_ref, bp_ref,
                     sbn_ref, bbn_ref, o_ref):
    """Fused: Wx(x)+BN, relu(x1+g1), psi (BN scale pre-folded)+sigmoid, psi*x, outer BN,
    residual ReLU.  Pointwise per pixel -> spatially tiled over H with no halo."""
    _, TH, W, C = x_ref.shape
    Ci = g_ref.shape[-1]
    xb = x_ref[...].reshape(TH * W, C)                       # bf16, feeds the MXU directly
    x1 = (jnp.dot(xb, wx_ref[...], preferred_element_type=jnp.float32)
          * sx_ref[...] + bx_ref[...])
    g1 = g_ref[...].reshape(TH * W, Ci).astype(jnp.float32)
    a = jnp.maximum(x1 + g1, 0.0)                            # relu(Wx(x) + upsampled Wg(g))
    p = jnp.sum(a * wpsi_ref[...], axis=-1, keepdims=True) + bp_ref[...]
    psi = jax.nn.sigmoid(p)                                  # (TH*W, 1) attention map
    x32 = xb.astype(jnp.float32)                             # single f32 copy for the epilogue
    att = psi * x32                                          # AttentionBlock output: psi * x
    y = jnp.maximum(x32 + att * sbn_ref[...] + bbn_ref[...], 0.0)    # relu(x + bn(att))
    o_ref[...] = y.reshape(1, TH, W, C).astype(o_ref.dtype)


# ------------------------------- wrappers -----------------------------------

def conv3x3_bn_relu(x, w9, s, b):
    N, H, W, Cin = x.shape
    Cout = w9.shape[-1]
    return pl.pallas_call(
        conv3x3_bn_relu_kernel,
        out_shape=jax.ShapeDtypeStruct((N, H, W, Cout), x.dtype),
        grid=(N,),
        in_specs=[
            pl.BlockSpec((1, H, W, Cin), lambda n: (n, 0, 0, 0)),
            pl.BlockSpec((9 * Cin, Cout), lambda n: (0, 0)),
            pl.BlockSpec((1, Cout), lambda n: (0, 0)),
            pl.BlockSpec((1, Cout), lambda n: (0, 0)),
        ],
        out_specs=pl.BlockSpec((1, H, W, Cout), lambda n: (n, 0, 0, 0)),
        scratch_shapes=[pltpu.VMEM((1, H + 2, W + 2, Cin), ACT_DTYPE),
                        pltpu.VMEM((H * W, 9 * Cin), ACT_DTYPE)],
        compiler_params=pltpu.CompilerParams(
            dimension_semantics=("parallel",),
            vmem_limit_bytes=_vmem_limit_bytes()),
    )(x, w9, s, b)


def conv3x3_bn_relu_wg(x, w9, s, b, wg, sg, bg):
    N, H, W, Cin = x.shape
    Cout = w9.shape[-1]
    Ci = wg.shape[-1]
    Hh = H // 2
    return pl.pallas_call(
        conv3x3_bn_relu_wg_kernel,
        out_shape=jax.ShapeDtypeStruct((N, Hh, W, Ci), ACT_DTYPE),
        grid=(N,),
        in_specs=[
            pl.BlockSpec((1, H, W, Cin), lambda n: (n, 0, 0, 0)),
            pl.BlockSpec((9 * Cin, Cout), lambda n: (0, 0)),
            pl.BlockSpec((1, Cout), lambda n: (0, 0)),
            pl.BlockSpec((1, Cout), lambda n: (0, 0)),
            pl.BlockSpec((Cout, Ci), lambda n: (0, 0)),
            pl.BlockSpec((1, Ci), lambda n: (0, 0)),
            pl.BlockSpec((1, Ci), lambda n: (0, 0)),
        ],
        out_specs=pl.BlockSpec((1, Hh, W, Ci), lambda n: (n, 0, 0, 0)),
        scratch_shapes=[pltpu.VMEM((1, H + 2, W + 2, Cin), ACT_DTYPE),
                        pltpu.VMEM((H * W, 9 * Cin), ACT_DTYPE)],
        compiler_params=pltpu.CompilerParams(
            dimension_semantics=("parallel",),
            vmem_limit_bytes=_vmem_limit_bytes()),
    )(x, w9, s, b, wg, sg, bg)


def _pick_tile_h(H, W, C, Ci, vmem_budget):
    """Largest H-divisor tile whose double-buffered I/O + f32 temporaries fit ~half the budget."""
    per_row = W * (2 * 2 * C            # x bf16, double-buffered
                   + 2 * 2 * Ci         # gate bf16, double-buffered
                   + 2 * 4 * C          # f32 output, double-buffered
                   + 4 * (3 * C + 2 * Ci))   # live f32 temporaries in the epilogue
    budget = max(vmem_budget // 2, per_row)
    for th in range(H, 0, -1):
        if H % th == 0 and th * per_row <= budget:
            return th
    return 1


def attn_gate(x, g1_up, P):
    N, H, W, C = x.shape
    Ci = P["wx"].shape[-1]
    TH = _pick_tile_h(H, W, C, Ci, _vmem_limit_bytes())
    return pl.pallas_call(
        attn_gate_kernel,
        out_shape=jax.ShapeDtypeStruct((N, H, W, C), jnp.float32),
        grid=(N, H // TH),
        in_specs=[
            pl.BlockSpec((1, TH, W, C), lambda n, i: (n, i, 0, 0)),
            pl.BlockSpec((1, TH, W, Ci), lambda n, i: (n, i, 0, 0)),
            pl.BlockSpec((C, Ci), lambda n, i: (0, 0)),
            pl.BlockSpec((1, Ci), lambda n, i: (0, 0)),
            pl.BlockSpec((1, Ci), lambda n, i: (0, 0)),
            pl.BlockSpec((1, Ci), lambda n, i: (0, 0)),
            pl.BlockSpec((1, 1), lambda n, i: (0, 0)),
            pl.BlockSpec((1, C), lambda n, i: (0, 0)),
            pl.BlockSpec((1, C), lambda n, i: (0, 0)),
        ],
        out_specs=pl.BlockSpec((1, TH, W, C), lambda n, i: (n, i, 0, 0)),
        compiler_params=pltpu.CompilerParams(
            dimension_semantics=("parallel", "parallel"),
            vmem_limit_bytes=_vmem_limit_bytes()),
    )(x, g1_up, P["wx"], P["sx"], P["bx"], P["wpsi_sp"], P["bp"], P["sbn"], P["bbn"])


# ------------------------- glue: interp matrix & params ---------------------

def upsample_matrix(out_size, in_size):
    """PyTorch F.interpolate(mode='bilinear', align_corners=False) as a dense matrix."""
    U = np.zeros((out_size, in_size), np.float32)
    scale = in_size / out_size
    for o in range(out_size):
        s = max((o + 0.5) * scale - 0.5, 0.0)
        i0 = min(int(np.floor(s)), in_size - 1)
        i1 = min(i0 + 1, in_size - 1)
        f = s - i0
        U[o, i0] += 1.0 - f
        U[o, i1] += f
    return jnp.asarray(U)


def upsample_bilinear(g, H, W):
    """Bilinear upsample to (H, W) as two small matmuls (rows of Uh/Uw sum to 1)."""
    Uh = upsample_matrix(H, g.shape[1])
    Uw = upsample_matrix(W, g.shape[2])
    return jnp.einsum('hp,npqc,wq->nhwc', Uh, g.astype(jnp.float32), Uw)


def fold_bn(gamma, beta, mean, var, conv_bias=None, eps=1e-5):
    s = gamma / jnp.sqrt(var + eps)
    b = beta - mean * s
    if conv_bias is not None:
        b = b + conv_bias * s
    return s.reshape(1, -1).astype(jnp.float32), b.reshape(1, -1).astype(jnp.float32)


def init_params(key, C):
    C2, Ci = 2 * C, int(C * 0.5)
    ks = iter(jax.random.split(key, 64))

    def w(shape, scale=0.1):
        return scale * jax.random.normal(next(ks), shape, jnp.float32)

    def bn(feat):
        gamma = 1.0 + 0.1 * jax.random.normal(next(ks), (feat,), jnp.float32)
        beta = 0.1 * jax.random.normal(next(ks), (feat,), jnp.float32)
        mean = 0.05 * jax.random.normal(next(ks), (feat,), jnp.float32)
        var = 0.8 + 0.2 * jnp.abs(jax.random.normal(next(ks), (feat,), jnp.float32))
        return gamma, beta, mean, var

    P = {}
    # DownsampleLayer: Conv_BN_ReLU_2 (two convs) + stride-2 downsample conv.
    for name, cin, cout in (("1", C, C2), ("2", C2, C2), ("3", C2, C2)):
        w33 = w((3, 3, cin, cout))
        cb = w((cout,))
        s, b = fold_bn(*bn(cout), conv_bias=cb)
        P["w" + name + "_33"] = w33.astype(ACT_DTYPE)                     # HWIO (reference)
        P["w" + name] = w33.reshape(9 * cin, cout).astype(ACT_DTYPE)      # im2col layout (kernel)
        P["s" + name], P["b" + name] = s, b
    # AttentionBlock: Wx (C->Ci), Wg (2C->Ci), psi (Ci->1), each conv1x1 + BN.
    P["wx"] = w((C, Ci)).astype(ACT_DTYPE)
    P["sx"], P["bx"] = fold_bn(*bn(Ci), conv_bias=w((Ci,)))
    P["wg"] = w((C2, Ci)).astype(ACT_DTYPE)
    P["sg"], P["bg"] = fold_bn(*bn(Ci), conv_bias=w((Ci,)))
    P["wpsi"] = w((Ci,)).reshape(1, Ci)                                   # f32, VPU elementwise
    P["sp"], P["bp"] = fold_bn(*bn(1), conv_bias=w((1,)))
    P["wpsi_sp"] = (P["wpsi"] * P["sp"]).astype(jnp.float32)              # psi BN scale folded
    # Outer BatchNorm2d(C).
    P["sbn"], P["bbn"] = fold_bn(*bn(C))
    return P


# ------------------------------ full forward --------------------------------

def attention_gate_forward(x_nchw, P):
    x = jnp.transpose(x_nchw, (0, 2, 3, 1)).astype(ACT_DTYPE)    # NCHW -> NHWC, bf16
    N, H, W, C = x.shape
    # DownsampleLayer: conv3x3+BN+ReLU x2, then conv3 fused with the attention Wg.
    h = conv3x3_bn_relu(x, P["w1"], P["s1"], P["b1"])
    h = conv3x3_bn_relu(h, P["w2"], P["s2"], P["b2"])
    # conv3+BN+ReLU fused with Wg(1x1)+BN; the stride-2 subsample along H happens in-kernel,
    # so the kernel emits (N, H/2, W, Ci).  This is exact because Wg/BN are pointwise and the
    # stride-2 pad-1 3x3 conv equals even-index subsampling of the stride-1 conv (do not
    # change conv3's stride/kernel size without revisiting this invariant).
    g1_hrows = conv3x3_bn_relu_wg(h, P["w3"], P["s3"], P["b3"], P["wg"], P["sg"], P["bg"])
    g1_half = g1_hrows[:, :, ::2, :]             # remaining W-direction stride-2 (Ci channels)
    # Bilinear upsample (align_corners=False) of the small Ci-channel tensor; fed to the
    # attention kernel in bf16 to halve that HBM stream.
    g1_up = upsample_bilinear(g1_half, H, W).astype(ACT_DTYPE)
    y = attn_gate(x, g1_up, P)                   # f32 (module output dtype)
    return jnp.transpose(y, (0, 3, 1, 2))        # NHWC -> NCHW


# ------------------------------ pure-JAX reference ---------------------------

def reference_forward(x_nchw, P):
    """Pure-XLA reference mirroring the PyTorch module (same bf16 casts as the kernels)."""
    x = jnp.transpose(x_nchw, (0, 2, 3, 1)).astype(ACT_DTYPE)
    N, H, W, C = x.shape

    def conv_bn_relu(xx, w33, s, b):
        y = jax.lax.conv_general_dilated(
            xx, w33, (1, 1), ((1, 1), (1, 1)),
            dimension_numbers=('NHWC', 'HWIO', 'NHWC'),
            preferred_element_type=jnp.float32)
        return jnp.maximum(y * s + b, 0.0).astype(ACT_DTYPE)

    h = conv_bn_relu(x, P["w1_33"], P["s1"], P["b1"])
    h = conv_bn_relu(h, P["w2_33"], P["s2"], P["b2"])
    h = conv_bn_relu(h, P["w3_33"], P["s3"], P["b3"])
    g = h[:, ::2, ::2, :]              # stride-2 conv == subsample of the stride-1 result
    # AttentionBlock (PyTorch order: Wg at half res, then bilinear upsample).
    x1 = jnp.einsum('nhwc,cd->nhwd', x, P["wx"],
                    preferred_element_type=jnp.float32) * P["sx"] + P["bx"]
    g1s = (jnp.einsum('nhwc,cd->nhwd', g, P["wg"],
                      preferred_element_type=jnp.float32) * P["sg"] + P["bg"]).astype(ACT_DTYPE)
    g1 = upsample_bilinear(g1s, H, W)
    a = jnp.maximum(x1 + g1, 0.0)
    p = jnp.einsum('nhwc,c->nhw', a, P["wpsi"][0])[..., None] * P["sp"] + P["bp"]
    psi = jax.nn.sigmoid(p)
    x32 = x.astype(jnp.float32)
    att = psi * x32
    out = jnp.maximum(x32 + att * P["sbn"] + P["bbn"], 0.0)
    return jnp.transpose(out, (0, 3, 1, 2))


# ---------------------------------- main -------------------------------------

if __name__ == "__main__":
    key = jax.random.PRNGKey(0)
    kx, kp = jax.random.split(key)
    N, C, H, W = 2, 4, 16, 16        # NCHW input, in_channels=4, ratio=0.5 -> int_channels=2
    x = jax.random.normal(kx, (N, C, H, W), jnp.float32)
    P = init_params(kp, C)

    out = jax.block_until_ready(attention_gate_forward(x, P))
    ref = jax.block_until_ready(reference_forward(x, P))

    np.testing.assert_allclose(np.asarray(out, dtype=np.float32),
                               np.asarray(ref, dtype=np.float32),
                               rtol=2e-2, atol=2e-2)   # bf16 activation pipeline tolerance
    assert out.shape == (N, C, H, W)
    print("KERNEL_OK")
</pallas_src>

<mosaic_0001>
module attributes {stable_mosaic.version = 11 : i64} {
  func.func @conv3x3_bn_relu_kernel(%arg0: i32, %arg1: memref<1x16x16x4xbf16, #tpu.memory_space<vmem>>, %arg2: memref<36x8xbf16, #tpu.memory_space<vmem>>, %arg3: memref<1x8xf32, #tpu.memory_space<vmem>>, %arg4: memref<1x8xf32, #tpu.memory_space<vmem>>, %arg5: memref<1x16x16x8xbf16, #tpu.memory_space<vmem>>, %arg6: memref<1x18x18x4xbf16, #tpu.memory_space<vmem>>, %arg7: memref<256x36xbf16, #tpu.memory_space<vmem>>) attributes {dimension_semantics = [#tpu.dimension_semantics<parallel>], iteration_bounds = array<i64: 2>, scalar_prefetch = 0 : i64, scratch_operands = 2 : i64, tpu.core_type = #tpu.core_type<tc>, window_params = [{transform_indices = @transform_0, window_bounds = array<i64: 1, 16, 16, 4>}, {pipeline_mode = #tpu.pipeline_mode<synchronous>, transform_indices = @transform_1, window_bounds = array<i64: 36, 8>}, {pipeline_mode = #tpu.pipeline_mode<synchronous>, transform_indices = @transform_2, window_bounds = array<i64: 1, 8>}, {pipeline_mode = #tpu.pipeline_mode<synchronous>, transform_indices = @transform_3, window_bounds = array<i64: 1, 8>}, {transform_indices = @transform_4, window_bounds = array<i64: 1, 16, 16, 8>}]} {
    %cst = arith.constant 0.000000e+00 : bf16
    %0 = vector.broadcast %cst : bf16 to vector<1x1x18x4xbf16>
    %cst_0 = arith.constant 0.000000e+00 : bf16
    %1 = vector.broadcast %cst_0 : bf16 to vector<1x18x1x4xbf16>
    %c0 = arith.constant 0 : index
    %c0_1 = arith.constant 0 : index
    %c0_2 = arith.constant 0 : index
    %c0_3 = arith.constant 0 : index
    %2 = vector.load %arg6[%c0, %c0_1, %c0_2, %c0_3] : memref<1x18x18x4xbf16, #tpu.memory_space<vmem>>, vector<1x1x18x4xbf16>
    tpu.vector_store %arg6[%c0, %c0_1, %c0_2, %c0_3], %0 {strides = array<i32>} : memref<1x18x18x4xbf16, #tpu.memory_space<vmem>>, vector<1x1x18x4xbf16>,
    %c0_4 = arith.constant 0 : index
    %c17 = arith.constant 17 : index
    %c0_5 = arith.constant 0 : index
    %c0_6 = arith.constant 0 : index
    %3 = vector.load %arg6[%c0_4, %c17, %c0_5, %c0_6] : memref<1x18x18x4xbf16, #tpu.memory_space<vmem>>, vector<1x1x18x4xbf16>
    tpu.vector_store %arg6[%c0_4, %c17, %c0_5, %c0_6], %0 {strides = array<i32>} : memref<1x18x18x4xbf16, #tpu.memory_space<vmem>>, vector<1x1x18x4xbf16>,
    %c0_7 = arith.constant 0 : index
    %c0_8 = arith.constant 0 : index
    %c0_9 = arith.constant 0 : index
    %c0_10 = arith.constant 0 : index
    %4 = vector.load %arg6[%c0_7, %c0_8, %c0_9, %c0_10] : memref<1x18x18x4xbf16, #tpu.memory_space<vmem>>, vector<1x18x1x4xbf16>
    tpu.vector_store %arg6[%c0_7, %c0_8, %c0_9, %c0_10], %1 {strides = array<i32>} : memref<1x18x18x4xbf16, #tpu.memory_space<vmem>>, vector<1x18x1x4xbf16>,
    %c0_11 = arith.constant 0 : index
    %c0_12 = arith.constant 0 : index
    %c17_13 = arith.constant 17 : index
    %c0_14 = arith.constant 0 : index
    %5 = vector.load %arg6[%c0_11, %c0_12, %c17_13, %c0_14] : memref<1x18x18x4xbf16, #tpu.memory_space<vmem>>, vector<1x18x1x4xbf16>
    tpu.vector_store %arg6[%c0_11, %c0_12, %c17_13, %c0_14], %1 {strides = array<i32>} : memref<1x18x18x4xbf16, #tpu.memory_space<vmem>>, vector<1x18x1x4xbf16>,
    %c0_15 = arith.constant 0 : index
    %c0_16 = arith.constant 0 : index
    %c0_17 = arith.constant 0 : index
    %c0_18 = arith.constant 0 : index
    %6 = vector.load %arg1[%c0_15, %c0_16, %c0_17, %c0_18] : memref<1x16x16x4xbf16, #tpu.memory_space<vmem>>, vector<1x16x16x4xbf16>
    %c0_19 = arith.constant 0 : index
    %c1 = arith.constant 1 : index
    %c1_20 = arith.constant 1 : index
    %c0_21 = arith.constant 0 : index
    %7 = vector.load %arg6[%c0_19, %c1, %c1_20, %c0_21] : memref<1x18x18x4xbf16, #tpu.memory_space<vmem>>, vector<1x16x16x4xbf16>
    tpu.vector_store %arg6[%c0_19, %c1, %c1_20, %c0_21], %6 {strides = array<i32>} : memref<1x18x18x4xbf16, #tpu.memory_space<vmem>>, vector<1x16x16x4xbf16>,
    %c0_22 = arith.constant 0 : index
    %c0_23 = arith.constant 0 : index
    %c0_24 = arith.constant 0 : index
    %c0_25 = arith.constant 0 : index
    %8 = vector.load %arg6[%c0_22, %c0_23, %c0_24, %c0_25] : memref<1x18x18x4xbf16, #tpu.memory_space<vmem>>, vector<1x16x16x4xbf16>
    %9 = vector.shape_cast %8 : vector<1x16x16x4xbf16> to vector<256x4xbf16>
    %c0_26 = arith.constant 0 : index
    %c0_27 = arith.constant 0 : index
    %10 = vector.load %arg7[%c0_26, %c0_27] : memref<256x36xbf16, #tpu.memory_space<vmem>>, vector<256x4xbf16>
    tpu.vector_store %arg7[%c0_26, %c0_27], %9 {strides = array<i32>} : memref<256x36xbf16, #tpu.memory_space<vmem>>, vector<256x4xbf16>,
    %c0_28 = arith.constant 0 : index
    %c0_29 = arith.constant 0 : index
    %c1_30 = arith.constant 1 : index
    %c0_31 = arith.constant 0 : index
    %11 = vector.load %arg6[%c0_28, %c0_29, %c1_30, %c0_31] : memref<1x18x18x4xbf16, #tpu.memory_space<vmem>>, vector<1x16x16x4xbf16>
    %12 = vector.shape_cast %11 : vector<1x16x16x4xbf16> to vector<256x4xbf16>
    %c0_32 = arith.constant 0 : index
    %c4 = arith.constant 4 : index
    %13 = vector.load %arg7[%c0_32, %c4] : memref<256x36xbf16, #tpu.memory_space<vmem>>, vector<256x4xbf16>
    tpu.vector_store %arg7[%c0_32, %c4], %12 {strides = array<i32>} : memref<256x36xbf16, #tpu.memory_space<vmem>>, vector<256x4xbf16>,
    %c0_33 = arith.constant 0 : index
    %c0_34 = arith.constant 0 : index
    %c2 = arith.constant 2 : index
    %c0_35 = arith.constant 0 : index
    %14 = vector.load %arg6[%c0_33, %c0_34, %c2, %c0_35] : memref<1x18x18x4xbf16, #tpu.memory_space<vmem>>, vector<1x16x16x4xbf16>
    %15 = vector.shape_cast %14 : vector<1x16x16x4xbf16> to vector<256x4xbf16>
    %c0_36 = arith.constant 0 : index
    %c8 = arith.constant 8 : index
    %16 = vector.load %arg7[%c0_36, %c8] : memref<256x36xbf16, #tpu.memory_space<vmem>>, vector<256x4xbf16>
    tpu.vector_store %arg7[%c0_36, %c8], %15 {strides = array<i32>} : memref<256x36xbf16, #tpu.memory_space<vmem>>, vector<256x4xbf16>,
    %c0_37 = arith.constant 0 : index
    %c1_38 = arith.constant 1 : index
    %c0_39 = arith.constant 0 : index
    %c0_40 = arith.constant 0 : index
    %17 = vector.load %arg6[%c0_37, %c1_38, %c0_39, %c0_40] : memref<1x18x18x4xbf16, #tpu.memory_space<vmem>>, vector<1x16x16x4xbf16>
    %18 = vector.shape_cast %17 : vector<1x16x16x4xbf16> to vector<256x4xbf16>
    %c0_41 = arith.constant 0 : index
    %c12 = arith.constant 12 : index
    %19 = vector.load %arg7[%c0_41, %c12] : memref<256x36xbf16, #tpu.memory_space<vmem>>, vector<256x4xbf16>
    tpu.vector_store %arg7[%c0_41, %c12], %18 {strides = array<i32>} : memref<256x36xbf16, #tpu.memory_space<vmem>>, vector<256x4xbf16>,
    %c0_42 = arith.constant 0 : index
    %c1_43 = arith.constant 1 : index
    %c1_44 = arith.constant 1 : index
    %c0_45 = arith.constant 0 : index
    %20 = vector.load %arg6[%c0_42, %c1_43, %c1_44, %c0_45] : memref<1x18x18x4xbf16, #tpu.memory_space<vmem>>, vector<1x16x16x4xbf16>
    %21 = vector.shape_cast %20 : vector<1x16x16x4xbf16> to vector<256x4xbf16>
    %c0_46 = arith.constant 0 : index
    %c16 = arith.constant 16 : index
    %22 = vector.load %arg7[%c0_46, %c16] : memref<256x36xbf16, #tpu.memory_space<vmem>>, vector<256x4xbf16>
    tpu.vector_store %arg7[%c0_46, %c16], %21 {strides = array<i32>} : memref<256x36xbf16, #tpu.memory_space<vmem>>, vector<256x4xbf16>,
    %c0_47 = arith.constant 0 : index
    %c1_48 = arith.constant 1 : index
    %c2_49 = arith.constant 2 : index
    %c0_50 = arith.constant 0 : index
    %23 = vector.load %arg6[%c0_47, %c1_48, %c2_49, %c0_50] : memref<1x18x18x4xbf16, #tpu.memory_space<vmem>>, vector<1x16x16x4xbf16>
    %24 = vector.shape_cast %23 : vector<1x16x16x4xbf16> to vector<256x4xbf16>
    %c0_51 = arith.constant 0 : index
    %c20 = arith.constant 20 : index
    %25 = vector.load %arg7[%c0_51, %c20] : memref<256x36xbf16, #tpu.memory_space<vmem>>, vector<256x4xbf16>
    tpu.vector_store %arg7[%c0_51, %c20], %24 {strides = array<i32>} : memref<256x36xbf16, #tpu.memory_space<vmem>>, vector<256x4xbf16>,
    %c0_52 = arith.constant 0 : index
    %c2_53 = arith.constant 2 : index
    %c0_54 = arith.constant 0 : index
    %c0_55 = arith.constant 0 : index
    %26 = vector.load %arg6[%c0_52, %c2_53, %c0_54, %c0_55] : memref<1x18x18x4xbf16, #tpu.memory_space<vmem>>, vector<1x16x16x4xbf16>
    %27 = vector.shape_cast %26 : vector<1x16x16x4xbf16> to vector<256x4xbf16>
    %c0_56 = arith.constant 0 : index
    %c24 = arith.constant 24 : index
    %28 = vector.load %arg7[%c0_56, %c24] : memref<256x36xbf16, #tpu.memory_space<vmem>>, vector<256x4xbf16>
    tpu.vector_store %arg7[%c0_56, %c24], %27 {strides = array<i32>} : memref<256x36xbf16, #tpu.memory_space<vmem>>, vector<256x4xbf16>,
    %c0_57 = arith.constant 0 : index
    %c2_58 = arith.constant 2 : index
    %c1_59 = arith.constant 1 : index
    %c0_60 = arith.constant 0 : index
    %29 = vector.load %arg6[%c0_57, %c2_58, %c1_59, %c0_60] : memref<1x18x18x4xbf16, #tpu.memory_space<vmem>>, vector<1x16x16x4xbf16>
    %30 = vector.shape_cast %29 : vector<1x16x16x4xbf16> to vector<256x4xbf16>
    %c0_61 = arith.constant 0 : index
    %c28 = arith.constant 28 : index
    %31 = vector.load %arg7[%c0_61, %c28] : memref<256x36xbf16, #tpu.memory_space<vmem>>, vector<256x4xbf16>
    tpu.vector_store %arg7[%c0_61, %c28], %30 {strides = array<i32>} : memref<256x36xbf16, #tpu.memory_space<vmem>>, vector<256x4xbf16>,
    %c0_62 = arith.constant 0 : index
    %c2_63 = arith.constant 2 : index
    %c2_64 = arith.constant 2 : index
    %c0_65 = arith.constant 0 : index
    %32 = vector.load %arg6[%c0_62, %c2_63, %c2_64, %c0_65] : memref<1x18x18x4xbf16, #tpu.memory_space<vmem>>, vector<1x16x16x4xbf16>
    %33 = vector.shape_cast %32 : vector<1x16x16x4xbf16> to vector<256x4xbf16>
    %c0_66 = arith.constant 0 : index
    %c32 = arith.constant 32 : index
    %34 = vector.load %arg7[%c0_66, %c32] : memref<256x36xbf16, #tpu.memory_space<vmem>>, vector<256x4xbf16>
    tpu.vector_store %arg7[%c0_66, %c32], %33 {strides = array<i32>} : memref<256x36xbf16, #tpu.memory_space<vmem>>, vector<256x4xbf16>,
    %c0_67 = arith.constant 0 : index
    %c0_68 = arith.constant 0 : index
    %35 = vector.load %arg7[%c0_67, %c0_68] : memref<256x36xbf16, #tpu.memory_space<vmem>>, vector<256x36xbf16>
    %c0_69 = arith.constant 0 : index
    %c0_70 = arith.constant 0 : index
    %36 = vector.load %arg2[%c0_69, %c0_70] : memref<36x8xbf16, #tpu.memory_space<vmem>>, vector<36x8xbf16>
    %cst_71 = arith.constant dense<0.000000e+00> : vector<256x8xf32>
    %37 = tpu.matmul %35, %36, %cst_71 {dimension_numbers = #tpu.dot_dimension_numbers<[1], [0], [0], [1], [0, 0, 1, 1], [], []>} : vector<256x36xbf16>, vector<36x8xbf16>, vector<256x8xf32> -> vector<256x8xf32>
    %c0_72 = arith.constant 0 : index
    %c0_73 = arith.constant 0 : index
    %38 = vector.load %arg3[%c0_72, %c0_73] : memref<1x8xf32, #tpu.memory_space<vmem>>, vector<1x8xf32>
    %39 = vector.broadcast %38 : vector<1x8xf32> to vector<256x8xf32>
    %40 = arith.mulf %37, %39 : vector<256x8xf32>
    %c0_74 = arith.constant 0 : index
    %c0_75 = arith.constant 0 : index
    %41 = vector.load %arg4[%c0_74, %c0_75] : memref<1x8xf32, #tpu.memory_space<vmem>>, vector<1x8xf32>
    %42 = vector.broadcast %41 : vector<1x8xf32> to vector<256x8xf32>
    %43 = arith.addf %40, %42 : vector<256x8xf32>
    %cst_76 = arith.constant 0.000000e+00 : f32
    %44 = vector.broadcast %cst_76 : f32 to vector<256x8xf32>
    %45 = arith.maximumf %43, %44 : vector<256x8xf32>
    %46 = vector.shape_cast %45 : vector<256x8xf32> to vector<1x16x16x8xf32>
    %47 = arith.truncf %46 : vector<1x16x16x8xf32> to vector<1x16x16x8xbf16>
    %c0_77 = arith.constant 0 : index
    %c0_78 = arith.constant 0 : index
    %c0_79 = arith.constant 0 : index
    %c0_80 = arith.constant 0 : index
    %48 = vector.load %arg5[%c0_77, %c0_78, %c0_79, %c0_80] : memref<1x16x16x8xbf16, #tpu.memory_space<vmem>>, vector<1x16x16x8xbf16>
    tpu.vector_store %arg5[%c0_77, %c0_78, %c0_79, %c0_80], %47 {strides = array<i32>} : memref<1x16x16x8xbf16, #tpu.memory_space<vmem>>, vector<1x16x16x8xbf16>,
    return
  }
  func.func @transform_0(%arg0: i32) -> (i32, i32, i32, i32) {
    %c0_i32 = arith.constant 0 : i32
    %c0_i32_0 = arith.constant 0 : i32
    %c0_i32_1 = arith.constant 0 : i32
    %c0_i32_2 = arith.constant 0 : i32
    return %arg0, %c0_i32, %c0_i32_0, %c0_i32_1 : i32, i32, i32, i32
  }
  func.func @transform_1(%arg0: i32) -> (i32, i32) {
    %c0_i32 = arith.constant 0 : i32
    %c0_i32_0 = arith.constant 0 : i32
    %c0_i32_1 = arith.constant 0 : i32
    return %c0_i32, %c0_i32_0 : i32, i32
  }
  func.func @transform_2(%arg0: i32) -> (i32, i32) {
    %c0_i32 = arith.constant 0 : i32
    %c0_i32_0 = arith.constant 0 : i32
    %c0_i32_1 = arith.constant 0 : i32
    return %c0_i32, %c0_i32_0 : i32, i32
  }
  func.func @transform_3(%arg0: i32) -> (i32, i32) {
    %c0_i32 = arith.constant 0 : i32
    %c0_i32_0 = arith.constant 0 : i32
    %c0_i32_1 = arith.constant 0 : i32
    return %c0_i32, %c0_i32_0 : i32, i32
  }
  func.func @transform_4(%arg0: i32) -> (i32, i32, i32, i32) {
    %c0_i32 = arith.constant 0 : i32
    %c0_i32_0 = arith.constant 0 : i32
    %c0_i32_1 = arith.constant 0 : i32
    %c0_i32_2 = arith.constant 0 : i32
    return %arg0, %c0_i32, %c0_i32_0, %c0_i32_1 : i32, i32, i32, i32
  }
}

</mosaic_0001>

<llo_original>
// kernel: tpu_custom_call.1
$region0: #{tpu_custom_call.1}
  #allocation0 [shape = 'u32[]', space=smem, size = 0x4, offset = 0x4, fixed_abs, tag = 'smem constant byte address 0x4 - core index']
  #allocation1 [shape = 'u32[144,128]{1,0:T(1,128)}', space=vmem, size = 0x12000, scoped, tag = 'internal scratch']
  #allocation2 [shape = 'bf16[1,18,18,4]{3,2,1,0:T(8,128)(2,1)}', space=vmem, size = 0x1b000, scoped, tag = 'scratch operand']
  #allocation3 [shape = 'bf16[256,36]{1,0:T(16,128)(2,1)}', space=vmem, size = 0x10000, scoped, tag = 'scratch operand']
  %s0 = inlined_call_operand.vmem [shape: bf16[2,16,16,4], index: 0, kind: input, shape index: {}]
  %s1 = inlined_call_operand.vmem [shape: bf16[36,8], index: 1, kind: input, shape index: {}]
  %s2 = inlined_call_operand.vmem [shape: f32[1,8], index: 2, kind: input, shape index: {}]
  %s3 = inlined_call_operand.vmem [shape: f32[1,8], index: 3, kind: input, shape index: {}]
  %s4 = inlined_call_operand.vmem [shape: bf16[2,16,16,8], index: 4, kind: output, shape index: {}]
  %s5 = sld [smem:[#allocation0]]
  $region49: #{tpu_custom_call.1} parent=0
    _
  %s7 = ssub.s32 1, %s5
  %s8 = scalar_select 0, %s7, %s5
  loop: start=0, step=1, limit=4
  $region2: #{tpu_custom_call.1} parent=0 // loop_pre_header
    _
  $region3: #{tpu_custom_call.1} parent=0 // loop_header
    %s10 = sphi 0, %s14
    %p11 = scmp.ge.s32.totalorder %s10, 4
    %s20 = sphi 0, %s22
    %s23 = sphi 0, %s20
    %s24 = sphi 0, %s23
    %s40 = sphi 0, %s24
    %s44 = sphi 0, %s44
    %s46 = sphi 0, %s44
    %s47 = sphi 0, %s46
    %s61 = sphi 0, %s47
    %s65 = sphi 0, %s65
    %s67 = sphi 0, %s65
    %s68 = sphi 0, %s67
    %s82 = sphi 0, %s68
    %s86 = sphi 0, %s86
    %s88 = sphi 0, %s86
    %s89 = sphi 0, %s88
    %s103 = sphi 0, %s89
    %s109 = sphi 0, %s111
    %s112 = sphi 0, %s109
    %s113 = sphi 0, %s112
    %s129 = sphi 0, %s113
  $region4: #{tpu_custom_call.1} parent=0 // loop_header_branch
    %13 = sbr.rel (%p11) target = $region8
  $region5: #{tpu_custom_call.1} parent=0 // loop_body
    %s15 = ssub.s32 %s10, 1
    %s16 = ssub.s32 %s10, 2
    %s17 = sadd.s32 %s10, 1
    %s18 = ssub.s32 %s10, %s17
    %p19 = scmp.eq.s32.totalorder %s18, 0
    %s21 = sadd.s32 %s20, 1
    %s22 = scalar_select %p19, %s20, %s21
    %p25 = pneg %p19
    %p26 = scmp.eq.s32.totalorder %s10, 1
    %p27 = por %p25, %p26
    %p28 = scmp.ne.s32.totalorder %s20, %s23
    %p29 = scmp.eq.s32.totalorder %s10, 0
    %p30 = por %p28, %p29
    %p31 = scmp.ne.s32.totalorder %s20, %s23
    %p32 = scmp.eq.s32.totalorder %s15, 1
    %p33 = por %p31, %p32
    %p34 = scmp.ne.s32.totalorder %s23, %s24
    %p35 = scmp.eq.s32.totalorder %s15, 0
    %p36 = por %p34, %p35
    %p37 = scmp.ne.s32.totalorder %s23, %s24
    %p38 = scmp.eq.s32.totalorder %s16, 1
    %p39 = por %p37, %p38
    %p41 = scmp.ne.s32.totalorder %s24, %s40
    %p42 = scmp.eq.s32.totalorder %s16, 0
    %p43 = por %p41, %p42
    %s45 = sadd.s32 %s44, 1
    %p48 = scmp.eq.s32.totalorder %s10, 1
    %p49 = scmp.ne.s32.totalorder %s44, %s46
    %p50 = scmp.eq.s32.totalorder %s10, 0
    %p51 = por %p49, %p50
    %p52 = scmp.ne.s32.totalorder %s44, %s46
    %p53 = scmp.eq.s32.totalorder %s15, 1
    %p54 = por %p52, %p53
    %p55 = scmp.ne.s32.totalorder %s46, %s47
    %p56 = scmp.eq.s32.totalorder %s15, 0
    %p57 = por %p55, %p56
    %p58 = scmp.ne.s32.totalorder %s46, %s47
    %p59 = scmp.eq.s32.totalorder %s16, 1
    %p60 = por %p58, %p59
    %p62 = scmp.ne.s32.totalorder %s47, %s61
    %p63 = scmp.eq.s32.totalorder %s16, 0
    %p64 = por %p62, %p63
    %s66 = sadd.s32 %s65, 1
    %p69 = scmp.eq.s32.totalorder %s10, 1
    %p70 = scmp.ne.s32.totalorder %s65, %s67
    %p71 = scmp.eq.s32.totalorder %s10, 0
    %p72 = por %p70, %p71
    %p73 = scmp.ne.s32.totalorder %s65, %s67
    %p74 = scmp.eq.s32.totalorder %s15, 1
    %p75 = por %p73, %p74
    %p76 = scmp.ne.s32.totalorder %s67, %s68
    %p77 = scmp.eq.s32.totalorder %s15, 0
    %p78 = por %p76, %p77
    %p79 = scmp.ne.s32.totalorder %s67, %s68
    %p80 = scmp.eq.s32.totalorder %s16, 1
    %p81 = por %p79, %p80
    %p83 = scmp.ne.s32.totalorder %s68, %s82
    %p84 = scmp.eq.s32.totalorder %s16, 0
    %p85 = por %p83, %p84
    %s87 = sadd.s32 %s86, 1
    %p90 = scmp.eq.s32.totalorder %s10, 1
    %p91 = scmp.ne.s32.totalorder %s86, %s88
    %p92 = scmp.eq.s32.totalorder %s10, 0
    %p93 = por %p91, %p92
    %p94 = scmp.ne.s32.totalorder %s86, %s88
    %p95 = scmp.eq.s32.totalorder %s15, 1
    %p96 = por %p94, %p95
    %p97 = scmp.ne.s32.totalorder %s88, %s89
    %p98 = scmp.eq.s32.totalorder %s15, 0
    %p99 = por %p97, %p98
    %p100 = scmp.ne.s32.totalorder %s88, %s89
    %p101 = scmp.eq.s32.totalorder %s16, 1
    %p102 = por %p100, %p101
    %p104 = scmp.ne.s32.totalorder %s89, %s103
    %p105 = scmp.eq.s32.totalorder %s16, 0
    %p106 = por %p104, %p105
    %s107 = ssub.s32 %s10, %s17
    %p108 = scmp.eq.s32.totalorder %s107, 0
    %s110 = sadd.s32 %s109, 1
    %s111 = scalar_select %p108, %s109, %s110
    %p114 = pneg %p108
    %p115 = scmp.eq.s32.totalorder %s10, 1
    %p116 = por %p114, %p115
    %p117 = scmp.ne.s32.totalorder %s109, %s112
    %p118 = scmp.eq.s32.totalorder %s10, 0
    %p119 = por %p117, %p118
    %p120 = scmp.ne.s32.totalorder %s109, %s112
    %p121 = scmp.eq.s32.totalorder %s15, 1
    %p122 = por %p120, %p121
    %p123 = scmp.ne.s32.totalorder %s112, %s113
    %p124 = scmp.eq.s32.totalorder %s15, 0
    %p125 = por %p123, %p124
    %p126 = scmp.ne.s32.totalorder %s112, %s113
    %p127 = scmp.eq.s32.totalorder %s16, 1
    %p128 = por %p126, %p127
    %p130 = scmp.ne.s32.totalorder %s113, %s129
    %p131 = scmp.eq.s32.totalorder %s16, 0
    %p132 = por %p130, %p131
    %p133 = scmp.le.s32.totalorder 1, %s10
    %p134 = scmp.lt.s32.totalorder %s10, 3
    %p135 = pnand %p133, %p134
    %p136 = pneg %p135
    // Predicated region
    $region9: #{tpu_custom_call.1} parent=5 // pred_check
      _
    $region10: #{tpu_custom_call.1} parent=5 // pred_check_branch
      %138 = sbr.rel (%p135) target = $region12
    $region11: #{tpu_custom_call.1} parent=5 // pred_region
      %s139 = ssub.s32 %s10, 1
      // Predicated region
      $region13: #{tpu_custom_call.1} parent=11 // pred_check
        %p140 = pneg %p57
      $region14: #{tpu_custom_call.1} parent=11 // pred_check_branch
        %142 = sbr.rel (%p140) target = $region16
      $region15: #{tpu_custom_call.1} parent=11 // pred_region
        _
      $region16: #{tpu_custom_call.1} parent=11 // pred_fallthru
        _
      // Predicated region
      $region17: #{tpu_custom_call.1} parent=11 // pred_check
        %p143 = pneg %p78
      $region18: #{tpu_custom_call.1} parent=11 // pred_check_branch
        %145 = sbr.rel (%p143) target = $region20
      $region19: #{tpu_custom_call.1} parent=11 // pred_region
        _
      $region20: #{tpu_custom_call.1} parent=11 // pred_fallthru
        _
      // Predicated region
      $region21: #{tpu_custom_call.1} parent=11 // pred_check
        %p146 = pneg %p99
      $region22: #{tpu_custom_call.1} parent=11 // pred_check_branch
        %148 = sbr.rel (%p146) target = $region24
      $region23: #{tpu_custom_call.1} parent=11 // pred_region
        _
      $region24: #{tpu_custom_call.1} parent=11 // pred_fallthru
        _
    $region12: #{tpu_custom_call.1} parent=5 // pred_fallthru
      _
    %p149 = scmp.lt.s32.totalorder %s10, 2
    // Predicated region
    $region25: #{tpu_custom_call.1} parent=5 // pred_check
      %p150 = pneg %p149
    $region26: #{tpu_custom_call.1} parent=5 // pred_check_branch
      %152 = sbr.rel (%p150) target = $region28
    $region27: #{tpu_custom_call.1} parent=5 // pred_region
      // Predicated region
      $region29: #{tpu_custom_call.1} parent=27 // pred_check
        %p153 = pneg %p30
      $region30: #{tpu_custom_call.1} parent=27 // pred_check_branch
        %155 = sbr.rel (%p153) target = $region32
      $region31: #{tpu_custom_call.1} parent=27 // pred_region
        %p156 = scmp.lt.s32.totalorder %s10, 1
        %s157 = scalar_select %p156, %s10, 1
        %s158 = smul.addr %s157, 32
        %s159 = smul.addr %s158, 4
        %s160 = scalar_lea.vmem %s0, %s159
      $region32: #{tpu_custom_call.1} parent=27 // pred_fallthru
        _
    $region28: #{tpu_custom_call.1} parent=5 // pred_fallthru
      _
    %p161 = scmp.le.s32.totalorder 1, %s10
    %p162 = scmp.lt.s32.totalorder %s10, 3
    %p163 = pnand %p161, %p162
    %p164 = pneg %p163
    // Predicated region
    $region33: #{tpu_custom_call.1} parent=5 // pred_check
      _
    $region34: #{tpu_custom_call.1} parent=5 // pred_check_branch
      %166 = sbr.rel (%p163) target = $region36
    $region35: #{tpu_custom_call.1} parent=5 // pred_region
      %s167 = ssub.s32 %s10, 1
      %p168 = scmp.lt.s32.totalorder %s15, 1
      %s169 = scalar_select %p168, %s15, 1
      %s170 = smul.addr %s169, 32
      %s171 = smul.addr %s170, 4
      %s172 = scalar_lea.vmem %s0, %s171
      %p173 = pneg %p36
      %p174 = pneg %p33
      %p175 = pneg %p57
      %p176 = pneg %p54
      %p177 = pneg %p78
      %p178 = pneg %p75
      %p179 = pneg %p99
      %p180 = pneg %p96
      %p181 = pneg %p125
      %p182 = pneg %p122
      %p183 = scmp.lt.s32.totalorder %s15, 1
      %s184 = scalar_select %p183, %s15, 1
      %s185 = smul.addr %s184, 32
      %s186 = smul.addr %s185, 4
      %s187 = scalar_lea.vmem %s4, %s186
      %p188 = scmp.lt.s32.totalorder %s15, 1
      %s189 = scalar_select %p188, %s15, 1
      %s190 = smul.addr %s189, 32
      %s191 = smul.addr %s190, 4
      %s192 = scalar_lea.vmem %s0, %s191
      %p193 = scmp.lt.s32.totalorder %s15, 1
      %s194 = scalar_select %p193, %s15, 1
      %s195 = smul.addr %s194, 32
      %s196 = smul.addr %s195, 4
      %s197 = scalar_lea.vmem %s4, %s196
      %vm199 = vcmask 27648
      %200 = vst.msk [vmem:[#allocation2] sm:$0xf] %vm199, 0
      %201 = vst.msk [vmem:[#allocation2 + $0x4] sm:$0xf] %vm199, 0
      %vm202 = vcmask 24576
      %203 = vst.msk [vmem:[#allocation2 + $0x8] sm:$0x1] %vm202, 0
      %s204 = scalar_lea.vmem [#allocation2], 204
      %205 = vst.msk [vmem:[%s204] sm:$0xf] %vm199, 0
      %206 = vst.msk [vmem:[%s204 + $0x4] sm:$0xf] %vm199, 0
      %207 = vst.msk [vmem:[%s204 + $0x8] sm:$0x1] %vm202, 0
      %vm208 = vcmask 24576
      %vm209 = vsmask.f32 256
      %vm210 = vmand %vm208, %vm209
      %v211 = vld [vmem:[#allocation2] sm:$0x1]
      %v212 = vsel %vm210, 0, %v211
      %213 = vst [vmem:[#allocation2] sm:$0x1] %v212
      %v214 = vld [vmem:[#allocation2 + $0xc] sm:$0x1]
      %v215 = vsel %vm210, 0, %v214
      %216 = vst [vmem:[#allocation2 + $0xc] sm:$0x1] %v215
      %v217 = vld [vmem:[#allocation2 + $0x18] sm:$0x1]
      %v218 = vsel %vm210, 0, %v217
      %219 = vst [vmem:[#allocation2 + $0x18] sm:$0x1] %v218
      %v220 = vld [vmem:[#allocation2 + $0x24] sm:$0x1]
      %v221 = vsel %vm210, 0, %v220
      %222 = vst [vmem:[#allocation2 + $0x24] sm:$0x1] %v221
      %v223 = vld [vmem:[#allocation2 + $0x30] sm:$0x1]
      %v224 = vsel %vm210, 0, %v223
      %225 = vst [vmem:[#allocation2 + $0x30] sm:$0x1] %v224
      %v226 = vld [vmem:[#allocation2 + $0x3c] sm:$0x1]
      %v227 = vsel %vm210, 0, %v226
      %228 = vst [vmem:[#allocation2 + $0x3c] sm:$0x1] %v227
      %v229 = vld [vmem:[#allocation2 + $0x48] sm:$0x1]
      %v230 = vsel %vm210, 0, %v229
      %231 = vst [vmem:[#allocation2 + $0x48] sm:$0x1] %v230
      %v232 = vld [vmem:[#allocation2 + $0x54] sm:$0x1]
      %v233 = vsel %vm210, 0, %v232
      %234 = vst [vmem:[#allocation2 + $0x54] sm:$0x1] %v233
      %v235 = vld [vmem:[#allocation2 + $0x60] sm:$0x1]
      %v236 = vsel %vm210, 0, %v235
      %237 = vst [vmem:[#allocation2 + $0x60] sm:$0x1] %v236
      %v238 = vld [vmem:[#allocation2 + $0x6c] sm:$0x1]
      %v239 = vsel %vm210, 0, %v238
      %240 = vst [vmem:[#allocation2 + $0x6c] sm:$0x1] %v239
      %v241 = vld [vmem:[#allocation2 + $0x78] sm:$0x1]
      %v242 = vsel %vm210, 0, %v241
      %243 = vst [vmem:[#allocation2 + $0x78] sm:$0x1] %v242
      %v244 = vld [vmem:[#allocation2 + $0x84] sm:$0x1]
      %v245 = vsel %vm210, 0, %v244
      %246 = vst [vmem:[#allocation2 + $0x84] sm:$0x1] %v245
      %v247 = vld [vmem:[#allocation2 + $0x90] sm:$0x1]
      %v248 = vsel %vm210, 0, %v247
      %249 = vst [vmem:[#allocation2 + $0x90] sm:$0x1] %v248
      %v250 = vld [vmem:[#allocation2 + $0x9c] sm:$0x1]
      %v251 = vsel %vm210, 0, %v250
      %252 = vst [vmem:[#allocation2 + $0x9c] sm:$0x1] %v251
      %v253 = vld [vmem:[#allocation2 + $0xa8] sm:$0x1]
      %v254 = vsel %vm210, 0, %v253
      %255 = vst [vmem:[#allocation2 + $0xa8] sm:$0x1] %v254
      %v256 = vld [vmem:[#allocation2 + $0xb4] sm:$0x1]
      %v257 = vsel %vm210, 0, %v256
      %258 = vst [vmem:[#allocation2 + $0xb4] sm:$0x1] %v257
      %v259 = vld [vmem:[#allocation2 + $0xc0] sm:$0x1]
      %v260 = vsel %vm210, 0, %v259
      %261 = vst [vmem:[#allocation2 + $0xc0] sm:$0x1] %v260
      %v262 = vld [vmem:[#allocation2 + $0xcc] sm:$0x1]
      %v263 = vsel %vm210, 0, %v262
      %264 = vst [vmem:[#allocation2 + $0xcc] sm:$0x1] %v263
      %vm265 = vsmask.f32 7938
      %vm266 = vmand %vm208, %vm265
      %v267 = vld [vmem:[#allocation2 + $0x8] sm:$0x1]
      %v268 = vsel %vm266, 0, %v267
      %269 = vst [vmem:[#allocation2 + $0x8] sm:$0x1] %v268
      %v270 = vld [vmem:[#allocation2 + $0x14] sm:$0x1]
      %v271 = vsel %vm266, 0, %v270
      %272 = vst [vmem:[#allocation2 + $0x14] sm:$0x1] %v271
      %v273 = vld [vmem:[#allocation2 + $0x20] sm:$0x1]
      %v274 = vsel %vm266, 0, %v273
      %275 = vst [vmem:[#allocation2 + $0x20] sm:$0x1] %v274
      %v276 = vld [vmem:[#allocation2 + $0x2c] sm:$0x1]
      %v277 = vsel %vm266, 0, %v276
      %278 = vst [vmem:[#allocation2 + $0x2c] sm:$0x1] %v277
      %v279 = vld [vmem:[#allocation2 + $0x38] sm:$0x1]
      %v280 = vsel %vm266, 0, %v279
      %281 = vst [vmem:[#allocation2 + $0x38] sm:$0x1] %v280
      %v282 = vld [vmem:[#allocation2 + $0x44] sm:$0x1]
      %v283 = vsel %vm266, 0, %v282
      %284 = vst [vmem:[#allocation2 + $0x44] sm:$0x1] %v283
      %v285 = vld [vmem:[#allocation2 + $0x50] sm:$0x1]
      %v286 = vsel %vm266, 0, %v285
      %287 = vst [vmem:[#allocation2 + $0x50] sm:$0x1] %v286
      %v288 = vld [vmem:[#allocation2 + $0x5c] sm:$0x1]
      %v289 = vsel %vm266, 0, %v288
      %290 = vst [vmem:[#allocation2 + $0x5c] sm:$0x1] %v289
      %v291 = vld [vmem:[#allocation2 + $0x68] sm:$0x1]
      %v292 = vsel %vm266, 0, %v291
      %293 = vst [vmem:[#allocation2 + $0x68] sm:$0x1] %v292
      %v294 = vld [vmem:[#allocation2 + $0x74] sm:$0x1]
      %v295 = vsel %vm266, 0, %v294
      %296 = vst [vmem:[#allocation2 + $0x74] sm:$0x1] %v295
      %v297 = vld [vmem:[#allocation2 + $0x80] sm:$0x1]
      %v298 = vsel %vm266, 0, %v297
      %299 = vst [vmem:[#allocation2 + $0x80] sm:$0x1] %v298
      %v300 = vld [vmem:[#allocation2 + $0x8c] sm:$0x1]
      %v301 = vsel %vm266, 0, %v300
      %302 = vst [vmem:[#allocation2 + $0x8c] sm:$0x1] %v301
      %v303 = vld [vmem:[#allocation2 + $0x98] sm:$0x1]
      %v304 = vsel %vm266, 0, %v303
      %305 = vst [vmem:[#allocation2 + $0x98] sm:$0x1] %v304
      %v306 = vld [vmem:[#allocation2 + $0xa4] sm:$0x1]
      %v307 = vsel %vm266, 0, %v306
      %308 = vst [vmem:[#allocation2 + $0xa4] sm:$0x1] %v307
      %v309 = vld [vmem:[#allocation2 + $0xb0] sm:$0x1]
      %v310 = vsel %vm266, 0, %v309
      %311 = vst [vmem:[#allocation2 + $0xb0] sm:$0x1] %v310
      %v312 = vld [vmem:[#allocation2 + $0xbc] sm:$0x1]
      %v313 = vsel %vm266, 0, %v312
      %314 = vst [vmem:[#allocation2 + $0xbc] sm:$0x1] %v313
      %v315 = vld [vmem:[#allocation2 + $0xc8] sm:$0x1]
      %v316 = vsel %vm266, 0, %v315
      %317 = vst [vmem:[#allocation2 + $0xc8] sm:$0x1] %v316
      %v318 = vld [vmem:[#allocation2 + $0xd4] sm:$0x1]
      %v319 = vsel %vm266, 0, %v318
      %320 = vst [vmem:[#allocation2 + $0xd4] sm:$0x1] %v319
      %v321 = vld [vmem:[%s192] sm:$0xf]
      %v322 = vld [vmem:[%s192 + $0x4] sm:$0xf]
      %v323 = vld [vmem:[%s192 + $0x8] sm:$0xf]
      %v324 = vld [vmem:[%s192 + $0xc] sm:$0xf]
      %v325 = vld [vmem:[%s192 + $0x10] sm:$0xf]
      %v326 = vld [vmem:[%s192 + $0x14] sm:$0xf]
      %v327 = vld [vmem:[%s192 + $0x18] sm:$0xf]
      %v328 = vld [vmem:[%s192 + $0x1c] sm:$0xf]
      %v329 = vld [vmem:[%s192 + $0x20] sm:$0xf]
      %v330 = vld [vmem:[%s192 + $0x24] sm:$0xf]
      %v331 = vld [vmem:[%s192 + $0x28] sm:$0xf]
      %v332 = vld [vmem:[%s192 + $0x2c] sm:$0xf]
      %v333 = vld [vmem:[%s192 + $0x30] sm:$0xf]
      %v334 = vld [vmem:[%s192 + $0x34] sm:$0xf]
      %v335 = vld [vmem:[%s192 + $0x38] sm:$0xf]
      %v336 = vld [vmem:[%s192 + $0x3c] sm:$0xf]
      %v337 = vld [vmem:[%s192 + $0x40] sm:$0xf]
      %v338 = vld [vmem:[%s192 + $0x44] sm:$0xf]
      %v339 = vld [vmem:[%s192 + $0x48] sm:$0xf]
      %v340 = vld [vmem:[%s192 + $0x4c] sm:$0xf]
      %v341 = vld [vmem:[%s192 + $0x50] sm:$0xf]
      %v342 = vld [vmem:[%s192 + $0x54] sm:$0xf]
      %v343 = vld [vmem:[%s192 + $0x58] sm:$0xf]
      %v344 = vld [vmem:[%s192 + $0x5c] sm:$0xf]
      %v345 = vld [vmem:[%s192 + $0x60] sm:$0xf]
      %v346 = vld [vmem:[%s192 + $0x64] sm:$0xf]
      %v347 = vld [vmem:[%s192 + $0x68] sm:$0xf]
      %v348 = vld [vmem:[%s192 + $0x6c] sm:$0xf]
      %v349 = vld [vmem:[%s192 + $0x70] sm:$0xf]
      %v350 = vld [vmem:[%s192 + $0x74] sm:$0xf]
      %v351 = vld [vmem:[%s192 + $0x78] sm:$0xf]
      %v352 = vld [vmem:[%s192 + $0x7c] sm:$0xf]
      %vm353 = vsmask.f32 4368
      %vm354 = vmor %vm209, %vm353
      %v356 = vshrl.u32 %v321, 16
      %v358 = vrot.slane %v356, 7
      %v359 = vshll.u32 %v321, 16
      %v361 = vor.u32 %v358, %v359
      %v362 = vrot.slane %v358, 4
      %v364 = vshrl.u32 %v322, 16
      %v366 = vrot.slane %v364, 7
      %v367 = vshll.u32 %v322, 16
      %v369 = vor.u32 %v366, %v367
      %v370 = vsel %vm354, %v362, %v369
      %v371 = vrot.slane %v366, 4
      %v373 = vshrl.u32 %v323, 16
      %v375 = vrot.slane %v373, 7
      %v376 = vshll.u32 %v323, 16
      %v378 = vor.u32 %v375, %v376
      %v379 = vrot.slane %v375, 4
      %v381 = vshrl.u32 %v324, 16
      %v383 = vrot.slane %v381, 7
      %v384 = vshll.u32 %v324, 16
      %v386 = vor.u32 %v383, %v384
      %v387 = vsel %vm354, %v379, %v386
      %v388 = vrot.slane %v383, 4
      %v390 = vshrl.u32 %v325, 16
      %v392 = vrot.slane %v390, 7
      %v393 = vshll.u32 %v325, 16
      %v395 = vor.u32 %v392, %v393
      %v396 = vrot.slane %v392, 4
      %v398 = vshrl.u32 %v326, 16
      %v400 = vrot.slane %v398, 7
      %v401 = vshll.u32 %v326, 16
      %v403 = vor.u32 %v400, %v401
      %v404 = vsel %vm354, %v396, %v403
      %v405 = vrot.slane %v400, 4
      %v407 = vshrl.u32 %v327, 16
      %v409 = vrot.slane %v407, 7
      %v410 = vshll.u32 %v327, 16
      %v412 = vor.u32 %v409, %v410
      %v413 = vrot.slane %v409, 4
      %v415 = vshrl.u32 %v328, 16
      %v417 = vrot.slane %v415, 7
      %v418 = vshll.u32 %v328, 16
      %v420 = vor.u32 %v417, %v418
      %v421 = vsel %vm354, %v413, %v420
      %v422 = vrot.slane %v417, 4
      %v424 = vshrl.u32 %v329, 16
      %v426 = vrot.slane %v424, 7
      %v427 = vshll.u32 %v329, 16
      %v429 = vor.u32 %v426, %v427
      %v430 = vrot.slane %v426, 4
      %v432 = vshrl.u32 %v330, 16
      %v434 = vrot.slane %v432, 7
      %v435 = vshll.u32 %v330, 16
      %v437 = vor.u32 %v434, %v435
      %v438 = vsel %vm354, %v430, %v437
      %v439 = vrot.slane %v434, 4
      %v441 = vshrl.u32 %v331, 16
      %v443 = vrot.slane %v441, 7
      %v444 = vshll.u32 %v331, 16
      %v446 = vor.u32 %v443, %v444
      %v447 = vrot.slane %v443, 4
      %v449 = vshrl.u32 %v332, 16
      %v451 = vrot.slane %v449, 7
      %v452 = vshll.u32 %v332, 16
      %v454 = vor.u32 %v451, %v452
      %v455 = vsel %vm354, %v447, %v454
      %v456 = vrot.slane %v451, 4
      %v458 = vshrl.u32 %v333, 16
      %v460 = vrot.slane %v458, 7
      %v461 = vshll.u32 %v333, 16
      %v463 = vor.u32 %v460, %v461
      %v464 = vrot.slane %v460, 4
      %v466 = vshrl.u32 %v334, 16
      %v468 = vrot.slane %v466, 7
      %v469 = vshll.u32 %v334, 16
      %v471 = vor.u32 %v468, %v469
      %v472 = vsel %vm354, %v464, %v471
      %v473 = vrot.slane %v468, 4
      %v475 = vshrl.u32 %v335, 16
      %v477 = vrot.slane %v475, 7
      %v478 = vshll.u32 %v335, 16
      %v480 = vor.u32 %v477, %v478
      %v481 = vrot.slane %v477, 4
      %v483 = vshrl.u32 %v336, 16
      %v485 = vrot.slane %v483, 7
      %v486 = vshll.u32 %v336, 16
      %v488 = vor.u32 %v485, %v486
      %v489 = vsel %vm354, %v481, %v488
      %v490 = vrot.slane %v485, 4
      %v492 = vshrl.u32 %v337, 16
      %v494 = vrot.slane %v492, 7
      %v495 = vshll.u32 %v337, 16
      %v497 = vor.u32 %v494, %v495
      %v498 = vrot.slane %v494, 4
      %v500 = vshrl.u32 %v338, 16
      %v502 = vrot.slane %v500, 7
      %v503 = vshll.u32 %v338, 16
      %v505 = vor.u32 %v502, %v503
      %v506 = vsel %vm354, %v498, %v505
      %v507 = vrot.slane %v502, 4
      %v509 = vshrl.u32 %v339, 16
      %v511 = vrot.slane %v509, 7
      %v512 = vshll.u32 %v339, 16
      %v514 = vor.u32 %v511, %v512
      %v515 = vrot.slane %v511, 4
      %v517 = vshrl.u32 %v340, 16
      %v519 = vrot.slane %v517, 7
      %v520 = vshll.u32 %v340, 16
      %v522 = vor.u32 %v519, %v520
      %v523 = vsel %vm354, %v515, %v522
      %v524 = vrot.slane %v519, 4
      %v526 = vshrl.u32 %v341, 16
      %v528 = vrot.slane %v526, 7
      %v529 = vshll.u32 %v341, 16
      %v531 = vor.u32 %v528, %v529
      %v532 = vrot.slane %v528, 4
      %v534 = vshrl.u32 %v342, 16
      %v536 = vrot.slane %v534, 7
      %v537 = vshll.u32 %v342, 16
      %v539 = vor.u32 %v536, %v537
      %v540 = vsel %vm354, %v532, %v539
      %v541 = vrot.slane %v536, 4
      %v543 = vshrl.u32 %v343, 16
      %v545 = vrot.slane %v543, 7
      %v546 = vshll.u32 %v343, 16
      %v548 = vor.u32 %v545, %v546
      %v549 = vrot.slane %v545, 4
      %v551 = vshrl.u32 %v344, 16
      %v553 = vrot.slane %v551, 7
      %v554 = vshll.u32 %v344, 16
      %v556 = vor.u32 %v553, %v554
      %v557 = vsel %vm354, %v549, %v556
      %v558 = vrot.slane %v553, 4
      %v560 = vshrl.u32 %v345, 16
      %v562 = vrot.slane %v560, 7
      %v563 = vshll.u32 %v345, 16
      %v565 = vor.u32 %v562, %v563
      %v566 = vrot.slane %v562, 4
      %v568 = vshrl.u32 %v346, 16
      %v570 = vrot.slane %v568, 7
      %v571 = vshll.u32 %v346, 16
      %v573 = vor.u32 %v570, %v571
      %v574 = vsel %vm354, %v566, %v573
      %v575 = vrot.slane %v570, 4
      %v577 = vshrl.u32 %v347, 16
      %v579 = vrot.slane %v577, 7
      %v580 = vshll.u32 %v347, 16
      %v582 = vor.u32 %v579, %v580
      %v583 = vrot.slane %v579, 4
      %v585 = vshrl.u32 %v348, 16
      %v587 = vrot.slane %v585, 7
      %v588 = vshll.u32 %v348, 16
      %v590 = vor.u32 %v587, %v588
      %v591 = vsel %vm354, %v583, %v590
      %v592 = vrot.slane %v587, 4
      %v594 = vshrl.u32 %v349, 16
      %v596 = vrot.slane %v594, 7
      %v597 = vshll.u32 %v349, 16
      %v599 = vor.u32 %v596, %v597
      %v600 = vrot.slane %v596, 4
      %v602 = vshrl.u32 %v350, 16
      %v604 = vrot.slane %v602, 7
      %v605 = vshll.u32 %v350, 16
      %v607 = vor.u32 %v604, %v605
      %v608 = vsel %vm354, %v600, %v607
      %v609 = vrot.slane %v604, 4
      %v611 = vshrl.u32 %v351, 16
      %v613 = vrot.slane %v611, 7
      %v614 = vshll.u32 %v351, 16
      %v616 = vor.u32 %v613, %v614
      %v617 = vrot.slane %v613, 4
      %v619 = vshrl.u32 %v352, 16
      %v621 = vrot.slane %v619, 7
      %v622 = vshll.u32 %v352, 16
      %v624 = vor.u32 %v621, %v622
      %v625 = vsel %vm354, %v617, %v624
      %v626 = vrot.slane %v621, 4
      %s675 = scalar_lea.vmem [#allocation2], 12
      %vm676 = vcmask 27648
      %vm677 = vmand %vm676, %vm265
      %v678 = vld [vmem:[%s675] sm:$0xf]
      %v679 = vsel %vm677, %v361, %v678
      %680 = vst [vmem:[%s675] sm:$0xf] %v679
      %681 = vst.msk [vmem:[%s675 + $0x4] sm:$0xf] %vm199, %v370
      %v682 = vld [vmem:[%s675 + $0x8] sm:$0x1]
      %v683 = vsel %vm210, %v371, %v682
      %684 = vst [vmem:[%s675 + $0x8] sm:$0x1] %v683
      %v685 = vld [vmem:[%s675 + $0xc] sm:$0xf]
      %v686 = vsel %vm677, %v378, %v685
      %687 = vst [vmem:[%s675 + $0xc] sm:$0xf] %v686
      %688 = vst.msk [vmem:[%s675 + $0x10] sm:$0xf] %vm199, %v387
      %v689 = vld [vmem:[%s675 + $0x14] sm:$0x1]
      %v690 = vsel %vm210, %v388, %v689
      %691 = vst [vmem:[%s675 + $0x14] sm:$0x1] %v690
      %v692 = vld [vmem:[%s675 + $0x18] sm:$0xf]
      %v693 = vsel %vm677, %v395, %v692
      %694 = vst [vmem:[%s675 + $0x18] sm:$0xf] %v693
      %695 = vst.msk [vmem:[%s675 + $0x1c] sm:$0xf] %vm199, %v404
      %v696 = vld [vmem:[%s675 + $0x20] sm:$0x1]
      %v697 = vsel %vm210, %v405, %v696
      %698 = vst [vmem:[%s675 + $0x20] sm:$0x1] %v697
      %v699 = vld [vmem:[%s675 + $0x24] sm:$0xf]
      %v700 = vsel %vm677, %v412, %v699
      %701 = vst [vmem:[%s675 + $0x24] sm:$0xf] %v700
      %702 = vst.msk [vmem:[%s675 + $0x28] sm:$0xf] %vm199, %v421
      %v703 = vld [vmem:[%s675 + $0x2c] sm:$0x1]
      %v704 = vsel %vm210, %v422, %v703
      %705 = vst [vmem:[%s675 + $0x2c] sm:$0x1] %v704
      %v706 = vld [vmem:[%s675 + $0x30] sm:$0xf]
      %v707 = vsel %vm677, %v429, %v706
      %708 = vst [vmem:[%s675 + $0x30] sm:$0xf] %v707
      %709 = vst.msk [vmem:[%s675 + $0x34] sm:$0xf] %vm199, %v438
      %v710 = vld [vmem:[%s675 + $0x38] sm:$0x1]
      %v711 = vsel %vm210, %v439, %v710
      %712 = vst [vmem:[%s675 + $0x38] sm:$0x1] %v711
      %v713 = vld [vmem:[%s675 + $0x3c] sm:$0xf]
      %v714 = vsel %vm677, %v446, %v713
      %715 = vst [vmem:[%s675 + $0x3c] sm:$0xf] %v714
      %716 = vst.msk [vmem:[%s675 + $0x40] sm:$0xf] %vm199, %v455
      %v717 = vld [vmem:[%s675 + $0x44] sm:$0x1]
      %v718 = vsel %vm210, %v456, %v717
      %719 = vst [vmem:[%s675 + $0x44] sm:$0x1] %v718
      %v720 = vld [vmem:[%s675 + $0x48] sm:$0xf]
      %v721 = vsel %vm677, %v463, %v720
      %722 = vst [vmem:[%s675 + $0x48] sm:$0xf] %v721
      %723 = vst.msk [vmem:[%s675 + $0x4c] sm:$0xf] %vm199, %v472
      %v724 = vld [vmem:[%s675 + $0x50] sm:$0x1]
      %v725 = vsel %vm210, %v473, %v724
      %726 = vst [vmem:[%s675 + $0x50] sm:$0x1] %v725
      %v727 = vld [vmem:[%s675 + $0x54] sm:$0xf]
      %v728 = vsel %vm677, %v480, %v727
      %729 = vst [vmem:[%s675 + $0x54] sm:$0xf] %v728
      %730 = vst.msk [vmem:[%s675 + $0x58] sm:$0xf] %vm199, %v489
      %v731 = vld [vmem:[%s675 + $0x5c] sm:$0x1]
      %v732 = vsel %vm210, %v490, %v731
      %733 = vst [vmem:[%s675 + $0x5c] sm:$0x1] %v732
      %v734 = vld [vmem:[%s675 + $0x60] sm:$0xf]
      %v735 = vsel %vm677, %v497, %v734
      %736 = vst [vmem:[%s675 + $0x60] sm:$0xf] %v735
      %737 = vst.msk [vmem:[%s675 + $0x64] sm:$0xf] %vm199, %v506
      %v738 = vld [vmem:[%s675 + $0x68] sm:$0x1]
      %v739 = vsel %vm210, %v507, %v738
      %740 = vst [vmem:[%s675 + $0x68] sm:$0x1] %v739
      %v741 = vld [vmem:[%s675 + $0x6c] sm:$0xf]
      %v742 = vsel %vm677, %v514, %v741
      %743 = vst [vmem:[%s675 + $0x6c] sm:$0xf] %v742
      %744 = vst.msk [vmem:[%s675 + $0x70] sm:$0xf] %vm199, %v523
      %v745 = vld [vmem:[%s675 + $0x74] sm:$0x1]
      %v746 = vsel %vm210, %v524, %v745
      %747 = vst [vmem:[%s675 + $0x74] sm:$0x1] %v746
      %v748 = vld [vmem:[%s675 + $0x78] sm:$0xf]
      %v749 = vsel %vm677, %v531, %v748
      %750 = vst [vmem:[%s675 + $0x78] sm:$0xf] %v749
      %751 = vst.msk [vmem:[%s675 + $0x7c] sm:$0xf] %vm199, %v540
      %v752 = vld [vmem:[%s675 + $0x80] sm:$0x1]
      %v753 = vsel %vm210, %v541, %v752
      %754 = vst [vmem:[%s675 + $0x80] sm:$0x1] %v753
      %v755 = vld [vmem:[%s675 + $0x84] sm:$0xf]
      %v756 = vsel %vm677, %v548, %v755
      %757 = vst [vmem:[%s675 + $0x84] sm:$0xf] %v756
      %758 = vst.msk [vmem:[%s675 + $0x88] sm:$0xf] %vm199, %v557
      %v759 = vld [vmem:[%s675 + $0x8c] sm:$0x1]
      %v760 = vsel %vm210, %v558, %v759
      %761 = vst [vmem:[%s675 + $0x8c] sm:$0x1] %v760
      %v762 = vld [vmem:[%s675 + $0x90] sm:$0xf]
      %v763 = vsel %vm677, %v565, %v762
      %764 = vst [vmem:[%s675 + $0x90] sm:$0xf] %v763
      %765 = vst.msk [vmem:[%s675 + $0x94] sm:$0xf] %vm199, %v574
      %v766 = vld [vmem:[%s675 + $0x98] sm:$0x1]
      %v767 = vsel %vm210, %v575, %v766
      %768 = vst [vmem:[%s675 + $0x98] sm:$0x1] %v767
      %v769 = vld [vmem:[%s675 + $0x9c] sm:$0xf]
      %v770 = vsel %vm677, %v582, %v769
      %771 = vst [vmem:[%s675 + $0x9c] sm:$0xf] %v770
      %772 = vst.msk [vmem:[%s675 + $0xa0] sm:$0xf] %vm199, %v591
      %v773 = vld [vmem:[%s675 + $0xa4] sm:$0x1]
      %v774 = vsel %vm210, %v592, %v773
      %775 = vst [vmem:[%s675 + $0xa4] sm:$0x1] %v774
      %v776 = vld [vmem:[%s675 + $0xa8] sm:$0xf]
      %v777 = vsel %vm677, %v599, %v776
      %778 = vst [vmem:[%s675 + $0xa8] sm:$0xf] %v777
      %779 = vst.msk [vmem:[%s675 + $0xac] sm:$0xf] %vm199, %v608
      %v780 = vld [vmem:[%s675 + $0xb0] sm:$0x1]
      %v781 = vsel %vm210, %v609, %v780
      %782 = vst [vmem:[%s675 + $0xb0] sm:$0x1] %v781
      %v783 = vld [vmem:[%s675 + $0xb4] sm:$0xf]
      %v784 = vsel %vm677, %v616, %v783
      %785 = vst [vmem:[%s675 + $0xb4] sm:$0xf] %v784
      %786 = vst.msk [vmem:[%s675 + $0xb8] sm:$0xf] %vm199, %v625
      %v787 = vld [vmem:[%s675 + $0xbc] sm:$0x1]
      %v788 = vsel %vm210, %v626, %v787
      %789 = vst [vmem:[%s675 + $0xbc] sm:$0x1] %v788
      %v790 = vld [vmem:[#allocation2] sm:$0xf]
      %v791 = vld [vmem:[#allocation2 + $0x4] sm:$0xf]
      %v792 = vld [vmem:[#allocation2 + $0xc] sm:$0xf]
      %v793 = vld [vmem:[#allocation2 + $0x10] sm:$0xf]
      %v794 = vld [vmem:[#allocation2 + $0x18] sm:$0xf]
      %v795 = vld [vmem:[#allocation2 + $0x1c] sm:$0xf]
      %v796 = vld [vmem:[#allocation2 + $0x24] sm:$0xf]
      %v797 = vld [vmem:[#allocation2 + $0x28] sm:$0xf]
      %v798 = vld [vmem:[#allocation2 + $0x30] sm:$0xf]
      %v799 = vld [vmem:[#allocation2 + $0x34] sm:$0xf]
      %v800 = vld [vmem:[#allocation2 + $0x3c] sm:$0xf]
      %v801 = vld [vmem:[#allocation2 + $0x40] sm:$0xf]
      %v802 = vld [vmem:[#allocation2 + $0x48] sm:$0xf]
      %v803 = vld [vmem:[#allocation2 + $0x4c] sm:$0xf]
      %v804 = vld [vmem:[#allocation2 + $0x54] sm:$0xf]
      %v805 = vld [vmem:[#allocation2 + $0x58] sm:$0xf]
      %v806 = vld [vmem:[#allocation2 + $0x60] sm:$0xf]
      %v807 = vld [vmem:[#allocation2 + $0x64] sm:$0xf]
      %v808 = vld [vmem:[#allocation2 + $0x6c] sm:$0xf]
      %v809 = vld [vmem:[#allocation2 + $0x70] sm:$0xf]
      %v810 = vld [vmem:[#allocation2 + $0x78] sm:$0xf]
      %v811 = vld [vmem:[#allocation2 + $0x7c] sm:$0xf]
      %v812 = vld [vmem:[#allocation2 + $0x84] sm:$0xf]
      %v813 = vld [vmem:[#allocation2 + $0x88] sm:$0xf]
      %v814 = vld [vmem:[#allocation2 + $0x90] sm:$0xf]
      %v815 = vld [vmem:[#allocation2 + $0x94] sm:$0xf]
      %v816 = vld [vmem:[#allocation2 + $0x9c] sm:$0xf]
      %v817 = vld [vmem:[#allocation2 + $0xa0] sm:$0xf]
      %v818 = vld [vmem:[#allocation2 + $0xa8] sm:$0xf]
      %v819 = vld [vmem:[#allocation2 + $0xac] sm:$0xf]
      %v820 = vld [vmem:[#allocation2 + $0xb4] sm:$0xf]
      %v821 = vld [vmem:[#allocation2 + $0xb8] sm:$0xf]
      %v854 = vunpack.c.l.b16 %v790
      %v855 = vunpack.c.l.b16 %v791
      %v856 = vunpack.c.l.b16 %v792
      %v857 = vunpack.c.l.b16 %v793
      %v858 = vunpack.c.l.b16 %v794
      %v859 = vunpack.c.l.b16 %v795
      %v860 = vunpack.c.l.b16 %v796
      %v861 = vunpack.c.l.b16 %v797
      %v862 = vunpack.c.l.b16 %v798
      %v863 = vunpack.c.l.b16 %v799
      %v864 = vunpack.c.l.b16 %v800
      %v865 = vunpack.c.l.b16 %v801
      %v866 = vunpack.c.l.b16 %v802
      %v867 = vunpack.c.l.b16 %v803
      %v868 = vunpack.c.l.b16 %v804
      %v869 = vunpack.c.l.b16 %v805
      %v870 = vunpack.c.l.b16 %v806
      %v871 = vunpack.c.l.b16 %v807
      %v872 = vunpack.c.l.b16 %v808
      %v873 = vunpack.c.l.b16 %v809
      %v874 = vunpack.c.l.b16 %v810
      %v875 = vunpack.c.l.b16 %v811
      %v876 = vunpack.c.l.b16 %v812
      %v877 = vunpack.c.l.b16 %v813
      %v878 = vunpack.c.l.b16 %v814
      %v879 = vunpack.c.l.b16 %v815
      %v880 = vunpack.c.l.b16 %v816
      %v881 = vunpack.c.l.b16 %v817
      %v882 = vunpack.c.l.b16 %v818
      %v883 = vunpack.c.l.b16 %v819
      %v884 = vunpack.c.l.b16 %v820
      %v885 = vunpack.c.l.b16 %v821
      %v886 = vpack.c.b16 %v855, %v854
      %v887 = vpack.c.b16 %v857, %v856
      %v888 = vpack.c.b16 %v859, %v858
      %v889 = vpack.c.b16 %v861, %v860
      %v890 = vpack.c.b16 %v863, %v862
      %v891 = vpack.c.b16 %v865, %v864
      %v892 = vpack.c.b16 %v867, %v866
      %v893 = vpack.c.b16 %v869, %v868
      %v894 = vpack.c.b16 %v871, %v870
      %v895 = vpack.c.b16 %v873, %v872
      %v896 = vpack.c.b16 %v875, %v874
      %v897 = vpack.c.b16 %v877, %v876
      %v898 = vpack.c.b16 %v879, %v878
      %v899 = vpack.c.b16 %v881, %v880
      %v900 = vpack.c.b16 %v883, %v882
      %v901 = vpack.c.b16 %v885, %v884
      %vm918 = vcmask 31744
      %919 = vst.msk [vmem:[#allocation3] sm:$0xff] %vm918, %v886
      %920 = vst.msk [vmem:[#allocation3 + $0x8] sm:$0xff] %vm918, %v887
      %921 = vst.msk [vmem:[#allocation3 + $0x10] sm:$0xff] %vm918, %v888
      %922 = vst.msk [vmem:[#allocation3 + $0x18] sm:$0xff] %vm918, %v889
      %923 = vst.msk [vmem:[#allocation3 + $0x20] sm:$0xff] %vm918, %v890
      %924 = vst.msk [vmem:[#allocation3 + $0x28] sm:$0xff] %vm918, %v891
      %925 = vst.msk [vmem:[#allocation3 + $0x30] sm:$0xff] %vm918, %v892
      %926 = vst.msk [vmem:[#allocation3 + $0x38] sm:$0xff] %vm918, %v893
      %927 = vst.msk [vmem:[#allocation3 + $0x40] sm:$0xff] %vm918, %v894
      %928 = vst.msk [vmem:[#allocation3 + $0x48] sm:$0xff] %vm918, %v895
      %929 = vst.msk [vmem:[#allocation3 + $0x50] sm:$0xff] %vm918, %v896
      %930 = vst.msk [vmem:[#allocation3 + $0x58] sm:$0xff] %vm918, %v897
      %931 = vst.msk [vmem:[#allocation3 + $0x60] sm:$0xff] %vm918, %v898
      %932 = vst.msk [vmem:[#allocation3 + $0x68] sm:$0xff] %vm918, %v899
      %933 = vst.msk [vmem:[#allocation3 + $0x70] sm:$0xff] %vm918, %v900
      %934 = vst.msk [vmem:[#allocation3 + $0x78] sm:$0xff] %vm918, %v901
      %v935 = vld [vmem:[#allocation2] sm:$0xf]
      %v936 = vld [vmem:[#allocation2 + $0x4] sm:$0xf]
      %v937 = vld [vmem:[#allocation2 + $0x8] sm:$0x1]
      %v938 = vld [vmem:[#allocation2 + $0xc] sm:$0xf]
      %v939 = vld [vmem:[#allocation2 + $0x10] sm:$0xf]
      %v940 = vld [vmem:[#allocation2 + $0x14] sm:$0x1]
      %v941 = vld [vmem:[#allocation2 + $0x18] sm:$0xf]
      %v942 = vld [vmem:[#allocation2 + $0x1c] sm:$0xf]
      %v943 = vld [vmem:[#allocation2 + $0x20] sm:$0x1]
      %v944 = vld [vmem:[#allocation2 + $0x24] sm:$0xf]
      %v945 = vld [vmem:[#allocation2 + $0x28] sm:$0xf]
      %v946 = vld [vmem:[#allocation2 + $0x2c] sm:$0x1]
      %v947 = vld [vmem:[#allocation2 + $0x30] sm:$0xf]
      %v948 = vld [vmem:[#allocation2 + $0x34] sm:$0xf]
      %v949 = vld [vmem:[#allocation2 + $0x38] sm:$0x1]
      %v950 = vld [vmem:[#allocation2 + $0x3c] sm:$0xf]
      %v951 = vld [vmem:[#allocation2 + $0x40] sm:$0xf]
      %v952 = vld [vmem:[#allocation2 + $0x44] sm:$0x1]
      %v953 = vld [vmem:[#allocation2 + $0x48] sm:$0xf]
      %v954 = vld [vmem:[#allocation2 + $0x4c] sm:$0xf]
      %v955 = vld [vmem:[#allocation2 + $0x50] sm:$0x1]
      %v956 = vld [vmem:[#allocation2 + $0x54] sm:$0xf]
      %v957 = vld [vmem:[#allocation2 + $0x58] sm:$0xf]
      %v958 = vld [vmem:[#allocation2 + $0x5c] sm:$0x1]
      %v959 = vld [vmem:[#allocation2 + $0x60] sm:$0xf]
      %v960 = vld [vmem:[#allocation2 + $0x64] sm:$0xf]
      %v961 = vld [vmem:[#allocation2 + $0x68] sm:$0x1]
      %v962 = vld [vmem:[#allocation2 + $0x6c] sm:$0xf]
      %v963 = vld [vmem:[#allocation2 + $0x70] sm:$0xf]
      %v964 = vld [vmem:[#allocation2 + $0x74] sm:$0x1]
      %v965 = vld [vmem:[#allocation2 + $0x78] sm:$0xf]
      %v966 = vld [vmem:[#allocation2 + $0x7c] sm:$0xf]
      %v967 = vld [vmem:[#allocation2 + $0x80] sm:$0x1]
      %v968 = vld [vmem:[#allocation2 + $0x84] sm:$0xf]
      %v969 = vld [vmem:[#allocation2 + $0x88] sm:$0xf]
      %v970 = vld [vmem:[#allocation2 + $0x8c] sm:$0x1]
      %v971 = vld [vmem:[#allocation2 + $0x90] sm:$0xf]
      %v972 = vld [vmem:[#allocation2 + $0x94] sm:$0xf]
      %v973 = vld [vmem:[#allocation2 + $0x98] sm:$0x1]
      %v974 = vld [vmem:[#allocation2 + $0x9c] sm:$0xf]
      %v975 = vld [vmem:[#allocation2 + $0xa0] sm:$0xf]
      %v976 = vld [vmem:[#allocation2 + $0xa4] sm:$0x1]
      %v977 = vld [vmem:[#allocation2 + $0xa8] sm:$0xf]
      %v978 = vld [vmem:[#allocation2 + $0xac] sm:$0xf]
      %v979 = vld [vmem:[#allocation2 + $0xb0] sm:$0x1]
      %v980 = vld [vmem:[#allocation2 + $0xb4] sm:$0xf]
      %v981 = vld [vmem:[#allocation2 + $0xb8] sm:$0xf]
      %v982 = vld [vmem:[#allocation2 + $0xbc] sm:$0x1]
      %vm983 = vsmask.f32 3328
      %vm984 = vsmask.f32 7440
      %vm985 = vmor %vm983, %vm984
      %v987 = vshrl.u32 %v935, 16
      %v989 = vrot.slane %v987, 4
      %v990 = vshll.u32 %v935, 16
      %v992 = vrot.slane %v990, 5
      %v993 = vor.u32 %v989, %v992
      %v994 = vrot.slane %v993, 4
      %v996 = vshll.u32 %v936, 16
      %v998 = vrot.slane %v996, 5
      %v999 = vsel %vm985, %v994, %v998
      %v1000 = vshrl.u32 %v936, 16
      %v1002 = vrot.slane %v1000, 4
      %v1003 = vor.u32 %v1002, %v998
      %v1004 = vrot.slane %v1003, 4
      %v1006 = vshll.u32 %v937, 16
      %v1008 = vrot.slane %v1006, 5
      %v1009 = vsel %vm985, %v1004, %v1008
      %v1011 = vshrl.u32 %v938, 16
      %v1013 = vrot.slane %v1011, 4
      %v1014 = vshll.u32 %v938, 16
      %v1016 = vrot.slane %v1014, 5
      %v1017 = vor.u32 %v1013, %v1016
      %v1018 = vrot.slane %v1017, 4
      %v1020 = vshll.u32 %v939, 16
      %v1022 = vrot.slane %v1020, 5
      %v1023 = vsel %vm985, %v1018, %v1022
      %v1024 = vshrl.u32 %v939, 16
      %v1026 = vrot.slane %v1024, 4
      %v1027 = vor.u32 %v1026, %v1022
      %v1028 = vrot.slane %v1027, 4
      %v1030 = vshll.u32 %v940, 16
      %v1032 = vrot.slane %v1030, 5
      %v1033 = vsel %vm985, %v1028, %v1032
      %v1035 = vshrl.u32 %v941, 16
      %v1037 = vrot.slane %v1035, 4
      %v1038 = vshll.u32 %v941, 16
      %v1040 = vrot.slane %v1038, 5
      %v1041 = vor.u32 %v1037, %v1040
      %v1042 = vrot.slane %v1041, 4
      %v1044 = vshll.u32 %v942, 16
      %v1046 = vrot.slane %v1044, 5
      %v1047 = vsel %vm985, %v1042, %v1046
      %v1048 = vshrl.u32 %v942, 16
      %v1050 = vrot.slane %v1048, 4
      %v1051 = vor.u32 %v1050, %v1046
      %v1052 = vrot.slane %v1051, 4
      %v1054 = vshll.u32 %v943, 16
      %v1056 = vrot.slane %v1054, 5
      %v1057 = vsel %vm985, %v1052, %v1056
      %v1059 = vshrl.u32 %v944, 16
      %v1061 = vrot.slane %v1059, 4
      %v1062 = vshll.u32 %v944, 16
      %v1064 = vrot.slane %v1062, 5
      %v1065 = vor.u32 %v1061, %v1064
      %v1066 = vrot.slane %v1065, 4
      %v1068 = vshll.u32 %v945, 16
      %v1070 = vrot.slane %v1068, 5
      %v1071 = vsel %vm985, %v1066, %v1070
      %v1072 = vshrl.u32 %v945, 16
      %v1074 = vrot.slane %v1072, 4
      %v1075 = vor.u32 %v1074, %v1070
      %v1076 = vrot.slane %v1075, 4
      %v1078 = vshll.u32 %v946, 16
      %v1080 = vrot.slane %v1078, 5
      %v1081 = vsel %vm985, %v1076, %v1080
      %v1083 = vshrl.u32 %v947, 16
      %v1085 = vrot.slane %v1083, 4
      %v1086 = vshll.u32 %v947, 16
      %v1088 = vrot.slane %v1086, 5
      %v1089 = vor.u32 %v1085, %v1088
      %v1090 = vrot.slane %v1089, 4
      %v1092 = vshll.u32 %v948, 16
      %v1094 = vrot.slane %v1092, 5
      %v1095 = vsel %vm985, %v1090, %v1094
      %v1096 = vshrl.u32 %v948, 16
      %v1098 = vrot.slane %v1096, 4
      %v1099 = vor.u32 %v1098, %v1094
      %v1100 = vrot.slane %v1099, 4
      %v1102 = vshll.u32 %v949, 16
      %v1104 = vrot.slane %v1102, 5
      %v1105 = vsel %vm985, %v1100, %v1104
      %v1107 = vshrl.u32 %v950, 16
      %v1109 = vrot.slane %v1107, 4
      %v1110 = vshll.u32 %v950, 16
      %v1112 = vrot.slane %v1110, 5
      %v1113 = vor.u32 %v1109, %v1112
      %v1114 = vrot.slane %v1113, 4
      %v1116 = vshll.u32 %v951, 16
      %v1118 = vrot.slane %v1116, 5
      %v1119 = vsel %vm985, %v1114, %v1118
      %v1120 = vshrl.u32 %v951, 16
      %v1122 = vrot.slane %v1120, 4
      %v1123 = vor.u32 %v1122, %v1118
      %v1124 = vrot.slane %v1123, 4
      %v1126 = vshll.u32 %v952, 16
      %v1128 = vrot.slane %v1126, 5
      %v1129 = vsel %vm985, %v1124, %v1128
      %v1131 = vshrl.u32 %v953, 16
      %v1133 = vrot.slane %v1131, 4
      %v1134 = vshll.u32 %v953, 16
      %v1136 = vrot.slane %v1134, 5
      %v1137 = vor.u32 %v1133, %v1136
      %v1138 = vrot.slane %v1137, 4
      %v1140 = vshll.u32 %v954, 16
      %v1142 = vrot.slane %v1140, 5
      %v1143 = vsel %vm985, %v1138, %v1142
      %v1144 = vshrl.u32 %v954, 16
      %v1146 = vrot.slane %v1144, 4
      %v1147 = vor.u32 %v1146, %v1142
      %v1148 = vrot.slane %v1147, 4
      %v1150 = vshll.u32 %v955, 16
      %v1152 = vrot.slane %v1150, 5
      %v1153 = vsel %vm985, %v1148, %v1152
      %v1155 = vshrl.u32 %v956, 16
      %v1157 = vrot.slane %v1155, 4
      %v1158 = vshll.u32 %v956, 16
      %v1160 = vrot.slane %v1158, 5
      %v1161 = vor.u32 %v1157, %v1160
      %v1162 = vrot.slane %v1161, 4
      %v1164 = vshll.u32 %v957, 16
      %v1166 = vrot.slane %v1164, 5
      %v1167 = vsel %vm985, %v1162, %v1166
      %v1168 = vshrl.u32 %v957, 16
      %v1170 = vrot.slane %v1168, 4
      %v1171 = vor.u32 %v1170, %v1166
      %v1172 = vrot.slane %v1171, 4
      %v1174 = vshll.u32 %v958, 16
      %v1176 = vrot.slane %v1174, 5
      %v1177 = vsel %vm985, %v1172, %v1176
      %v1179 = vshrl.u32 %v959, 16
      %v1181 = vrot.slane %v1179, 4
      %v1182 = vshll.u32 %v959, 16
      %v1184 = vrot.slane %v1182, 5
      %v1185 = vor.u32 %v1181, %v1184
      %v1186 = vrot.slane %v1185, 4
      %v1188 = vshll.u32 %v960, 16
      %v1190 = vrot.slane %v1188, 5
      %v1191 = vsel %vm985, %v1186, %v1190
      %v1192 = vshrl.u32 %v960, 16
      %v1194 = vrot.slane %v1192, 4
      %v1195 = vor.u32 %v1194, %v1190
      %v1196 = vrot.slane %v1195, 4
      %v1198 = vshll.u32 %v961, 16
      %v1200 = vrot.slane %v1198, 5
      %v1201 = vsel %vm985, %v1196, %v1200
      %v1203 = vshrl.u32 %v962, 16
      %v1205 = vrot.slane %v1203, 4
      %v1206 = vshll.u32 %v962, 16
      %v1208 = vrot.slane %v1206, 5
      %v1209 = vor.u32 %v1205, %v1208
      %v1210 = vrot.slane %v1209, 4
      %v1212 = vshll.u32 %v963, 16
      %v1214 = vrot.slane %v1212, 5
      %v1215 = vsel %vm985, %v1210, %v1214
      %v1216 = vshrl.u32 %v963, 16
      %v1218 = vrot.slane %v1216, 4
      %v1219 = vor.u32 %v1218, %v1214
      %v1220 = vrot.slane %v1219, 4
      %v1222 = vshll.u32 %v964, 16
      %v1224 = vrot.slane %v1222, 5
      %v1225 = vsel %vm985, %v1220, %v1224
      %v1227 = vshrl.u32 %v965, 16
      %v1229 = vrot.slane %v1227, 4
      %v1230 = vshll.u32 %v965, 16
      %v1232 = vrot.slane %v1230, 5
      %v1233 = vor.u32 %v1229, %v1232
      %v1234 = vrot.slane %v1233, 4
      %v1236 = vshll.u32 %v966, 16
      %v1238 = vrot.slane %v1236, 5
      %v1239 = vsel %vm985, %v1234, %v1238
      %v1240 = vshrl.u32 %v966, 16
      %v1242 = vrot.slane %v1240, 4
      %v1243 = vor.u32 %v1242, %v1238
      %v1244 = vrot.slane %v1243, 4
      %v1246 = vshll.u32 %v967, 16
      %v1248 = vrot.slane %v1246, 5
      %v1249 = vsel %vm985, %v1244, %v1248
      %v1251 = vshrl.u32 %v968, 16
      %v1253 = vrot.slane %v1251, 4
      %v1254 = vshll.u32 %v968, 16
      %v1256 = vrot.slane %v1254, 5
      %v1257 = vor.u32 %v1253, %v1256
      %v1258 = vrot.slane %v1257, 4
      %v1260 = vshll.u32 %v969, 16
      %v1262 = vrot.slane %v1260, 5
      %v1263 = vsel %vm985, %v1258, %v1262
      %v1264 = vshrl.u32 %v969, 16
      %v1266 = vrot.slane %v1264, 4
      %v1267 = vor.u32 %v1266, %v1262
      %v1268 = vrot.slane %v1267, 4
      %v1270 = vshll.u32 %v970, 16
      %v1272 = vrot.slane %v1270, 5
      %v1273 = vsel %vm985, %v1268, %v1272
      %v1275 = vshrl.u32 %v971, 16
      %v1277 = vrot.slane %v1275, 4
      %v1278 = vshll.u32 %v971, 16
      %v1280 = vrot.slane %v1278, 5
      %v1281 = vor.u32 %v1277, %v1280
      %v1282 = vrot.slane %v1281, 4
      %v1284 = vshll.u32 %v972, 16
      %v1286 = vrot.slane %v1284, 5
      %v1287 = vsel %vm985, %v1282, %v1286
      %v1288 = vshrl.u32 %v972, 16
      %v1290 = vrot.slane %v1288, 4
      %v1291 = vor.u32 %v1290, %v1286
      %v1292 = vrot.slane %v1291, 4
      %v1294 = vshll.u32 %v973, 16
      %v1296 = vrot.slane %v1294, 5
      %v1297 = vsel %vm985, %v1292, %v1296
      %v1299 = vshrl.u32 %v974, 16
      %v1301 = vrot.slane %v1299, 4
      %v1302 = vshll.u32 %v974, 16
      %v1304 = vrot.slane %v1302, 5
      %v1305 = vor.u32 %v1301, %v1304
      %v1306 = vrot.slane %v1305, 4
      %v1308 = vshll.u32 %v975, 16
      %v1310 = vrot.slane %v1308, 5
      %v1311 = vsel %vm985, %v1306, %v1310
      %v1312 = vshrl.u32 %v975, 16
      %v1314 = vrot.slane %v1312, 4
      %v1315 = vor.u32 %v1314, %v1310
      %v1316 = vrot.slane %v1315, 4
      %v1318 = vshll.u32 %v976, 16
      %v1320 = vrot.slane %v1318, 5
      %v1321 = vsel %vm985, %v1316, %v1320
      %v1323 = vshrl.u32 %v977, 16
      %v1325 = vrot.slane %v1323, 4
      %v1326 = vshll.u32 %v977, 16
      %v1328 = vrot.slane %v1326, 5
      %v1329 = vor.u32 %v1325, %v1328
      %v1330 = vrot.slane %v1329, 4
      %v1332 = vshll.u32 %v978, 16
      %v1334 = vrot.slane %v1332, 5
      %v1335 = vsel %vm985, %v1330, %v1334
      %v1336 = vshrl.u32 %v978, 16
      %v1338 = vrot.slane %v1336, 4
      %v1339 = vor.u32 %v1338, %v1334
      %v1340 = vrot.slane %v1339, 4
      %v1342 = vshll.u32 %v979, 16
      %v1344 = vrot.slane %v1342, 5
      %v1345 = vsel %vm985, %v1340, %v1344
      %v1347 = vshrl.u32 %v980, 16
      %v1349 = vrot.slane %v1347, 4
      %v1350 = vshll.u32 %v980, 16
      %v1352 = vrot.slane %v1350, 5
      %v1353 = vor.u32 %v1349, %v1352
      %v1354 = vrot.slane %v1353, 4
      %v1356 = vshll.u32 %v981, 16
      %v1358 = vrot.slane %v1356, 5
      %v1359 = vsel %vm985, %v1354, %v1358
      %v1360 = vshrl.u32 %v981, 16
      %v1362 = vrot.slane %v1360, 4
      %v1363 = vor.u32 %v1362, %v1358
      %v1364 = vrot.slane %v1363, 4
      %v1366 = vshll.u32 %v982, 16
      %v1368 = vrot.slane %v1366, 5
      %v1369 = vsel %vm985, %v1364, %v1368
      %v1370 = vunpack.c.l.b16 %v999
      %v1371 = vunpack.c.l.b16 %v1009
      %v1372 = vunpack.c.l.b16 %v1023
      %v1373 = vunpack.c.l.b16 %v1033
      %v1374 = vunpack.c.l.b16 %v1047
      %v1375 = vunpack.c.l.b16 %v1057
      %v1376 = vunpack.c.l.b16 %v1071
      %v1377 = vunpack.c.l.b16 %v1081
      %v1378 = vunpack.c.l.b16 %v1095
      %v1379 = vunpack.c.l.b16 %v1105
      %v1380 = vunpack.c.l.b16 %v1119
      %v1381 = vunpack.c.l.b16 %v1129
      %v1382 = vunpack.c.l.b16 %v1143
      %v1383 = vunpack.c.l.b16 %v1153
      %v1384 = vunpack.c.l.b16 %v1167
      %v1385 = vunpack.c.l.b16 %v1177
      %v1386 = vunpack.c.l.b16 %v1191
      %v1387 = vunpack.c.l.b16 %v1201
      %v1388 = vunpack.c.l.b16 %v1215
      %v1389 = vunpack.c.l.b16 %v1225
      %v1390 = vunpack.c.l.b16 %v1239
      %v1391 = vunpack.c.l.b16 %v1249
      %v1392 = vunpack.c.l.b16 %v1263
      %v1393 = vunpack.c.l.b16 %v1273
      %v1394 = vunpack.c.l.b16 %v1287
      %v1395 = vunpack.c.l.b16 %v1297
      %v1396 = vunpack.c.l.b16 %v1311
      %v1397 = vunpack.c.l.b16 %v1321
      %v1398 = vunpack.c.l.b16 %v1335
      %v1399 = vunpack.c.l.b16 %v1345
      %v1400 = vunpack.c.l.b16 %v1359
      %v1401 = vunpack.c.l.b16 %v1369
      %v1402 = vpack.c.b16 %v1371, %v1370
      %v1403 = vpack.c.b16 %v1373, %v1372
      %v1404 = vpack.c.b16 %v1375, %v1374
      %v1405 = vpack.c.b16 %v1377, %v1376
      %v1406 = vpack.c.b16 %v1379, %v1378
      %v1407 = vpack.c.b16 %v1381, %v1380
      %v1408 = vpack.c.b16 %v1383, %v1382
      %v1409 = vpack.c.b16 %v1385, %v1384
      %v1410 = vpack.c.b16 %v1387, %v1386
      %v1411 = vpack.c.b16 %v1389, %v1388
      %v1412 = vpack.c.b16 %v1391, %v1390
      %v1413 = vpack.c.b16 %v1393, %v1392
      %v1414 = vpack.c.b16 %v1395, %v1394
      %v1415 = vpack.c.b16 %v1397, %v1396
      %v1416 = vpack.c.b16 %v1399, %v1398
      %v1417 = vpack.c.b16 %v1401, %v1400
      %1418 = vrot.lane.b32.xlu0 %v1402, 4
      %v1419 = vpop.permute.xlu0 %1418
      %1420 = vrot.lane.b32.xlu0 %v1403, 4
      %v1421 = vpop.permute.xlu0 %1420
      %1422 = vrot.lane.b32.xlu0 %v1404, 4
      %v1423 = vpop.permute.xlu0 %1422
      %1424 = vrot.lane.b32.xlu0 %v1405, 4
      %v1425 = vpop.permute.xlu0 %1424
      %1426 = vrot.lane.b32.xlu0 %v1406, 4
      %v1427 = vpop.permute.xlu0 %1426
      %1428 = vrot.lane.b32.xlu0 %v1407, 4
      %v1429 = vpop.permute.xlu0 %1428
      %1430 = vrot.lane.b32.xlu0 %v1408, 4
      %v1431 = vpop.permute.xlu0 %1430
      %1432 = vrot.lane.b32.xlu0 %v1409, 4
      %v1433 = vpop.permute.xlu0 %1432
      %1434 = vrot.lane.b32.xlu0 %v1410, 4
      %v1435 = vpop.permute.xlu0 %1434
      %1436 = vrot.lane.b32.xlu0 %v1411, 4
      %v1437 = vpop.permute.xlu0 %1436
      %1438 = vrot.lane.b32.xlu0 %v1412, 4
      %v1439 = vpop.permute.xlu0 %1438
      %1440 = vrot.lane.b32.xlu0 %v1413, 4
      %v1441 = vpop.permute.xlu0 %1440
      %1442 = vrot.lane.b32.xlu0 %v1414, 4
      %v1443 = vpop.permute.xlu0 %1442
      %1444 = vrot.lane.b32.xlu0 %v1415, 4
      %v1445 = vpop.permute.xlu0 %1444
      %1446 = vrot.lane.b32.xlu0 %v1416, 4
      %v1447 = vpop.permute.xlu0 %1446
      %1448 = vrot.lane.b32.xlu0 %v1417, 4
      %v1449 = vpop.permute.xlu0 %1448
      %vm1466 = vcmask 64544
      %1467 = vst.msk [vmem:[#allocation3] sm:$0xff] %vm1466, %v1419
      %1468 = vst.msk [vmem:[#allocation3 + $0x8] sm:$0xff] %vm1466, %v1421
      %1469 = vst.msk [vmem:[#allocation3 + $0x10] sm:$0xff] %vm1466, %v1423
      %1470 = vst.msk [vmem:[#allocation3 + $0x18] sm:$0xff] %vm1466, %v1425
      %1471 = vst.msk [vmem:[#allocation3 + $0x20] sm:$0xff] %vm1466, %v1427
      %1472 = vst.msk [vmem:[#allocation3 + $0x28] sm:$0xff] %vm1466, %v1429
      %1473 = vst.msk [vmem:[#allocation3 + $0x30] sm:$0xff] %vm1466, %v1431
      %1474 = vst.msk [vmem:[#allocation3 + $0x38] sm:$0xff] %vm1466, %v1433
      %1475 = vst.msk [vmem:[#allocation3 + $0x40] sm:$0xff] %vm1466, %v1435
      %1476 = vst.msk [vmem:[#allocation3 + $0x48] sm:$0xff] %vm1466, %v1437
      %1477 = vst.msk [vmem:[#allocation3 + $0x50] sm:$0xff] %vm1466, %v1439
      %1478 = vst.msk [vmem:[#allocation3 + $0x58] sm:$0xff] %vm1466, %v1441
      %1479 = vst.msk [vmem:[#allocation3 + $0x60] sm:$0xff] %vm1466, %v1443
      %1480 = vst.msk [vmem:[#allocation3 + $0x68] sm:$0xff] %vm1466, %v1445
      %1481 = vst.msk [vmem:[#allocation3 + $0x70] sm:$0xff] %vm1466, %v1447
      %1482 = vst.msk [vmem:[#allocation3 + $0x78] sm:$0xff] %vm1466, %v1449
      %v1483 = vld [vmem:[#allocation2] sm:$0xe]
      %v1484 = vld [vmem:[#allocation2 + $0x4] sm:$0xf]
      %v1485 = vld [vmem:[#allocation2 + $0x8] sm:$0x1]
      %v1486 = vld [vmem:[#allocation2 + $0xc] sm:$0xe]
      %v1487 = vld [vmem:[#allocation2 + $0x10] sm:$0xf]
      %v1488 = vld [vmem:[#allocation2 + $0x14] sm:$0x1]
      %v1489 = vld [vmem:[#allocation2 + $0x18] sm:$0xe]
      %v1490 = vld [vmem:[#allocation2 + $0x1c] sm:$0xf]
      %v1491 = vld [vmem:[#allocation2 + $0x20] sm:$0x1]
      %v1492 = vld [vmem:[#allocation2 + $0x24] sm:$0xe]
      %v1493 = vld [vmem:[#allocation2 + $0x28] sm:$0xf]
      %v1494 = vld [vmem:[#allocation2 + $0x2c] sm:$0x1]
      %v1495 = vld [vmem:[#allocation2 + $0x30] sm:$0xe]
      %v1496 = vld [vmem:[#allocation2 + $0x34] sm:$0xf]
      %v1497 = vld [vmem:[#allocation2 + $0x38] sm:$0x1]
      %v1498 = vld [vmem:[#allocation2 + $0x3c] sm:$0xe]
      %v1499 = vld [vmem:[#allocation2 + $0x40] sm:$0xf]
      %v1500 = vld [vmem:[#allocation2 + $0x44] sm:$0x1]
      %v1501 = vld [vmem:[#allocation2 + $0x48] sm:$0xe]
      %v1502 = vld [vmem:[#allocation2 + $0x4c] sm:$0xf]
      %v1503 = vld [vmem:[#allocation2 + $0x50] sm:$0x1]
      %v1504 = vld [vmem:[#allocation2 + $0x54] sm:$0xe]
      %v1505 = vld [vmem:[#allocation2 + $0x58] sm:$0xf]
      %v1506 = vld [vmem:[#allocation2 + $0x5c] sm:$0x1]
      %v1507 = vld [vmem:[#allocation2 + $0x60] sm:$0xe]
      %v1508 = vld [vmem:[#allocation2 + $0x64] sm:$0xf]
      %v1509 = vld [vmem:[#allocation2 + $0x68] sm:$0x1]
      %v1510 = vld [vmem:[#allocation2 + $0x6c] sm:$0xe]
      %v1511 = vld [vmem:[#allocation2 + $0x70] sm:$0xf]
      %v1512 = vld [vmem:[#allocation2 + $0x74] sm:$0x1]
      %v1513 = vld [vmem:[#allocation2 + $0x78] sm:$0xe]
      %v1514 = vld [vmem:[#allocation2 + $0x7c] sm:$0xf]
      %v1515 = vld [vmem:[#allocation2 + $0x80] sm:$0x1]
      %v1516 = vld [vmem:[#allocation2 + $0x84] sm:$0xe]
      %v1517 = vld [vmem:[#allocation2 + $0x88] sm:$0xf]
      %v1518 = vld [vmem:[#allocation2 + $0x8c] sm:$0x1]
      %v1519 = vld [vmem:[#allocation2 + $0x90] sm:$0xe]
      %v1520 = vld [vmem:[#allocation2 + $0x94] sm:$0xf]
      %v1521 = vld [vmem:[#allocation2 + $0x98] sm:$0x1]
      %v1522 = vld [vmem:[#allocation2 + $0x9c] sm:$0xe]
      %v1523 = vld [vmem:[#allocation2 + $0xa0] sm:$0xf]
      %v1524 = vld [vmem:[#allocation2 + $0xa4] sm:$0x1]
      %v1525 = vld [vmem:[#allocation2 + $0xa8] sm:$0xe]
      %v1526 = vld [vmem:[#allocation2 + $0xac] sm:$0xf]
      %v1527 = vld [vmem:[#allocation2 + $0xb0] sm:$0x1]
      %v1528 = vld [vmem:[#allocation2 + $0xb4] sm:$0xe]
      %v1529 = vld [vmem:[#allocation2 + $0xb8] sm:$0xf]
      %v1530 = vld [vmem:[#allocation2 + $0xbc] sm:$0x1]
      %vm1579 = vcmask 1042432
      %vm1580 = vcmask 1046532
      %vm1581 = vmor %vm1579, %vm1580
      %v1582 = vrot.slane %v1483, 5
      %v1583 = vrot.slane %v1582, 4
      %v1584 = vrot.slane %v1484, 5
      %v1585 = vsel %vm1581, %v1583, %v1584
      %v1586 = vrot.slane %v1584, 4
      %v1587 = vrot.slane %v1485, 5
      %v1588 = vsel %vm1581, %v1586, %v1587
      %v1589 = vrot.slane %v1486, 5
      %v1590 = vrot.slane %v1589, 4
      %v1591 = vrot.slane %v1487, 5
      %v1592 = vsel %vm1581, %v1590, %v1591
      %v1593 = vrot.slane %v1591, 4
      %v1594 = vrot.slane %v1488, 5
      %v1595 = vsel %vm1581, %v1593, %v1594
      %v1596 = vrot.slane %v1489, 5
      %v1597 = vrot.slane %v1596, 4
      %v1598 = vrot.slane %v1490, 5
      %v1599 = vsel %vm1581, %v1597, %v1598
      %v1600 = vrot.slane %v1598, 4
      %v1601 = vrot.slane %v1491, 5
      %v1602 = vsel %vm1581, %v1600, %v1601
      %v1603 = vrot.slane %v1492, 5
      %v1604 = vrot.slane %v1603, 4
      %v1605 = vrot.slane %v1493, 5
      %v1606 = vsel %vm1581, %v1604, %v1605
      %v1607 = vrot.slane %v1605, 4
      %v1608 = vrot.slane %v1494, 5
      %v1609 = vsel %vm1581, %v1607, %v1608
      %v1610 = vrot.slane %v1495, 5
      %v1611 = vrot.slane %v1610, 4
      %v1612 = vrot.slane %v1496, 5
      %v1613 = vsel %vm1581, %v1611, %v1612
      %v1614 = vrot.slane %v1612, 4
      %v1615 = vrot.slane %v1497, 5
      %v1616 = vsel %vm1581, %v1614, %v1615
      %v1617 = vrot.slane %v1498, 5
      %v1618 = vrot.slane %v1617, 4
      %v1619 = vrot.slane %v1499, 5
      %v1620 = vsel %vm1581, %v1618, %v1619
      %v1621 = vrot.slane %v1619, 4
      %v1622 = vrot.slane %v1500, 5
      %v1623 = vsel %vm1581, %v1621, %v1622
      %v1624 = vrot.slane %v1501, 5
      %v1625 = vrot.slane %v1624, 4
      %v1626 = vrot.slane %v1502, 5
      %v1627 = vsel %vm1581, %v1625, %v1626
      %v1628 = vrot.slane %v1626, 4
      %v1629 = vrot.slane %v1503, 5
      %v1630 = vsel %vm1581, %v1628, %v1629
      %v1631 = vrot.slane %v1504, 5
      %v1632 = vrot.slane %v1631, 4
      %v1633 = vrot.slane %v1505, 5
      %v1634 = vsel %vm1581, %v1632, %v1633
      %v1635 = vrot.slane %v1633, 4
      %v1636 = vrot.slane %v1506, 5
      %v1637 = vsel %vm1581, %v1635, %v1636
      %v1638 = vrot.slane %v1507, 5
      %v1639 = vrot.slane %v1638, 4
      %v1640 = vrot.slane %v1508, 5
      %v1641 = vsel %vm1581, %v1639, %v1640
      %v1642 = vrot.slane %v1640, 4
      %v1643 = vrot.slane %v1509, 5
      %v1644 = vsel %vm1581, %v1642, %v1643
      %v1645 = vrot.slane %v1510, 5
      %v1646 = vrot.slane %v1645, 4
      %v1647 = vrot.slane %v1511, 5
      %v1648 = vsel %vm1581, %v1646, %v1647
      %v1649 = vrot.slane %v1647, 4
      %v1650 = vrot.slane %v1512, 5
      %v1651 = vsel %vm1581, %v1649, %v1650
      %v1652 = vrot.slane %v1513, 5
      %v1653 = vrot.slane %v1652, 4
      %v1654 = vrot.slane %v1514, 5
      %v1655 = vsel %vm1581, %v1653, %v1654
      %v1656 = vrot.slane %v1654, 4
      %v1657 = vrot.slane %v1515, 5
      %v1658 = vsel %vm1581, %v1656, %v1657
      %v1659 = vrot.slane %v1516, 5
      %v1660 = vrot.slane %v1659, 4
      %v1661 = vrot.slane %v1517, 5
      %v1662 = vsel %vm1581, %v1660, %v1661
      %v1663 = vrot.slane %v1661, 4
      %v1664 = vrot.slane %v1518, 5
      %v1665 = vsel %vm1581, %v1663, %v1664
      %v1666 = vrot.slane %v1519, 5
      %v1667 = vrot.slane %v1666, 4
      %v1668 = vrot.slane %v1520, 5
      %v1669 = vsel %vm1581, %v1667, %v1668
      %v1670 = vrot.slane %v1668, 4
      %v1671 = vrot.slane %v1521, 5
      %v1672 = vsel %vm1581, %v1670, %v1671
      %v1673 = vrot.slane %v1522, 5
      %v1674 = vrot.slane %v1673, 4
      %v1675 = vrot.slane %v1523, 5
      %v1676 = vsel %vm1581, %v1674, %v1675
      %v1677 = vrot.slane %v1675, 4
      %v1678 = vrot.slane %v1524, 5
      %v1679 = vsel %vm1581, %v1677, %v1678
      %v1680 = vrot.slane %v1525, 5
      %v1681 = vrot.slane %v1680, 4
      %v1682 = vrot.slane %v1526, 5
      %v1683 = vsel %vm1581, %v1681, %v1682
      %v1684 = vrot.slane %v1682, 4
      %v1685 = vrot.slane %v1527, 5
      %v1686 = vsel %vm1581, %v1684, %v1685
      %v1687 = vrot.slane %v1528, 5
      %v1688 = vrot.slane %v1687, 4
      %v1689 = vrot.slane %v1529, 5
      %v1690 = vsel %vm1581, %v1688, %v1689
      %v1691 = vrot.slane %v1689, 4
      %v1692 = vrot.slane %v1530, 5
      %v1693 = vsel %vm1581, %v1691, %v1692
      %v1694 = vunpack.c.l.b16 %v1585
      %v1695 = vunpack.c.l.b16 %v1588
      %v1696 = vunpack.c.l.b16 %v1592
      %v1697 = vunpack.c.l.b16 %v1595
      %v1698 = vunpack.c.l.b16 %v1599
      %v1699 = vunpack.c.l.b16 %v1602
      %v1700 = vunpack.c.l.b16 %v1606
      %v1701 = vunpack.c.l.b16 %v1609
      %v1702 = vunpack.c.l.b16 %v1613
      %v1703 = vunpack.c.l.b16 %v1616
      %v1704 = vunpack.c.l.b16 %v1620
      %v1705 = vunpack.c.l.b16 %v1623
      %v1706 = vunpack.c.l.b16 %v1627
      %v1707 = vunpack.c.l.b16 %v1630
      %v1708 = vunpack.c.l.b16 %v1634
      %v1709 = vunpack.c.l.b16 %v1637
      %v1710 = vunpack.c.l.b16 %v1641
      %v1711 = vunpack.c.l.b16 %v1644
      %v1712 = vunpack.c.l.b16 %v1648
      %v1713 = vunpack.c.l.b16 %v1651
      %v1714 = vunpack.c.l.b16 %v1655
      %v1715 = vunpack.c.l.b16 %v1658
      %v1716 = vunpack.c.l.b16 %v1662
      %v1717 = vunpack.c.l.b16 %v1665
      %v1718 = vunpack.c.l.b16 %v1669
      %v1719 = vunpack.c.l.b16 %v1672
      %v1720 = vunpack.c.l.b16 %v1676
      %v1721 = vunpack.c.l.b16 %v1679
      %v1722 = vunpack.c.l.b16 %v1683
      %v1723 = vunpack.c.l.b16 %v1686
      %v1724 = vunpack.c.l.b16 %v1690
      %v1725 = vunpack.c.l.b16 %v1693
      %v1726 = vpack.c.b16 %v1695, %v1694
      %v1727 = vpack.c.b16 %v1697, %v1696
      %v1728 = vpack.c.b16 %v1699, %v1698
      %v1729 = vpack.c.b16 %v1701, %v1700
      %v1730 = vpack.c.b16 %v1703, %v1702
      %v1731 = vpack.c.b16 %v1705, %v1704
      %v1732 = vpack.c.b16 %v1707, %v1706
      %v1733 = vpack.c.b16 %v1709, %v1708
      %v1734 = vpack.c.b16 %v1711, %v1710
      %v1735 = vpack.c.b16 %v1713, %v1712
      %v1736 = vpack.c.b16 %v1715, %v1714
      %v1737 = vpack.c.b16 %v1717, %v1716
      %v1738 = vpack.c.b16 %v1719, %v1718
      %v1739 = vpack.c.b16 %v1721, %v1720
      %v1740 = vpack.c.b16 %v1723, %v1722
      %v1741 = vpack.c.b16 %v1725, %v1724
      %1742 = vrot.lane.b32.xlu0 %v1726, 8
      %v1743 = vpop.permute.xlu0 %1742
      %1744 = vrot.lane.b32.xlu0 %v1727, 8
      %v1745 = vpop.permute.xlu0 %1744
      %1746 = vrot.lane.b32.xlu0 %v1728, 8
      %v1747 = vpop.permute.xlu0 %1746
      %1748 = vrot.lane.b32.xlu0 %v1729, 8
      %v1749 = vpop.permute.xlu0 %1748
      %1750 = vrot.lane.b32.xlu0 %v1730, 8
      %v1751 = vpop.permute.xlu0 %1750
      %1752 = vrot.lane.b32.xlu0 %v1731, 8
      %v1753 = vpop.permute.xlu0 %1752
      %1754 = vrot.lane.b32.xlu0 %v1732, 8
      %v1755 = vpop.permute.xlu0 %1754
      %1756 = vrot.lane.b32.xlu0 %v1733, 8
      %v1757 = vpop.permute.xlu0 %1756
      %1758 = vrot.lane.b32.xlu0 %v1734, 8
      %v1759 = vpop.permute.xlu0 %1758
      %1760 = vrot.lane.b32.xlu0 %v1735, 8
      %v1761 = vpop.permute.xlu0 %1760
      %1762 = vrot.lane.b32.xlu0 %v1736, 8
      %v1763 = vpop.permute.xlu0 %1762
      %1764 = vrot.lane.b32.xlu0 %v1737, 8
      %v1765 = vpop.permute.xlu0 %1764
      %1766 = vrot.lane.b32.xlu0 %v1738, 8
      %v1767 = vpop.permute.xlu0 %1766
      %1768 = vrot.lane.b32.xlu0 %v1739, 8
      %v1769 = vpop.permute.xlu0 %1768
      %1770 = vrot.lane.b32.xlu0 %v1740, 8
      %v1771 = vpop.permute.xlu0 %1770
      %1772 = vrot.lane.b32.xlu0 %v1741, 8
      %v1773 = vpop.permute.xlu0 %1772
      %vm1790 = vcmask 97344
      %1791 = vst.msk [vmem:[#allocation3] sm:$0xff] %vm1790, %v1743
      %1792 = vst.msk [vmem:[#allocation3 + $0x8] sm:$0xff] %vm1790, %v1745
      %1793 = vst.msk [vmem:[#allocation3 + $0x10] sm:$0xff] %vm1790, %v1747
      %1794 = vst.msk [vmem:[#allocation3 + $0x18] sm:$0xff] %vm1790, %v1749
      %1795 = vst.msk [vmem:[#allocation3 + $0x20] sm:$0xff] %vm1790, %v1751
      %1796 = vst.msk [vmem:[#allocation3 + $0x28] sm:$0xff] %vm1790, %v1753
      %1797 = vst.msk [vmem:[#allocation3 + $0x30] sm:$0xff] %vm1790, %v1755
      %1798 = vst.msk [vmem:[#allocation3 + $0x38] sm:$0xff] %vm1790, %v1757
      %1799 = vst.msk [vmem:[#allocation3 + $0x40] sm:$0xff] %vm1790, %v1759
      %1800 = vst.msk [vmem:[#allocation3 + $0x48] sm:$0xff] %vm1790, %v1761
      %1801 = vst.msk [vmem:[#allocation3 + $0x50] sm:$0xff] %vm1790, %v1763
      %1802 = vst.msk [vmem:[#allocation3 + $0x58] sm:$0xff] %vm1790, %v1765
      %1803 = vst.msk [vmem:[#allocation3 + $0x60] sm:$0xff] %vm1790, %v1767
      %1804 = vst.msk [vmem:[#allocation3 + $0x68] sm:$0xff] %vm1790, %v1769
      %1805 = vst.msk [vmem:[#allocation3 + $0x70] sm:$0xff] %vm1790, %v1771
      %1806 = vst.msk [vmem:[#allocation3 + $0x78] sm:$0xff] %vm1790, %v1773
      %v1807 = vld [vmem:[%s675] sm:$0xf]
      %v1808 = vld [vmem:[%s675 + $0x4] sm:$0xf]
      %v1809 = vld [vmem:[%s675 + $0xc] sm:$0xf]
      %v1810 = vld [vmem:[%s675 + $0x10] sm:$0xf]
      %v1811 = vld [vmem:[%s675 + $0x18] sm:$0xf]
      %v1812 = vld [vmem:[%s675 + $0x1c] sm:$0xf]
      %v1813 = vld [vmem:[%s675 + $0x24] sm:$0xf]
      %v1814 = vld [vmem:[%s675 + $0x28] sm:$0xf]
      %v1815 = vld [vmem:[%s675 + $0x30] sm:$0xf]
      %v1816 = vld [vmem:[%s675 + $0x34] sm:$0xf]
      %v1817 = vld [vmem:[%s675 + $0x3c] sm:$0xf]
      %v1818 = vld [vmem:[%s675 + $0x40] sm:$0xf]
      %v1819 = vld [vmem:[%s675 + $0x48] sm:$0xf]
      %v1820 = vld [vmem:[%s675 + $0x4c] sm:$0xf]
      %v1821 = vld [vmem:[%s675 + $0x54] sm:$0xf]
      %v1822 = vld [vmem:[%s675 + $0x58] sm:$0xf]
      %v1823 = vld [vmem:[%s675 + $0x60] sm:$0xf]
      %v1824 = vld [vmem:[%s675 + $0x64] sm:$0xf]
      %v1825 = vld [vmem:[%s675 + $0x6c] sm:$0xf]
      %v1826 = vld [vmem:[%s675 + $0x70] sm:$0xf]
      %v1827 = vld [vmem:[%s675 + $0x78] sm:$0xf]
      %v1828 = vld [vmem:[%s675 + $0x7c] sm:$0xf]
      %v1829 = vld [vmem:[%s675 + $0x84] sm:$0xf]
      %v1830 = vld [vmem:[%s675 + $0x88] sm:$0xf]
      %v1831 = vld [vmem:[%s675 + $0x90] sm:$0xf]
      %v1832 = vld [vmem:[%s675 + $0x94] sm:$0xf]
      %v1833 = vld [vmem:[%s675 + $0x9c] sm:$0xf]
      %v1834 = vld [vmem:[%s675 + $0xa0] sm:$0xf]
      %v1835 = vld [vmem:[%s675 + $0xa8] sm:$0xf]
      %v1836 = vld [vmem:[%s675 + $0xac] sm:$0xf]
      %v1837 = vld [vmem:[%s675 + $0xb4] sm:$0xf]
      %v1838 = vld [vmem:[%s675 + $0xb8] sm:$0xf]
      %v1871 = vunpack.c.l.b16 %v1807
      %v1872 = vunpack.c.l.b16 %v1808
      %v1873 = vunpack.c.l.b16 %v1809
      %v1874 = vunpack.c.l.b16 %v1810
      %v1875 = vunpack.c.l.b16 %v1811
      %v1876 = vunpack.c.l.b16 %v1812
      %v1877 = vunpack.c.l.b16 %v1813
      %v1878 = vunpack.c.l.b16 %v1814
      %v1879 = vunpack.c.l.b16 %v1815
      %v1880 = vunpack.c.l.b16 %v1816
      %v1881 = vunpack.c.l.b16 %v1817
      %v1882 = vunpack.c.l.b16 %v1818
      %v1883 = vunpack.c.l.b16 %v1819
      %v1884 = vunpack.c.l.b16 %v1820
      %v1885 = vunpack.c.l.b16 %v1821
      %v1886 = vunpack.c.l.b16 %v1822
      %v1887 = vunpack.c.l.b16 %v1823
      %v1888 = vunpack.c.l.b16 %v1824
      %v1889 = vunpack.c.l.b16 %v1825
      %v1890 = vunpack.c.l.b16 %v1826
      %v1891 = vunpack.c.l.b16 %v1827
      %v1892 = vunpack.c.l.b16 %v1828
      %v1893 = vunpack.c.l.b16 %v1829
      %v1894 = vunpack.c.l.b16 %v1830
      %v1895 = vunpack.c.l.b16 %v1831
      %v1896 = vunpack.c.l.b16 %v1832
      %v1897 = vunpack.c.l.b16 %v1833
      %v1898 = vunpack.c.l.b16 %v1834
      %v1899 = vunpack.c.l.b16 %v1835
      %v1900 = vunpack.c.l.b16 %v1836
      %v1901 = vunpack.c.l.b16 %v1837
      %v1902 = vunpack.c.l.b16 %v1838
      %v1903 = vpack.c.b16 %v1872, %v1871
      %v1904 = vpack.c.b16 %v1874, %v1873
      %v1905 = vpack.c.b16 %v1876, %v1875
      %v1906 = vpack.c.b16 %v1878, %v1877
      %v1907 = vpack.c.b16 %v1880, %v1879
      %v1908 = vpack.c.b16 %v1882, %v1881
      %v1909 = vpack.c.b16 %v1884, %v1883
      %v1910 = vpack.c.b16 %v1886, %v1885
      %v1911 = vpack.c.b16 %v1888, %v1887
      %v1912 = vpack.c.b16 %v1890, %v1889
      %v1913 = vpack.c.b16 %v1892, %v1891
      %v1914 = vpack.c.b16 %v1894, %v1893
      %v1915 = vpack.c.b16 %v1896, %v1895
      %v1916 = vpack.c.b16 %v1898, %v1897
      %v1917 = vpack.c.b16 %v1900, %v1899
      %v1918 = vpack.c.b16 %v1902, %v1901
      %1919 = vrot.lane.b32.xlu0 %v1903, 12
      %v1920 = vpop.permute.xlu0 %1919
      %1921 = vrot.lane.b32.xlu0 %v1904, 12
      %v1922 = vpop.permute.xlu0 %1921
      %1923 = vrot.lane.b32.xlu0 %v1905, 12
      %v1924 = vpop.permute.xlu0 %1923
      %1925 = vrot.lane.b32.xlu0 %v1906, 12
      %v1926 = vpop.permute.xlu0 %1925
      %1927 = vrot.lane.b32.xlu0 %v1907, 12
      %v1928 = vpop.permute.xlu0 %1927
      %1929 = vrot.lane.b32.xlu0 %v1908, 12
      %v1930 = vpop.permute.xlu0 %1929
      %1931 = vrot.lane.b32.xlu0 %v1909, 12
      %v1932 = vpop.permute.xlu0 %1931
      %1933 = vrot.lane.b32.xlu0 %v1910, 12
      %v1934 = vpop.permute.xlu0 %1933
      %1935 = vrot.lane.b32.xlu0 %v1911, 12
      %v1936 = vpop.permute.xlu0 %1935
      %1937 = vrot.lane.b32.xlu0 %v1912, 12
      %v1938 = vpop.permute.xlu0 %1937
      %1939 = vrot.lane.b32.xlu0 %v1913, 12
      %v1940 = vpop.permute.xlu0 %1939
      %1941 = vrot.lane.b32.xlu0 %v1914, 12
      %v1942 = vpop.permute.xlu0 %1941
      %1943 = vrot.lane.b32.xlu0 %v1915, 12
      %v1944 = vpop.permute.xlu0 %1943
      %1945 = vrot.lane.b32.xlu0 %v1916, 12
      %v1946 = vpop.permute.xlu0 %1945
      %1947 = vrot.lane.b32.xlu0 %v1917, 12
      %v1948 = vpop.permute.xlu0 %1947
      %1949 = vrot.lane.b32.xlu0 %v1918, 12
      %v1950 = vpop.permute.xlu0 %1949
      %vm1967 = vcmask 130144
      %1968 = vst.msk [vmem:[#allocation3] sm:$0xff] %vm1967, %v1920
      %1969 = vst.msk [vmem:[#allocation3 + $0x8] sm:$0xff] %vm1967, %v1922
      %1970 = vst.msk [vmem:[#allocation3 + $0x10] sm:$0xff] %vm1967, %v1924
      %1971 = vst.msk [vmem:[#allocation3 + $0x18] sm:$0xff] %vm1967, %v1926
      %1972 = vst.msk [vmem:[#allocation3 + $0x20] sm:$0xff] %vm1967, %v1928
      %1973 = vst.msk [vmem:[#allocation3 + $0x28] sm:$0xff] %vm1967, %v1930
      %1974 = vst.msk [vmem:[#allocation3 + $0x30] sm:$0xff] %vm1967, %v1932
      %1975 = vst.msk [vmem:[#allocation3 + $0x38] sm:$0xff] %vm1967, %v1934
      %1976 = vst.msk [vmem:[#allocation3 + $0x40] sm:$0xff] %vm1967, %v1936
      %1977 = vst.msk [vmem:[#allocation3 + $0x48] sm:$0xff] %vm1967, %v1938
      %1978 = vst.msk [vmem:[#allocation3 + $0x50] sm:$0xff] %vm1967, %v1940
      %1979 = vst.msk [vmem:[#allocation3 + $0x58] sm:$0xff] %vm1967, %v1942
      %1980 = vst.msk [vmem:[#allocation3 + $0x60] sm:$0xff] %vm1967, %v1944
      %1981 = vst.msk [vmem:[#allocation3 + $0x68] sm:$0xff] %vm1967, %v1946
      %1982 = vst.msk [vmem:[#allocation3 + $0x70] sm:$0xff] %vm1967, %v1948
      %1983 = vst.msk [vmem:[#allocation3 + $0x78] sm:$0xff] %vm1967, %v1950
      %v1984 = vld [vmem:[%s675] sm:$0xf]
      %v1985 = vld [vmem:[%s675 + $0x4] sm:$0xf]
      %v1986 = vld [vmem:[%s675 + $0x8] sm:$0x1]
      %v1987 = vld [vmem:[%s675 + $0xc] sm:$0xf]
      %v1988 = vld [vmem:[%s675 + $0x10] sm:$0xf]
      %v1989 = vld [vmem:[%s675 + $0x14] sm:$0x1]
      %v1990 = vld [vmem:[%s675 + $0x18] sm:$0xf]
      %v1991 = vld [vmem:[%s675 + $0x1c] sm:$0xf]
      %v1992 = vld [vmem:[%s675 + $0x20] sm:$0x1]
      %v1993 = vld [vmem:[%s675 + $0x24] sm:$0xf]
      %v1994 = vld [vmem:[%s675 + $0x28] sm:$0xf]
      %v1995 = vld [vmem:[%s675 + $0x2c] sm:$0x1]
      %v1996 = vld [vmem:[%s675 + $0x30] sm:$0xf]
      %v1997 = vld [vmem:[%s675 + $0x34] sm:$0xf]
      %v1998 = vld [vmem:[%s675 + $0x38] sm:$0x1]
      %v1999 = vld [vmem:[%s675 + $0x3c] sm:$0xf]
      %v2000 = vld [vmem:[%s675 + $0x40] sm:$0xf]
      %v2001 = vld [vmem:[%s675 + $0x44] sm:$0x1]
      %v2002 = vld [vmem:[%s675 + $0x48] sm:$0xf]
      %v2003 = vld [vmem:[%s675 + $0x4c] sm:$0xf]
      %v2004 = vld [vmem:[%s675 + $0x50] sm:$0x1]
      %v2005 = vld [vmem:[%s675 + $0x54] sm:$0xf]
      %v2006 = vld [vmem:[%s675 + $0x58] sm:$0xf]
      %v2007 = vld [vmem:[%s675 + $0x5c] sm:$0x1]
      %v2008 = vld [vmem:[%s675 + $0x60] sm:$0xf]
      %v2009 = vld [vmem:[%s675 + $0x64] sm:$0xf]
      %v2010 = vld [vmem:[%s675 + $0x68] sm:$0x1]
      %v2011 = vld [vmem:[%s675 + $0x6c] sm:$0xf]
      %v2012 = vld [vmem:[%s675 + $0x70] sm:$0xf]
      %v2013 = vld [vmem:[%s675 + $0x74] sm:$0x1]
      %v2014 = vld [vmem:[%s675 + $0x78] sm:$0xf]
      %v2015 = vld [vmem:[%s675 + $0x7c] sm:$0xf]
      %v2016 = vld [vmem:[%s675 + $0x80] sm:$0x1]
      %v2017 = vld [vmem:[%s675 + $0x84] sm:$0xf]
      %v2018 = vld [vmem:[%s675 + $0x88] sm:$0xf]
      %v2019 = vld [vmem:[%s675 + $0x8c] sm:$0x1]
      %v2020 = vld [vmem:[%s675 + $0x90] sm:$0xf]
      %v2021 = vld [vmem:[%s675 + $0x94] sm:$0xf]
      %v2022 = vld [vmem:[%s675 + $0x98] sm:$0x1]
      %v2023 = vld [vmem:[%s675 + $0x9c] sm:$0xf]
      %v2024 = vld [vmem:[%s675 + $0xa0] sm:$0xf]
      %v2025 = vld [vmem:[%s675 + $0xa4] sm:$0x1]
      %v2026 = vld [vmem:[%s675 + $0xa8] sm:$0xf]
      %v2027 = vld [vmem:[%s675 + $0xac] sm:$0xf]
      %v2028 = vld [vmem:[%s675 + $0xb0] sm:$0x1]
      %v2029 = vld [vmem:[%s675 + $0xb4] sm:$0xf]
      %v2030 = vld [vmem:[%s675 + $0xb8] sm:$0xf]
      %v2031 = vld [vmem:[%s675 + $0xbc] sm:$0x1]
      %v2033 = vshrl.u32 %v1984, 16
      %v2035 = vrot.slane %v2033, 4
      %v2036 = vshll.u32 %v1984, 16
      %v2038 = vrot.slane %v2036, 5
      %v2039 = vor.u32 %v2035, %v2038
      %v2040 = vrot.slane %v2039, 4
      %v2042 = vshll.u32 %v1985, 16
      %v2044 = vrot.slane %v2042, 5
      %v2045 = vsel %vm985, %v2040, %v2044
      %v2046 = vshrl.u32 %v1985, 16
      %v2048 = vrot.slane %v2046, 4
      %v2049 = vor.u32 %v2048, %v2044
      %v2050 = vrot.slane %v2049, 4
      %v2052 = vshll.u32 %v1986, 16
      %v2054 = vrot.slane %v2052, 5
      %v2055 = vsel %vm985, %v2050, %v2054
      %v2057 = vshrl.u32 %v1987, 16
      %v2059 = vrot.slane %v2057, 4
      %v2060 = vshll.u32 %v1987, 16
      %v2062 = vrot.slane %v2060, 5
      %v2063 = vor.u32 %v2059, %v2062
      %v2064 = vrot.slane %v2063, 4
      %v2066 = vshll.u32 %v1988, 16
      %v2068 = vrot.slane %v2066, 5
      %v2069 = vsel %vm985, %v2064, %v2068
      %v2070 = vshrl.u32 %v1988, 16
      %v2072 = vrot.slane %v2070, 4
      %v2073 = vor.u32 %v2072, %v2068
      %v2074 = vrot.slane %v2073, 4
      %v2076 = vshll.u32 %v1989, 16
      %v2078 = vrot.slane %v2076, 5
      %v2079 = vsel %vm985, %v2074, %v2078
      %v2081 = vshrl.u32 %v1990, 16
      %v2083 = vrot.slane %v2081, 4
      %v2084 = vshll.u32 %v1990, 16
      %v2086 = vrot.slane %v2084, 5
      %v2087 = vor.u32 %v2083, %v2086
      %v2088 = vrot.slane %v2087, 4
      %v2090 = vshll.u32 %v1991, 16
      %v2092 = vrot.slane %v2090, 5
      %v2093 = vsel %vm985, %v2088, %v2092
      %v2094 = vshrl.u32 %v1991, 16
      %v2096 = vrot.slane %v2094, 4
      %v2097 = vor.u32 %v2096, %v2092
      %v2098 = vrot.slane %v2097, 4
      %v2100 = vshll.u32 %v1992, 16
      %v2102 = vrot.slane %v2100, 5
      %v2103 = vsel %vm985, %v2098, %v2102
      %v2105 = vshrl.u32 %v1993, 16
      %v2107 = vrot.slane %v2105, 4
      %v2108 = vshll.u32 %v1993, 16
      %v2110 = vrot.slane %v2108, 5
      %v2111 = vor.u32 %v2107, %v2110
      %v2112 = vrot.slane %v2111, 4
      %v2114 = vshll.u32 %v1994, 16
      %v2116 = vrot.slane %v2114, 5
      %v2117 = vsel %vm985, %v2112, %v2116
      %v2118 = vshrl.u32 %v1994, 16
      %v2120 = vrot.slane %v2118, 4
      %v2121 = vor.u32 %v2120, %v2116
      %v2122 = vrot.slane %v2121, 4
      %v2124 = vshll.u32 %v1995, 16
      %v2126 = vrot.slane %v2124, 5
      %v2127 = vsel %vm985, %v2122, %v2126
      %v2129 = vshrl.u32 %v1996, 16
      %v2131 = vrot.slane %v2129, 4
      %v2132 = vshll.u32 %v1996, 16
      %v2134 = vrot.slane %v2132, 5
      %v2135 = vor.u32 %v2131, %v2134
      %v2136 = vrot.slane %v2135, 4
      %v2138 = vshll.u32 %v1997, 16
      %v2140 = vrot.slane %v2138, 5
      %v2141 = vsel %vm985, %v2136, %v2140
      %v2142 = vshrl.u32 %v1997, 16
      %v2144 = vrot.slane %v2142, 4
      %v2145 = vor.u32 %v2144, %v2140
      %v2146 = vrot.slane %v2145, 4
      %v2148 = vshll.u32 %v1998, 16
      %v2150 = vrot.slane %v2148, 5
      %v2151 = vsel %vm985, %v2146, %v2150
      %v2153 = vshrl.u32 %v1999, 16
      %v2155 = vrot.slane %v2153, 4
      %v2156 = vshll.u32 %v1999, 16
      %v2158 = vrot.slane %v2156, 5
      %v2159 = vor.u32 %v2155, %v2158
      %v2160 = vrot.slane %v2159, 4
      %v2162 = vshll.u32 %v2000, 16
      %v2164 = vrot.slane %v2162, 5
      %v2165 = vsel %vm985, %v2160, %v2164
      %v2166 = vshrl.u32 %v2000, 16
      %v2168 = vrot.slane %v2166, 4
      %v2169 = vor.u32 %v2168, %v2164
      %v2170 = vrot.slane %v2169, 4
      %v2172 = vshll.u32 %v2001, 16
      %v2174 = vrot.slane %v2172, 5
      %v2175 = vsel %vm985, %v2170, %v2174
      %v2177 = vshrl.u32 %v2002, 16
      %v2179 = vrot.slane %v2177, 4
      %v2180 = vshll.u32 %v2002, 16
      %v2182 = vrot.slane %v2180, 5
      %v2183 = vor.u32 %v2179, %v2182
      %v2184 = vrot.slane %v2183, 4
      %v2186 = vshll.u32 %v2003, 16
      %v2188 = vrot.slane %v2186, 5
      %v2189 = vsel %vm985, %v2184, %v2188
      %v2190 = vshrl.u32 %v2003, 16
      %v2192 = vrot.slane %v2190, 4
      %v2193 = vor.u32 %v2192, %v2188
      %v2194 = vrot.slane %v2193, 4
      %v2196 = vshll.u32 %v2004, 16
      %v2198 = vrot.slane %v2196, 5
      %v2199 = vsel %vm985, %v2194, %v2198
      %v2201 = vshrl.u32 %v2005, 16
      %v2203 = vrot.slane %v2201, 4
      %v2204 = vshll.u32 %v2005, 16
      %v2206 = vrot.slane %v2204, 5
      %v2207 = vor.u32 %v2203, %v2206
      %v2208 = vrot.slane %v2207, 4
      %v2210 = vshll.u32 %v2006, 16
      %v2212 = vrot.slane %v2210, 5
      %v2213 = vsel %vm985, %v2208, %v2212
      %v2214 = vshrl.u32 %v2006, 16
      %v2216 = vrot.slane %v2214, 4
      %v2217 = vor.u32 %v2216, %v2212
      %v2218 = vrot.slane %v2217, 4
      %v2220 = vshll.u32 %v2007, 16
      %v2222 = vrot.slane %v2220, 5
      %v2223 = vsel %vm985, %v2218, %v2222
      %v2225 = vshrl.u32 %v2008, 16
      %v2227 = vrot.slane %v2225, 4
      %v2228 = vshll.u32 %v2008, 16
      %v2230 = vrot.slane %v2228, 5
      %v2231 = vor.u32 %v2227, %v2230
      %v2232 = vrot.slane %v2231, 4
      %v2234 = vshll.u32 %v2009, 16
      %v2236 = vrot.slane %v2234, 5
      %v2237 = vsel %vm985, %v2232, %v2236
      %v2238 = vshrl.u32 %v2009, 16
      %v2240 = vrot.slane %v2238, 4
      %v2241 = vor.u32 %v2240, %v2236
      %v2242 = vrot.slane %v2241, 4
      %v2244 = vshll.u32 %v2010, 16
      %v2246 = vrot.slane %v2244, 5
      %v2247 = vsel %vm985, %v2242, %v2246
      %v2249 = vshrl.u32 %v2011, 16
      %v2251 = vrot.slane %v2249, 4
      %v2252 = vshll.u32 %v2011, 16
      %v2254 = vrot.slane %v2252, 5
      %v2255 = vor.u32 %v2251, %v2254
      %v2256 = vrot.slane %v2255, 4
      %v2258 = vshll.u32 %v2012, 16
      %v2260 = vrot.slane %v2258, 5
      %v2261 = vsel %vm985, %v2256, %v2260
      %v2262 = vshrl.u32 %v2012, 16
      %v2264 = vrot.slane %v2262, 4
      %v2265 = vor.u32 %v2264, %v2260
      %v2266 = vrot.slane %v2265, 4
      %v2268 = vshll.u32 %v2013, 16
      %v2270 = vrot.slane %v2268, 5
      %v2271 = vsel %vm985, %v2266, %v2270
      %v2273 = vshrl.u32 %v2014, 16
      %v2275 = vrot.slane %v2273, 4
      %v2276 = vshll.u32 %v2014, 16
      %v2278 = vrot.slane %v2276, 5
      %v2279 = vor.u32 %v2275, %v2278
      %v2280 = vrot.slane %v2279, 4
      %v2282 = vshll.u32 %v2015, 16
      %v2284 = vrot.slane %v2282, 5
      %v2285 = vsel %vm985, %v2280, %v2284
      %v2286 = vshrl.u32 %v2015, 16
      %v2288 = vrot.slane %v2286, 4
      %v2289 = vor.u32 %v2288, %v2284
      %v2290 = vrot.slane %v2289, 4
      %v2292 = vshll.u32 %v2016, 16
      %v2294 = vrot.slane %v2292, 5
      %v2295 = vsel %vm985, %v2290, %v2294
      %v2297 = vshrl.u32 %v2017, 16
      %v2299 = vrot.slane %v2297, 4
      %v2300 = vshll.u32 %v2017, 16
      %v2302 = vrot.slane %v2300, 5
      %v2303 = vor.u32 %v2299, %v2302
      %v2304 = vrot.slane %v2303, 4
      %v2306 = vshll.u32 %v2018, 16
      %v2308 = vrot.slane %v2306, 5
      %v2309 = vsel %vm985, %v2304, %v2308
      %v2310 = vshrl.u32 %v2018, 16
      %v2312 = vrot.slane %v2310, 4
      %v2313 = vor.u32 %v2312, %v2308
      %v2314 = vrot.slane %v2313, 4
      %v2316 = vshll.u32 %v2019, 16
      %v2318 = vrot.slane %v2316, 5
      %v2319 = vsel %vm985, %v2314, %v2318
      %v2321 = vshrl.u32 %v2020, 16
      %v2323 = vrot.slane %v2321, 4
      %v2324 = vshll.u32 %v2020, 16
      %v2326 = vrot.slane %v2324, 5
      %v2327 = vor.u32 %v2323, %v2326
      %v2328 = vrot.slane %v2327, 4
      %v2330 = vshll.u32 %v2021, 16
      %v2332 = vrot.slane %v2330, 5
      %v2333 = vsel %vm985, %v2328, %v2332
      %v2334 = vshrl.u32 %v2021, 16
      %v2336 = vrot.slane %v2334, 4
      %v2337 = vor.u32 %v2336, %v2332
      %v2338 = vrot.slane %v2337, 4
      %v2340 = vshll.u32 %v2022, 16
      %v2342 = vrot.slane %v2340, 5
      %v2343 = vsel %vm985, %v2338, %v2342
      %v2345 = vshrl.u32 %v2023, 16
      %v2347 = vrot.slane %v2345, 4
      %v2348 = vshll.u32 %v2023, 16
      %v2350 = vrot.slane %v2348, 5
      %v2351 = vor.u32 %v2347, %v2350
      %v2352 = vrot.slane %v2351, 4
      %v2354 = vshll.u32 %v2024, 16
      %v2356 = vrot.slane %v2354, 5
      %v2357 = vsel %vm985, %v2352, %v2356
      %v2358 = vshrl.u32 %v2024, 16
      %v2360 = vrot.slane %v2358, 4
      %v2361 = vor.u32 %v2360, %v2356
      %v2362 = vrot.slane %v2361, 4
      %v2364 = vshll.u32 %v2025, 16
      %v2366 = vrot.slane %v2364, 5
      %v2367 = vsel %vm985, %v2362, %v2366
      %v2369 = vshrl.u32 %v2026, 16
      %v2371 = vrot.slane %v2369, 4
      %v2372 = vshll.u32 %v2026, 16
      %v2374 = vrot.slane %v2372, 5
      %v2375 = vor.u32 %v2371, %v2374
      %v2376 = vrot.slane %v2375, 4
      %v2378 = vshll.u32 %v2027, 16
      %v2380 = vrot.slane %v2378, 5
      %v2381 = vsel %vm985, %v2376, %v2380
      %v2382 = vshrl.u32 %v2027, 16
      %v2384 = vrot.slane %v2382, 4
      %v2385 = vor.u32 %v2384, %v2380
      %v2386 = vrot.slane %v2385, 4
      %v2388 = vshll.u32 %v2028, 16
      %v2390 = vrot.slane %v2388, 5
      %v2391 = vsel %vm985, %v2386, %v2390
      %v2393 = vshrl.u32 %v2029, 16
      %v2395 = vrot.slane %v2393, 4
      %v2396 = vshll.u32 %v2029, 16
      %v2398 = vrot.slane %v2396, 5
      %v2399 = vor.u32 %v2395, %v2398
      %v2400 = vrot.slane %v2399, 4
      %v2402 = vshll.u32 %v2030, 16
      %v2404 = vrot.slane %v2402, 5
      %v2405 = vsel %vm985, %v2400, %v2404
      %v2406 = vshrl.u32 %v2030, 16
      %v2408 = vrot.slane %v2406, 4
      %v2409 = vor.u32 %v2408, %v2404
      %v2410 = vrot.slane %v2409, 4
      %v2412 = vshll.u32 %v2031, 16
      %v2414 = vrot.slane %v2412, 5
      %v2415 = vsel %vm985, %v2410, %v2414
      %v2416 = vunpack.c.l.b16 %v2045
      %v2417 = vunpack.c.l.b16 %v2055
      %v2418 = vunpack.c.l.b16 %v2069
      %v2419 = vunpack.c.l.b16 %v2079
      %v2420 = vunpack.c.l.b16 %v2093
      %v2421 = vunpack.c.l.b16 %v2103
      %v2422 = vunpack.c.l.b16 %v2117
      %v2423 = vunpack.c.l.b16 %v2127
      %v2424 = vunpack.c.l.b16 %v2141
      %v2425 = vunpack.c.l.b16 %v2151
      %v2426 = vunpack.c.l.b16 %v2165
      %v2427 = vunpack.c.l.b16 %v2175
      %v2428 = vunpack.c.l.b16 %v2189
      %v2429 = vunpack.c.l.b16 %v2199
      %v2430 = vunpack.c.l.b16 %v2213
      %v2431 = vunpack.c.l.b16 %v2223
      %v2432 = vunpack.c.l.b16 %v2237
      %v2433 = vunpack.c.l.b16 %v2247
      %v2434 = vunpack.c.l.b16 %v2261
      %v2435 = vunpack.c.l.b16 %v2271
      %v2436 = vunpack.c.l.b16 %v2285
      %v2437 = vunpack.c.l.b16 %v2295
      %v2438 = vunpack.c.l.b16 %v2309
      %v2439 = vunpack.c.l.b16 %v2319
      %v2440 = vunpack.c.l.b16 %v2333
      %v2441 = vunpack.c.l.b16 %v2343
      %v2442 = vunpack.c.l.b16 %v2357
      %v2443 = vunpack.c.l.b16 %v2367
      %v2444 = vunpack.c.l.b16 %v2381
      %v2445 = vunpack.c.l.b16 %v2391
      %v2446 = vunpack.c.l.b16 %v2405
      %v2447 = vunpack.c.l.b16 %v2415
      %v2448 = vpack.c.b16 %v2417, %v2416
      %v2449 = vpack.c.b16 %v2419, %v2418
      %v2450 = vpack.c.b16 %v2421, %v2420
      %v2451 = vpack.c.b16 %v2423, %v2422
      %v2452 = vpack.c.b16 %v2425, %v2424
      %v2453 = vpack.c.b16 %v2427, %v2426
      %v2454 = vpack.c.b16 %v2429, %v2428
      %v2455 = vpack.c.b16 %v2431, %v2430
      %v2456 = vpack.c.b16 %v2433, %v2432
      %v2457 = vpack.c.b16 %v2435, %v2434
      %v2458 = vpack.c.b16 %v2437, %v2436
      %v2459 = vpack.c.b16 %v2439, %v2438
      %v2460 = vpack.c.b16 %v2441, %v2440
      %v2461 = vpack.c.b16 %v2443, %v2442
      %v2462 = vpack.c.b16 %v2445, %v2444
      %v2463 = vpack.c.b16 %v2447, %v2446
      %2464 = vrot.lane.b32.xlu0 %v2448, 16
      %v2465 = vpop.permute.xlu0 %2464
      %2466 = vrot.lane.b32.xlu0 %v2449, 16
      %v2467 = vpop.permute.xlu0 %2466
      %2468 = vrot.lane.b32.xlu0 %v2450, 16
      %v2469 = vpop.permute.xlu0 %2468
      %2470 = vrot.lane.b32.xlu0 %v2451, 16
      %v2471 = vpop.permute.xlu0 %2470
      %2472 = vrot.lane.b32.xlu0 %v2452, 16
      %v2473 = vpop.permute.xlu0 %2472
      %2474 = vrot.lane.b32.xlu0 %v2453, 16
      %v2475 = vpop.permute.xlu0 %2474
      %2476 = vrot.lane.b32.xlu0 %v2454, 16
      %v2477 = vpop.permute.xlu0 %2476
      %2478 = vrot.lane.b32.xlu0 %v2455, 16
      %v2479 = vpop.permute.xlu0 %2478
      %2480 = vrot.lane.b32.xlu0 %v2456, 16
      %v2481 = vpop.permute.xlu0 %2480
      %2482 = vrot.lane.b32.xlu0 %v2457, 16
      %v2483 = vpop.permute.xlu0 %2482
      %2484 = vrot.lane.b32.xlu0 %v2458, 16
      %v2485 = vpop.permute.xlu0 %2484
      %2486 = vrot.lane.b32.xlu0 %v2459, 16
      %v2487 = vpop.permute.xlu0 %2486
      %2488 = vrot.lane.b32.xlu0 %v2460, 16
      %v2489 = vpop.permute.xlu0 %2488
      %2490 = vrot.lane.b32.xlu0 %v2461, 16
      %v2491 = vpop.permute.xlu0 %2490
      %2492 = vrot.lane.b32.xlu0 %v2462, 16
      %v2493 = vpop.permute.xlu0 %2492
      %2494 = vrot.lane.b32.xlu0 %v2463, 16
      %v2495 = vpop.permute.xlu0 %2494
      %vm2512 = vcmask 162944
      %2513 = vst.msk [vmem:[#allocation3] sm:$0xff] %vm2512, %v2465
      %2514 = vst.msk [vmem:[#allocation3 + $0x8] sm:$0xff] %vm2512, %v2467
      %2515 = vst.msk [vmem:[#allocation3 + $0x10] sm:$0xff] %vm2512, %v2469
      %2516 = vst.msk [vmem:[#allocation3 + $0x18] sm:$0xff] %vm2512, %v2471
      %2517 = vst.msk [vmem:[#allocation3 + $0x20] sm:$0xff] %vm2512, %v2473
      %2518 = vst.msk [vmem:[#allocation3 + $0x28] sm:$0xff] %vm2512, %v2475
      %2519 = vst.msk [vmem:[#allocation3 + $0x30] sm:$0xff] %vm2512, %v2477
      %2520 = vst.msk [vmem:[#allocation3 + $0x38] sm:$0xff] %vm2512, %v2479
      %2521 = vst.msk [vmem:[#allocation3 + $0x40] sm:$0xff] %vm2512, %v2481
      %2522 = vst.msk [vmem:[#allocation3 + $0x48] sm:$0xff] %vm2512, %v2483
      %2523 = vst.msk [vmem:[#allocation3 + $0x50] sm:$0xff] %vm2512, %v2485
      %2524 = vst.msk [vmem:[#allocation3 + $0x58] sm:$0xff] %vm2512, %v2487
      %2525 = vst.msk [vmem:[#allocation3 + $0x60] sm:$0xff] %vm2512, %v2489
      %2526 = vst.msk [vmem:[#allocation3 + $0x68] sm:$0xff] %vm2512, %v2491
      %2527 = vst.msk [vmem:[#allocation3 + $0x70] sm:$0xff] %vm2512, %v2493
      %2528 = vst.msk [vmem:[#allocation3 + $0x78] sm:$0xff] %vm2512, %v2495
      %v2529 = vld [vmem:[%s675] sm:$0xe]
      %v2530 = vld [vmem:[%s675 + $0x4] sm:$0xf]
      %v2531 = vld [vmem:[%s675 + $0x8] sm:$0x1]
      %v2532 = vld [vmem:[%s675 + $0xc] sm:$0xe]
      %v2533 = vld [vmem:[%s675 + $0x10] sm:$0xf]
      %v2534 = vld [vmem:[%s675 + $0x14] sm:$0x1]
      %v2535 = vld [vmem:[%s675 + $0x18] sm:$0xe]
      %v2536 = vld [vmem:[%s675 + $0x1c] sm:$0xf]
      %v2537 = vld [vmem:[%s675 + $0x20] sm:$0x1]
      %v2538 = vld [vmem:[%s675 + $0x24] sm:$0xe]
      %v2539 = vld [vmem:[%s675 + $0x28] sm:$0xf]
      %v2540 = vld [vmem:[%s675 + $0x2c] sm:$0x1]
      %v2541 = vld [vmem:[%s675 + $0x30] sm:$0xe]
      %v2542 = vld [vmem:[%s675 + $0x34] sm:$0xf]
      %v2543 = vld [vmem:[%s675 + $0x38] sm:$0x1]
      %v2544 = vld [vmem:[%s675 + $0x3c] sm:$0xe]
      %v2545 = vld [vmem:[%s675 + $0x40] sm:$0xf]
      %v2546 = vld [vmem:[%s675 + $0x44] sm:$0x1]
      %v2547 = vld [vmem:[%s675 + $0x48] sm:$0xe]
      %v2548 = vld [vmem:[%s675 + $0x4c] sm:$0xf]
      %v2549 = vld [vmem:[%s675 + $0x50] sm:$0x1]
      %v2550 = vld [vmem:[%s675 + $0x54] sm:$0xe]
      %v2551 = vld [vmem:[%s675 + $0x58] sm:$0xf]
      %v2552 = vld [vmem:[%s675 + $0x5c] sm:$0x1]
      %v2553 = vld [vmem:[%s675 + $0x60] sm:$0xe]
      %v2554 = vld [vmem:[%s675 + $0x64] sm:$0xf]
      %v2555 = vld [vmem:[%s675 + $0x68] sm:$0x1]
      %v2556 = vld [vmem:[%s675 + $0x6c] sm:$0xe]
      %v2557 = vld [vmem:[%s675 + $0x70] sm:$0xf]
      %v2558 = vld [vmem:[%s675 + $0x74] sm:$0x1]
      %v2559 = vld [vmem:[%s675 + $0x78] sm:$0xe]
      %v2560 = vld [vmem:[%s675 + $0x7c] sm:$0xf]
      %v2561 = vld [vmem:[%s675 + $0x80] sm:$0x1]
      %v2562 = vld [vmem:[%s675 + $0x84] sm:$0xe]
      %v2563 = vld [vmem:[%s675 + $0x88] sm:$0xf]
      %v2564 = vld [vmem:[%s675 + $0x8c] sm:$0x1]
      %v2565 = vld [vmem:[%s675 + $0x90] sm:$0xe]
      %v2566 = vld [vmem:[%s675 + $0x94] sm:$0xf]
      %v2567 = vld [vmem:[%s675 + $0x98] sm:$0x1]
      %v2568 = vld [vmem:[%s675 + $0x9c] sm:$0xe]
      %v2569 = vld [vmem:[%s675 + $0xa0] sm:$0xf]
      %v2570 = vld [vmem:[%s675 + $0xa4] sm:$0x1]
      %v2571 = vld [vmem:[%s675 + $0xa8] sm:$0xe]
      %v2572 = vld [vmem:[%s675 + $0xac] sm:$0xf]
      %v2573 = vld [vmem:[%s675 + $0xb0] sm:$0x1]
      %v2574 = vld [vmem:[%s675 + $0xb4] sm:$0xe]
      %v2575 = vld [vmem:[%s675 + $0xb8] sm:$0xf]
      %v2576 = vld [vmem:[%s675 + $0xbc] sm:$0x1]
      %v2625 = vrot.slane %v2529, 5
      %v2626 = vrot.slane %v2625, 4
      %v2627 = vrot.slane %v2530, 5
      %v2628 = vsel %vm1581, %v2626, %v2627
      %v2629 = vrot.slane %v2627, 4
      %v2630 = vrot.slane %v2531, 5
      %v2631 = vsel %vm1581, %v2629, %v2630
      %v2632 = vrot.slane %v2532, 5
      %v2633 = vrot.slane %v2632, 4
      %v2634 = vrot.slane %v2533, 5
      %v2635 = vsel %vm1581, %v2633, %v2634
      %v2636 = vrot.slane %v2634, 4
      %v2637 = vrot.slane %v2534, 5
      %v2638 = vsel %vm1581, %v2636, %v2637
      %v2639 = vrot.slane %v2535, 5
      %v2640 = vrot.slane %v2639, 4
      %v2641 = vrot.slane %v2536, 5
      %v2642 = vsel %vm1581, %v2640, %v2641
      %v2643 = vrot.slane %v2641, 4
      %v2644 = vrot.slane %v2537, 5
      %v2645 = vsel %vm1581, %v2643, %v2644
      %v2646 = vrot.slane %v2538, 5
      %v2647 = vrot.slane %v2646, 4
      %v2648 = vrot.slane %v2539, 5
      %v2649 = vsel %vm1581, %v2647, %v2648
      %v2650 = vrot.slane %v2648, 4
      %v2651 = vrot.slane %v2540, 5
      %v2652 = vsel %vm1581, %v2650, %v2651
      %v2653 = vrot.slane %v2541, 5
      %v2654 = vrot.slane %v2653, 4
      %v2655 = vrot.slane %v2542, 5
      %v2656 = vsel %vm1581, %v2654, %v2655
      %v2657 = vrot.slane %v2655, 4
      %v2658 = vrot.slane %v2543, 5
      %v2659 = vsel %vm1581, %v2657, %v2658
      %v2660 = vrot.slane %v2544, 5
      %v2661 = vrot.slane %v2660, 4
      %v2662 = vrot.slane %v2545, 5
      %v2663 = vsel %vm1581, %v2661, %v2662
      %v2664 = vrot.slane %v2662, 4
      %v2665 = vrot.slane %v2546, 5
      %v2666 = vsel %vm1581, %v2664, %v2665
      %v2667 = vrot.slane %v2547, 5
      %v2668 = vrot.slane %v2667, 4
      %v2669 = vrot.slane %v2548, 5
      %v2670 = vsel %vm1581, %v2668, %v2669
      %v2671 = vrot.slane %v2669, 4
      %v2672 = vrot.slane %v2549, 5
      %v2673 = vsel %vm1581, %v2671, %v2672
      %v2674 = vrot.slane %v2550, 5
      %v2675 = vrot.slane %v2674, 4
      %v2676 = vrot.slane %v2551, 5
      %v2677 = vsel %vm1581, %v2675, %v2676
      %v2678 = vrot.slane %v2676, 4
      %v2679 = vrot.slane %v2552, 5
      %v2680 = vsel %vm1581, %v2678, %v2679
      %v2681 = vrot.slane %v2553, 5
      %v2682 = vrot.slane %v2681, 4
      %v2683 = vrot.slane %v2554, 5
      %v2684 = vsel %vm1581, %v2682, %v2683
      %v2685 = vrot.slane %v2683, 4
      %v2686 = vrot.slane %v2555, 5
      %v2687 = vsel %vm1581, %v2685, %v2686
      %v2688 = vrot.slane %v2556, 5
      %v2689 = vrot.slane %v2688, 4
      %v2690 = vrot.slane %v2557, 5
      %v2691 = vsel %vm1581, %v2689, %v2690
      %v2692 = vrot.slane %v2690, 4
      %v2693 = vrot.slane %v2558, 5
      %v2694 = vsel %vm1581, %v2692, %v2693
      %v2695 = vrot.slane %v2559, 5
      %v2696 = vrot.slane %v2695, 4
      %v2697 = vrot.slane %v2560, 5
      %v2698 = vsel %vm1581, %v2696, %v2697
      %v2699 = vrot.slane %v2697, 4
      %v2700 = vrot.slane %v2561, 5
      %v2701 = vsel %vm1581, %v2699, %v2700
      %v2702 = vrot.slane %v2562, 5
      %v2703 = vrot.slane %v2702, 4
      %v2704 = vrot.slane %v2563, 5
      %v2705 = vsel %vm1581, %v2703, %v2704
      %v2706 = vrot.slane %v2704, 4
      %v2707 = vrot.slane %v2564, 5
      %v2708 = vsel %vm1581, %v2706, %v2707
      %v2709 = vrot.slane %v2565, 5
      %v2710 = vrot.slane %v2709, 4
      %v2711 = vrot.slane %v2566, 5
      %v2712 = vsel %vm1581, %v2710, %v2711
      %v2713 = vrot.slane %v2711, 4
      %v2714 = vrot.slane %v2567, 5
      %v2715 = vsel %vm1581, %v2713, %v2714
      %v2716 = vrot.slane %v2568, 5
      %v2717 = vrot.slane %v2716, 4
      %v2718 = vrot.slane %v2569, 5
      %v2719 = vsel %vm1581, %v2717, %v2718
      %v2720 = vrot.slane %v2718, 4
      %v2721 = vrot.slane %v2570, 5
      %v2722 = vsel %vm1581, %v2720, %v2721
      %v2723 = vrot.slane %v2571, 5
      %v2724 = vrot.slane %v2723, 4
      %v2725 = vrot.slane %v2572, 5
      %v2726 = vsel %vm1581, %v2724, %v2725
      %v2727 = vrot.slane %v2725, 4
      %v2728 = vrot.slane %v2573, 5
      %v2729 = vsel %vm1581, %v2727, %v2728
      %v2730 = vrot.slane %v2574, 5
      %v2731 = vrot.slane %v2730, 4
      %v2732 = vrot.slane %v2575, 5
      %v2733 = vsel %vm1581, %v2731, %v2732
      %v2734 = vrot.slane %v2732, 4
      %v2735 = vrot.slane %v2576, 5
      %v2736 = vsel %vm1581, %v2734, %v2735
      %v2737 = vunpack.c.l.b16 %v2628
      %v2738 = vunpack.c.l.b16 %v2631
      %v2739 = vunpack.c.l.b16 %v2635
      %v2740 = vunpack.c.l.b16 %v2638
      %v2741 = vunpack.c.l.b16 %v2642
      %v2742 = vunpack.c.l.b16 %v2645
      %v2743 = vunpack.c.l.b16 %v2649
      %v2744 = vunpack.c.l.b16 %v2652
      %v2745 = vunpack.c.l.b16 %v2656
      %v2746 = vunpack.c.l.b16 %v2659
      %v2747 = vunpack.c.l.b16 %v2663
      %v2748 = vunpack.c.l.b16 %v2666
      %v2749 = vunpack.c.l.b16 %v2670
      %v2750 = vunpack.c.l.b16 %v2673
      %v2751 = vunpack.c.l.b16 %v2677
      %v2752 = vunpack.c.l.b16 %v2680
      %v2753 = vunpack.c.l.b16 %v2684
      %v2754 = vunpack.c.l.b16 %v2687
      %v2755 = vunpack.c.l.b16 %v2691
      %v2756 = vunpack.c.l.b16 %v2694
      %v2757 = vunpack.c.l.b16 %v2698
      %v2758 = vunpack.c.l.b16 %v2701
      %v2759 = vunpack.c.l.b16 %v2705
      %v2760 = vunpack.c.l.b16 %v2708
      %v2761 = vunpack.c.l.b16 %v2712
      %v2762 = vunpack.c.l.b16 %v2715
      %v2763 = vunpack.c.l.b16 %v2719
      %v2764 = vunpack.c.l.b16 %v2722
      %v2765 = vunpack.c.l.b16 %v2726
      %v2766 = vunpack.c.l.b16 %v2729
      %v2767 = vunpack.c.l.b16 %v2733
      %v2768 = vunpack.c.l.b16 %v2736
      %v2769 = vpack.c.b16 %v2738, %v2737
      %v2770 = vpack.c.b16 %v2740, %v2739
      %v2771 = vpack.c.b16 %v2742, %v2741
      %v2772 = vpack.c.b16 %v2744, %v2743
      %v2773 = vpack.c.b16 %v2746, %v2745
      %v2774 = vpack.c.b16 %v2748, %v2747
      %v2775 = vpack.c.b16 %v2750, %v2749
      %v2776 = vpack.c.b16 %v2752, %v2751
      %v2777 = vpack.c.b16 %v2754, %v2753
      %v2778 = vpack.c.b16 %v2756, %v2755
      %v2779 = vpack.c.b16 %v2758, %v2757
      %v2780 = vpack.c.b16 %v2760, %v2759
      %v2781 = vpack.c.b16 %v2762, %v2761
      %v2782 = vpack.c.b16 %v2764, %v2763
      %v2783 = vpack.c.b16 %v2766, %v2765
      %v2784 = vpack.c.b16 %v2768, %v2767
      %2785 = vrot.lane.b32.xlu0 %v2769, 20
      %v2786 = vpop.permute.xlu0 %2785
      %2787 = vrot.lane.b32.xlu0 %v2770, 20
      %v2788 = vpop.permute.xlu0 %2787
      %2789 = vrot.lane.b32.xlu0 %v2771, 20
      %v2790 = vpop.permute.xlu0 %2789
      %2791 = vrot.lane.b32.xlu0 %v2772, 20
      %v2792 = vpop.permute.xlu0 %2791
      %2793 = vrot.lane.b32.xlu0 %v2773, 20
      %v2794 = vpop.permute.xlu0 %2793
      %2795 = vrot.lane.b32.xlu0 %v2774, 20
      %v2796 = vpop.permute.xlu0 %2795
      %2797 = vrot.lane.b32.xlu0 %v2775, 20
      %v2798 = vpop.permute.xlu0 %2797
      %2799 = vrot.lane.b32.xlu0 %v2776, 20
      %v2800 = vpop.permute.xlu0 %2799
      %2801 = vrot.lane.b32.xlu0 %v2777, 20
      %v2802 = vpop.permute.xlu0 %2801
      %2803 = vrot.lane.b32.xlu0 %v2778, 20
      %v2804 = vpop.permute.xlu0 %2803
      %2805 = vrot.lane.b32.xlu0 %v2779, 20
      %v2806 = vpop.permute.xlu0 %2805
      %2807 = vrot.lane.b32.xlu0 %v2780, 20
      %v2808 = vpop.permute.xlu0 %2807
      %2809 = vrot.lane.b32.xlu0 %v2781, 20
      %v2810 = vpop.permute.xlu0 %2809
      %2811 = vrot.lane.b32.xlu0 %v2782, 20
      %v2812 = vpop.permute.xlu0 %2811
      %2813 = vrot.lane.b32.xlu0 %v2783, 20
      %v2814 = vpop.permute.xlu0 %2813
      %2815 = vrot.lane.b32.xlu0 %v2784, 20
      %v2816 = vpop.permute.xlu0 %2815
      %vm2833 = vcmask 195744
      %2834 = vst.msk [vmem:[#allocation3] sm:$0xff] %vm2833, %v2786
      %2835 = vst.msk [vmem:[#allocation3 + $0x8] sm:$0xff] %vm2833, %v2788
      %2836 = vst.msk [vmem:[#allocation3 + $0x10] sm:$0xff] %vm2833, %v2790
      %2837 = vst.msk [vmem:[#allocation3 + $0x18] sm:$0xff] %vm2833, %v2792
      %2838 = vst.msk [vmem:[#allocation3 + $0x20] sm:$0xff] %vm2833, %v2794
      %2839 = vst.msk [vmem:[#allocation3 + $0x28] sm:$0xff] %vm2833, %v2796
      %2840 = vst.msk [vmem:[#allocation3 + $0x30] sm:$0xff] %vm2833, %v2798
      %2841 = vst.msk [vmem:[#allocation3 + $0x38] sm:$0xff] %vm2833, %v2800
      %2842 = vst.msk [vmem:[#allocation3 + $0x40] sm:$0xff] %vm2833, %v2802
      %2843 = vst.msk [vmem:[#allocation3 + $0x48] sm:$0xff] %vm2833, %v2804
      %2844 = vst.msk [vmem:[#allocation3 + $0x50] sm:$0xff] %vm2833, %v2806
      %2845 = vst.msk [vmem:[#allocation3 + $0x58] sm:$0xff] %vm2833, %v2808
      %2846 = vst.msk [vmem:[#allocation3 + $0x60] sm:$0xff] %vm2833, %v2810
      %2847 = vst.msk [vmem:[#allocation3 + $0x68] sm:$0xff] %vm2833, %v2812
      %2848 = vst.msk [vmem:[#allocation3 + $0x70] sm:$0xff] %vm2833, %v2814
      %2849 = vst.msk [vmem:[#allocation3 + $0x78] sm:$0xff] %vm2833, %v2816
      %s2850 = scalar_lea.vmem [#allocation2], 24
      %v2851 = vld [vmem:[%s2850] sm:$0xf]
      %v2852 = vld [vmem:[%s2850 + $0x4] sm:$0xf]
      %v2853 = vld [vmem:[%s2850 + $0xc] sm:$0xf]
      %v2854 = vld [vmem:[%s2850 + $0x10] sm:$0xf]
      %v2855 = vld [vmem:[%s2850 + $0x18] sm:$0xf]
      %v2856 = vld [vmem:[%s2850 + $0x1c] sm:$0xf]
      %v2857 = vld [vmem:[%s2850 + $0x24] sm:$0xf]
      %v2858 = vld [vmem:[%s2850 + $0x28] sm:$0xf]
      %v2859 = vld [vmem:[%s2850 + $0x30] sm:$0xf]
      %v2860 = vld [vmem:[%s2850 + $0x34] sm:$0xf]
      %v2861 = vld [vmem:[%s2850 + $0x3c] sm:$0xf]
      %v2862 = vld [vmem:[%s2850 + $0x40] sm:$0xf]
      %v2863 = vld [vmem:[%s2850 + $0x48] sm:$0xf]
      %v2864 = vld [vmem:[%s2850 + $0x4c] sm:$0xf]
      %v2865 = vld [vmem:[%s2850 + $0x54] sm:$0xf]
      %v2866 = vld [vmem:[%s2850 + $0x58] sm:$0xf]
      %v2867 = vld [vmem:[%s2850 + $0x60] sm:$0xf]
      %v2868 = vld [vmem:[%s2850 + $0x64] sm:$0xf]
      %v2869 = vld [vmem:[%s2850 + $0x6c] sm:$0xf]
      %v2870 = vld [vmem:[%s2850 + $0x70] sm:$0xf]
      %v2871 = vld [vmem:[%s2850 + $0x78] sm:$0xf]
      %v2872 = vld [vmem:[%s2850 + $0x7c] sm:$0xf]
      %v2873 = vld [vmem:[%s2850 + $0x84] sm:$0xf]
      %v2874 = vld [vmem:[%s2850 + $0x88] sm:$0xf]
      %v2875 = vld [vmem:[%s2850 + $0x90] sm:$0xf]
      %v2876 = vld [vmem:[%s2850 + $0x94] sm:$0xf]
      %v2877 = vld [vmem:[%s2850 + $0x9c] sm:$0xf]
      %v2878 = vld [vmem:[%s2850 + $0xa0] sm:$0xf]
      %v2879 = vld [vmem:[%s2850 + $0xa8] sm:$0xf]
      %v2880 = vld [vmem:[%s2850 + $0xac] sm:$0xf]
      %v2881 = vld [vmem:[%s2850 + $0xb4] sm:$0xf]
      %v2882 = vld [vmem:[%s2850 + $0xb8] sm:$0xf]
      %v2915 = vunpack.c.l.b16 %v2851
      %v2916 = vunpack.c.l.b16 %v2852
      %v2917 = vunpack.c.l.b16 %v2853
      %v2918 = vunpack.c.l.b16 %v2854
      %v2919 = vunpack.c.l.b16 %v2855
      %v2920 = vunpack.c.l.b16 %v2856
      %v2921 = vunpack.c.l.b16 %v2857
      %v2922 = vunpack.c.l.b16 %v2858
      %v2923 = vunpack.c.l.b16 %v2859
      %v2924 = vunpack.c.l.b16 %v2860
      %v2925 = vunpack.c.l.b16 %v2861
      %v2926 = vunpack.c.l.b16 %v2862
      %v2927 = vunpack.c.l.b16 %v2863
      %v2928 = vunpack.c.l.b16 %v2864
      %v2929 = vunpack.c.l.b16 %v2865
      %v2930 = vunpack.c.l.b16 %v2866
      %v2931 = vunpack.c.l.b16 %v2867
      %v2932 = vunpack.c.l.b16 %v2868
      %v2933 = vunpack.c.l.b16 %v2869
      %v2934 = vunpack.c.l.b16 %v2870
      %v2935 = vunpack.c.l.b16 %v2871
      %v2936 = vunpack.c.l.b16 %v2872
      %v2937 = vunpack.c.l.b16 %v2873
      %v2938 = vunpack.c.l.b16 %v2874
      %v2939 = vunpack.c.l.b16 %v2875
      %v2940 = vunpack.c.l.b16 %v2876
      %v2941 = vunpack.c.l.b16 %v2877
      %v2942 = vunpack.c.l.b16 %v2878
      %v2943 = vunpack.c.l.b16 %v2879
      %v2944 = vunpack.c.l.b16 %v2880
      %v2945 = vunpack.c.l.b16 %v2881
      %v2946 = vunpack.c.l.b16 %v2882
      %v2947 = vpack.c.b16 %v2916, %v2915
      %v2948 = vpack.c.b16 %v2918, %v2917
      %v2949 = vpack.c.b16 %v2920, %v2919
      %v2950 = vpack.c.b16 %v2922, %v2921
      %v2951 = vpack.c.b16 %v2924, %v2923
      %v2952 = vpack.c.b16 %v2926, %v2925
      %v2953 = vpack.c.b16 %v2928, %v2927
      %v2954 = vpack.c.b16 %v2930, %v2929
      %v2955 = vpack.c.b16 %v2932, %v2931
      %v2956 = vpack.c.b16 %v2934, %v2933
      %v2957 = vpack.c.b16 %v2936, %v2935
      %v2958 = vpack.c.b16 %v2938, %v2937
      %v2959 = vpack.c.b16 %v2940, %v2939
      %v2960 = vpack.c.b16 %v2942, %v2941
      %v2961 = vpack.c.b16 %v2944, %v2943
      %v2962 = vpack.c.b16 %v2946, %v2945
      %2963 = vrot.lane.b32.xlu0 %v2947, 24
      %v2964 = vpop.permute.xlu0 %2963
      %2965 = vrot.lane.b32.xlu0 %v2948, 24
      %v2966 = vpop.permute.xlu0 %2965
      %2967 = vrot.lane.b32.xlu0 %v2949, 24
      %v2968 = vpop.permute.xlu0 %2967
      %2969 = vrot.lane.b32.xlu0 %v2950, 24
      %v2970 = vpop.permute.xlu0 %2969
      %2971 = vrot.lane.b32.xlu0 %v2951, 24
      %v2972 = vpop.permute.xlu0 %2971
      %2973 = vrot.lane.b32.xlu0 %v2952, 24
      %v2974 = vpop.permute.xlu0 %2973
      %2975 = vrot.lane.b32.xlu0 %v2953, 24
      %v2976 = vpop.permute.xlu0 %2975
      %2977 = vrot.lane.b32.xlu0 %v2954, 24
      %v2978 = vpop.permute.xlu0 %2977
      %2979 = vrot.lane.b32.xlu0 %v2955, 24
      %v2980 = vpop.permute.xlu0 %2979
      %2981 = vrot.lane.b32.xlu0 %v2956, 24
      %v2982 = vpop.permute.xlu0 %2981
      %2983 = vrot.lane.b32.xlu0 %v2957, 24
      %v2984 = vpop.permute.xlu0 %2983
      %2985 = vrot.lane.b32.xlu0 %v2958, 24
      %v2986 = vpop.permute.xlu0 %2985
      %2987 = vrot.lane.b32.xlu0 %v2959, 24
      %v2988 = vpop.permute.xlu0 %2987
      %2989 = vrot.lane.b32.xlu0 %v2960, 24
      %v2990 = vpop.permute.xlu0 %2989
      %2991 = vrot.lane.b32.xlu0 %v2961, 24
      %v2992 = vpop.permute.xlu0 %2991
      %2993 = vrot.lane.b32.xlu0 %v2962, 24
      %v2994 = vpop.permute.xlu0 %2993
      %vm3011 = vcmask 228544
      %3012 = vst.msk [vmem:[#allocation3] sm:$0xff] %vm3011, %v2964
      %3013 = vst.msk [vmem:[#allocation3 + $0x8] sm:$0xff] %vm3011, %v2966
      %3014 = vst.msk [vmem:[#allocation3 + $0x10] sm:$0xff] %vm3011, %v2968
      %3015 = vst.msk [vmem:[#allocation3 + $0x18] sm:$0xff] %vm3011, %v2970
      %3016 = vst.msk [vmem:[#allocation3 + $0x20] sm:$0xff] %vm3011, %v2972
      %3017 = vst.msk [vmem:[#allocation3 + $0x28] sm:$0xff] %vm3011, %v2974
      %3018 = vst.msk [vmem:[#allocation3 + $0x30] sm:$0xff] %vm3011, %v2976
      %3019 = vst.msk [vmem:[#allocation3 + $0x38] sm:$0xff] %vm3011, %v2978
      %3020 = vst.msk [vmem:[#allocation3 + $0x40] sm:$0xff] %vm3011, %v2980
      %3021 = vst.msk [vmem:[#allocation3 + $0x48] sm:$0xff] %vm3011, %v2982
      %3022 = vst.msk [vmem:[#allocation3 + $0x50] sm:$0xff] %vm3011, %v2984
      %3023 = vst.msk [vmem:[#allocation3 + $0x58] sm:$0xff] %vm3011, %v2986
      %3024 = vst.msk [vmem:[#allocation3 + $0x60] sm:$0xff] %vm3011, %v2988
      %3025 = vst.msk [vmem:[#allocation3 + $0x68] sm:$0xff] %vm3011, %v2990
      %3026 = vst.msk [vmem:[#allocation3 + $0x70] sm:$0xff] %vm3011, %v2992
      %3027 = vst.msk [vmem:[#allocation3 + $0x78] sm:$0xff] %vm3011, %v2994
      %v3028 = vld [vmem:[%s2850] sm:$0xf]
      %v3029 = vld [vmem:[%s2850 + $0x4] sm:$0xf]
      %v3030 = vld [vmem:[%s2850 + $0x8] sm:$0x1]
      %v3031 = vld [vmem:[%s2850 + $0xc] sm:$0xf]
      %v3032 = vld [vmem:[%s2850 + $0x10] sm:$0xf]
      %v3033 = vld [vmem:[%s2850 + $0x14] sm:$0x1]
      %v3034 = vld [vmem:[%s2850 + $0x18] sm:$0xf]
      %v3035 = vld [vmem:[%s2850 + $0x1c] sm:$0xf]
      %v3036 = vld [vmem:[%s2850 + $0x20] sm:$0x1]
      %v3037 = vld [vmem:[%s2850 + $0x24] sm:$0xf]
      %v3038 = vld [vmem:[%s2850 + $0x28] sm:$0xf]
      %v3039 = vld [vmem:[%s2850 + $0x2c] sm:$0x1]
      %v3040 = vld [vmem:[%s2850 + $0x30] sm:$0xf]
      %v3041 = vld [vmem:[%s2850 + $0x34] sm:$0xf]
      %v3042 = vld [vmem:[%s2850 + $0x38] sm:$0x1]
      %v3043 = vld [vmem:[%s2850 + $0x3c] sm:$0xf]
      %v3044 = vld [vmem:[%s2850 + $0x40] sm:$0xf]
      %v3045 = vld [vmem:[%s2850 + $0x44] sm:$0x1]
      %v3046 = vld [vmem:[%s2850 + $0x48] sm:$0xf]
      %v3047 = vld [vmem:[%s2850 + $0x4c] sm:$0xf]
      %v3048 = vld [vmem:[%s2850 + $0x50] sm:$0x1]
      %v3049 = vld [vmem:[%s2850 + $0x54] sm:$0xf]
      %v3050 = vld [vmem:[%s2850 + $0x58] sm:$0xf]
      %v3051 = vld [vmem:[%s2850 + $0x5c] sm:$0x1]
      %v3052 = vld [vmem:[%s2850 + $0x60] sm:$0xf]
      %v3053 = vld [vmem:[%s2850 + $0x64] sm:$0xf]
      %v3054 = vld [vmem:[%s2850 + $0x68] sm:$0x1]
      %v3055 = vld [vmem:[%s2850 + $0x6c] sm:$0xf]
      %v3056 = vld [vmem:[%s2850 + $0x70] sm:$0xf]
      %v3057 = vld [vmem:[%s2850 + $0x74] sm:$0x1]
      %v3058 = vld [vmem:[%s2850 + $0x78] sm:$0xf]
      %v3059 = vld [vmem:[%s2850 + $0x7c] sm:$0xf]
      %v3060 = vld [vmem:[%s2850 + $0x80] sm:$0x1]
      %v3061 = vld [vmem:[%s2850 + $0x84] sm:$0xf]
      %v3062 = vld [vmem:[%s2850 + $0x88] sm:$0xf]
      %v3063 = vld [vmem:[%s2850 + $0x8c] sm:$0x1]
      %v3064 = vld [vmem:[%s2850 + $0x90] sm:$0xf]
      %v3065 = vld [vmem:[%s2850 + $0x94] sm:$0xf]
      %v3066 = vld [vmem:[%s2850 + $0x98] sm:$0x1]
      %v3067 = vld [vmem:[%s2850 + $0x9c] sm:$0xf]
      %v3068 = vld [vmem:[%s2850 + $0xa0] sm:$0xf]
      %v3069 = vld [vmem:[%s2850 + $0xa4] sm:$0x1]
      %v3070 = vld [vmem:[%s2850 + $0xa8] sm:$0xf]
      %v3071 = vld [vmem:[%s2850 + $0xac] sm:$0xf]
      %v3072 = vld [vmem:[%s2850 + $0xb0] sm:$0x1]
      %v3073 = vld [vmem:[%s2850 + $0xb4] sm:$0xf]
      %v3074 = vld [vmem:[%s2850 + $0xb8] sm:$0xf]
      %v3075 = vld [vmem:[%s2850 + $0xbc] sm:$0x1]
      %v3077 = vshrl.u32 %v3028, 16
      %v3079 = vrot.slane %v3077, 4
      %v3080 = vshll.u32 %v3028, 16
      %v3082 = vrot.slane %v3080, 5
      %v3083 = vor.u32 %v3079, %v3082
      %v3084 = vrot.slane %v3083, 4
      %v3086 = vshll.u32 %v3029, 16
      %v3088 = vrot.slane %v3086, 5
      %v3089 = vsel %vm985, %v3084, %v3088
      %v3090 = vshrl.u32 %v3029, 16
      %v3092 = vrot.slane %v3090, 4
      %v3093 = vor.u32 %v3092, %v3088
      %v3094 = vrot.slane %v3093, 4
      %v3096 = vshll.u32 %v3030, 16
      %v3098 = vrot.slane %v3096, 5
      %v3099 = vsel %vm985, %v3094, %v3098
      %v3101 = vshrl.u32 %v3031, 16
      %v3103 = vrot.slane %v3101, 4
      %v3104 = vshll.u32 %v3031, 16
      %v3106 = vrot.slane %v3104, 5
      %v3107 = vor.u32 %v3103, %v3106
      %v3108 = vrot.slane %v3107, 4
      %v3110 = vshll.u32 %v3032, 16
      %v3112 = vrot.slane %v3110, 5
      %v3113 = vsel %vm985, %v3108, %v3112
      %v3114 = vshrl.u32 %v3032, 16
      %v3116 = vrot.slane %v3114, 4
      %v3117 = vor.u32 %v3116, %v3112
      %v3118 = vrot.slane %v3117, 4
      %v3120 = vshll.u32 %v3033, 16
      %v3122 = vrot.slane %v3120, 5
      %v3123 = vsel %vm985, %v3118, %v3122
      %v3125 = vshrl.u32 %v3034, 16
      %v3127 = vrot.slane %v3125, 4
      %v3128 = vshll.u32 %v3034, 16
      %v3130 = vrot.slane %v3128, 5
      %v3131 = vor.u32 %v3127, %v3130
      %v3132 = vrot.slane %v3131, 4
      %v3134 = vshll.u32 %v3035, 16
      %v3136 = vrot.slane %v3134, 5
      %v3137 = vsel %vm985, %v3132, %v3136
      %v3138 = vshrl.u32 %v3035, 16
      %v3140 = vrot.slane %v3138, 4
      %v3141 = vor.u32 %v3140, %v3136
      %v3142 = vrot.slane %v3141, 4
      %v3144 = vshll.u32 %v3036, 16
      %v3146 = vrot.slane %v3144, 5
      %v3147 = vsel %vm985, %v3142, %v3146
      %v3149 = vshrl.u32 %v3037, 16
      %v3151 = vrot.slane %v3149, 4
      %v3152 = vshll.u32 %v3037, 16
      %v3154 = vrot.slane %v3152, 5
      %v3155 = vor.u32 %v3151, %v3154
      %v3156 = vrot.slane %v3155, 4
      %v3158 = vshll.u32 %v3038, 16
      %v3160 = vrot.slane %v3158, 5
      %v3161 = vsel %vm985, %v3156, %v3160
      %v3162 = vshrl.u32 %v3038, 16
      %v3164 = vrot.slane %v3162, 4
      %v3165 = vor.u32 %v3164, %v3160
      %v3166 = vrot.slane %v3165, 4
      %v3168 = vshll.u32 %v3039, 16
      %v3170 = vrot.slane %v3168, 5
      %v3171 = vsel %vm985, %v3166, %v3170
      %v3173 = vshrl.u32 %v3040, 16
      %v3175 = vrot.slane %v3173, 4
      %v3176 = vshll.u32 %v3040, 16
      %v3178 = vrot.slane %v3176, 5
      %v3179 = vor.u32 %v3175, %v3178
      %v3180 = vrot.slane %v3179, 4
      %v3182 = vshll.u32 %v3041, 16
      %v3184 = vrot.slane %v3182, 5
      %v3185 = vsel %vm985, %v3180, %v3184
      %v3186 = vshrl.u32 %v3041, 16
      %v3188 = vrot.slane %v3186, 4
      %v3189 = vor.u32 %v3188, %v3184
      %v3190 = vrot.slane %v3189, 4
      %v3192 = vshll.u32 %v3042, 16
      %v3194 = vrot.slane %v3192, 5
      %v3195 = vsel %vm985, %v3190, %v3194
      %v3197 = vshrl.u32 %v3043, 16
      %v3199 = vrot.slane %v3197, 4
      %v3200 = vshll.u32 %v3043, 16
      %v3202 = vrot.slane %v3200, 5
      %v3203 = vor.u32 %v3199, %v3202
      %v3204 = vrot.slane %v3203, 4
      %v3206 = vshll.u32 %v3044, 16
      %v3208 = vrot.slane %v3206, 5
      %v3209 = vsel %vm985, %v3204, %v3208
      %v3210 = vshrl.u32 %v3044, 16
      %v3212 = vrot.slane %v3210, 4
      %v3213 = vor.u32 %v3212, %v3208
      %v3214 = vrot.slane %v3213, 4
      %v3216 = vshll.u32 %v3045, 16
      %v3218 = vrot.slane %v3216, 5
      %v3219 = vsel %vm985, %v3214, %v3218
      %v3221 = vshrl.u32 %v3046, 16
      %v3223 = vrot.slane %v3221, 4
      %v3224 = vshll.u32 %v3046, 16
      %v3226 = vrot.slane %v3224, 5
      %v3227 = vor.u32 %v3223, %v3226
      %v3228 = vrot.slane %v3227, 4
      %v3230 = vshll.u32 %v3047, 16
      %v3232 = vrot.slane %v3230, 5
      %v3233 = vsel %vm985, %v3228, %v3232
      %v3234 = vshrl.u32 %v3047, 16
      %v3236 = vrot.slane %v3234, 4
      %v3237 = vor.u32 %v3236, %v3232
      %v3238 = vrot.slane %v3237, 4
      %v3240 = vshll.u32 %v3048, 16
      %v3242 = vrot.slane %v3240, 5
      %v3243 = vsel %vm985, %v3238, %v3242
      %v3245 = vshrl.u32 %v3049, 16
      %v3247 = vrot.slane %v3245, 4
      %v3248 = vshll.u32 %v3049, 16
      %v3250 = vrot.slane %v3248, 5
      %v3251 = vor.u32 %v3247, %v3250
      %v3252 = vrot.slane %v3251, 4
      %v3254 = vshll.u32 %v3050, 16
      %v3256 = vrot.slane %v3254, 5
      %v3257 = vsel %vm985, %v3252, %v3256
      %v3258 = vshrl.u32 %v3050, 16
      %v3260 = vrot.slane %v3258, 4
      %v3261 = vor.u32 %v3260, %v3256
      %v3262 = vrot.slane %v3261, 4
      %v3264 = vshll.u32 %v3051, 16
      %v3266 = vrot.slane %v3264, 5
      %v3267 = vsel %vm985, %v3262, %v3266
      %v3269 = vshrl.u32 %v3052, 16
      %v3271 = vrot.slane %v3269, 4
      %v3272 = vshll.u32 %v3052, 16
      %v3274 = vrot.slane %v3272, 5
      %v3275 = vor.u32 %v3271, %v3274
      %v3276 = vrot.slane %v3275, 4
      %v3278 = vshll.u32 %v3053, 16
      %v3280 = vrot.slane %v3278, 5
      %v3281 = vsel %vm985, %v3276, %v3280
      %v3282 = vshrl.u32 %v3053, 16
      %v3284 = vrot.slane %v3282, 4
      %v3285 = vor.u32 %v3284, %v3280
      %v3286 = vrot.slane %v3285, 4
      %v3288 = vshll.u32 %v3054, 16
      %v3290 = vrot.slane %v3288, 5
      %v3291 = vsel %vm985, %v3286, %v3290
      %v3293 = vshrl.u32 %v3055, 16
      %v3295 = vrot.slane %v3293, 4
      %v3296 = vshll.u32 %v3055, 16
      %v3298 = vrot.slane %v3296, 5
      %v3299 = vor.u32 %v3295, %v3298
      %v3300 = vrot.slane %v3299, 4
      %v3302 = vshll.u32 %v3056, 16
      %v3304 = vrot.slane %v3302, 5
      %v3305 = vsel %vm985, %v3300, %v3304
      %v3306 = vshrl.u32 %v3056, 16
      %v3308 = vrot.slane %v3306, 4
      %v3309 = vor.u32 %v3308, %v3304
      %v3310 = vrot.slane %v3309, 4
      %v3312 = vshll.u32 %v3057, 16
      %v3314 = vrot.slane %v3312, 5
      %v3315 = vsel %vm985, %v3310, %v3314
      %v3317 = vshrl.u32 %v3058, 16
      %v3319 = vrot.slane %v3317, 4
      %v3320 = vshll.u32 %v3058, 16
      %v3322 = vrot.slane %v3320, 5
      %v3323 = vor.u32 %v3319, %v3322
      %v3324 = vrot.slane %v3323, 4
      %v3326 = vshll.u32 %v3059, 16
      %v3328 = vrot.slane %v3326, 5
      %v3329 = vsel %vm985, %v3324, %v3328
      %v3330 = vshrl.u32 %v3059, 16
      %v3332 = vrot.slane %v3330, 4
      %v3333 = vor.u32 %v3332, %v3328
      %v3334 = vrot.slane %v3333, 4
      %v3336 = vshll.u32 %v3060, 16
      %v3338 = vrot.slane %v3336, 5
      %v3339 = vsel %vm985, %v3334, %v3338
      %v3341 = vshrl.u32 %v3061, 16
      %v3343 = vrot.slane %v3341, 4
      %v3344 = vshll.u32 %v3061, 16
      %v3346 = vrot.slane %v3344, 5
      %v3347 = vor.u32 %v3343, %v3346
      %v3348 = vrot.slane %v3347, 4
      %v3350 = vshll.u32 %v3062, 16
      %v3352 = vrot.slane %v3350, 5
      %v3353 = vsel %vm985, %v3348, %v3352
      %v3354 = vshrl.u32 %v3062, 16
      %v3356 = vrot.slane %v3354, 4
      %v3357 = vor.u32 %v3356, %v3352
      %v3358 = vrot.slane %v3357, 4
      %v3360 = vshll.u32 %v3063, 16
      %v3362 = vrot.slane %v3360, 5
      %v3363 = vsel %vm985, %v3358, %v3362
      %v3365 = vshrl.u32 %v3064, 16
      %v3367 = vrot.slane %v3365, 4
      %v3368 = vshll.u32 %v3064, 16
      %v3370 = vrot.slane %v3368, 5
      %v3371 = vor.u32 %v3367, %v3370
      %v3372 = vrot.slane %v3371, 4
      %v3374 = vshll.u32 %v3065, 16
      %v3376 = vrot.slane %v3374, 5
      %v3377 = vsel %vm985, %v3372, %v3376
      %v3378 = vshrl.u32 %v3065, 16
      %v3380 = vrot.slane %v3378, 4
      %v3381 = vor.u32 %v3380, %v3376
      %v3382 = vrot.slane %v3381, 4
      %v3384 = vshll.u32 %v3066, 16
      %v3386 = vrot.slane %v3384, 5
      %v3387 = vsel %vm985, %v3382, %v3386
      %v3389 = vshrl.u32 %v3067, 16
      %v3391 = vrot.slane %v3389, 4
      %v3392 = vshll.u32 %v3067, 16
      %v3394 = vrot.slane %v3392, 5
      %v3395 = vor.u32 %v3391, %v3394
      %v3396 = vrot.slane %v3395, 4
      %v3398 = vshll.u32 %v3068, 16
      %v3400 = vrot.slane %v3398, 5
      %v3401 = vsel %vm985, %v3396, %v3400
      %v3402 = vshrl.u32 %v3068, 16
      %v3404 = vrot.slane %v3402, 4
      %v3405 = vor.u32 %v3404, %v3400
      %v3406 = vrot.slane %v3405, 4
      %v3408 = vshll.u32 %v3069, 16
      %v3410 = vrot.slane %v3408, 5
      %v3411 = vsel %vm985, %v3406, %v3410
      %v3413 = vshrl.u32 %v3070, 16
      %v3415 = vrot.slane %v3413, 4
      %v3416 = vshll.u32 %v3070, 16
      %v3418 = vrot.slane %v3416, 5
      %v3419 = vor.u32 %v3415, %v3418
      %v3420 = vrot.slane %v3419, 4
      %v3422 = vshll.u32 %v3071, 16
      %v3424 = vrot.slane %v3422, 5
      %v3425 = vsel %vm985, %v3420, %v3424
      %v3426 = vshrl.u32 %v3071, 16
      %v3428 = vrot.slane %v3426, 4
      %v3429 = vor.u32 %v3428, %v3424
      %v3430 = vrot.slane %v3429, 4
      %v3432 = vshll.u32 %v3072, 16
      %v3434 = vrot.slane %v3432, 5
      %v3435 = vsel %vm985, %v3430, %v3434
      %v3437 = vshrl.u32 %v3073, 16
      %v3439 = vrot.slane %v3437, 4
      %v3440 = vshll.u32 %v3073, 16
      %v3442 = vrot.slane %v3440, 5
      %v3443 = vor.u32 %v3439, %v3442
      %v3444 = vrot.slane %v3443, 4
      %v3446 = vshll.u32 %v3074, 16
      %v3448 = vrot.slane %v3446, 5
      %v3449 = vsel %vm985, %v3444, %v3448
      %v3450 = vshrl.u32 %v3074, 16
      %v3452 = vrot.slane %v3450, 4
      %v3453 = vor.u32 %v3452, %v3448
      %v3454 = vrot.slane %v3453, 4
      %v3456 = vshll.u32 %v3075, 16
      %v3458 = vrot.slane %v3456, 5
      %v3459 = vsel %vm985, %v3454, %v3458
      %v3460 = vunpack.c.l.b16 %v3089
      %v3461 = vunpack.c.l.b16 %v3099
      %v3462 = vunpack.c.l.b16 %v3113
      %v3463 = vunpack.c.l.b16 %v3123
      %v3464 = vunpack.c.l.b16 %v3137
      %v3465 = vunpack.c.l.b16 %v3147
      %v3466 = vunpack.c.l.b16 %v3161
      %v3467 = vunpack.c.l.b16 %v3171
      %v3468 = vunpack.c.l.b16 %v3185
      %v3469 = vunpack.c.l.b16 %v3195
      %v3470 = vunpack.c.l.b16 %v3209
      %v3471 = vunpack.c.l.b16 %v3219
      %v3472 = vunpack.c.l.b16 %v3233
      %v3473 = vunpack.c.l.b16 %v3243
      %v3474 = vunpack.c.l.b16 %v3257
      %v3475 = vunpack.c.l.b16 %v3267
      %v3476 = vunpack.c.l.b16 %v3281
      %v3477 = vunpack.c.l.b16 %v3291
      %v3478 = vunpack.c.l.b16 %v3305
      %v3479 = vunpack.c.l.b16 %v3315
      %v3480 = vunpack.c.l.b16 %v3329
      %v3481 = vunpack.c.l.b16 %v3339
      %v3482 = vunpack.c.l.b16 %v3353
      %v3483 = vunpack.c.l.b16 %v3363
      %v3484 = vunpack.c.l.b16 %v3377
      %v3485 = vunpack.c.l.b16 %v3387
      %v3486 = vunpack.c.l.b16 %v3401
      %v3487 = vunpack.c.l.b16 %v3411
      %v3488 = vunpack.c.l.b16 %v3425
      %v3489 = vunpack.c.l.b16 %v3435
      %v3490 = vunpack.c.l.b16 %v3449
      %v3491 = vunpack.c.l.b16 %v3459
      %v3492 = vpack.c.b16 %v3461, %v3460
      %v3493 = vpack.c.b16 %v3463, %v3462
      %v3494 = vpack.c.b16 %v3465, %v3464
      %v3495 = vpack.c.b16 %v3467, %v3466
      %v3496 = vpack.c.b16 %v3469, %v3468
      %v3497 = vpack.c.b16 %v3471, %v3470
      %v3498 = vpack.c.b16 %v3473, %v3472
      %v3499 = vpack.c.b16 %v3475, %v3474
      %v3500 = vpack.c.b16 %v3477, %v3476
      %v3501 = vpack.c.b16 %v3479, %v3478
      %v3502 = vpack.c.b16 %v3481, %v3480
      %v3503 = vpack.c.b16 %v3483, %v3482
      %v3504 = vpack.c.b16 %v3485, %v3484
      %v3505 = vpack.c.b16 %v3487, %v3486
      %v3506 = vpack.c.b16 %v3489, %v3488
      %v3507 = vpack.c.b16 %v3491, %v3490
      %3508 = vrot.lane.b32.xlu0 %v3492, 28
      %v3509 = vpop.permute.xlu0 %3508
      %3510 = vrot.lane.b32.xlu0 %v3493, 28
      %v3511 = vpop.permute.xlu0 %3510
      %3512 = vrot.lane.b32.xlu0 %v3494, 28
      %v3513 = vpop.permute.xlu0 %3512
      %3514 = vrot.lane.b32.xlu0 %v3495, 28
      %v3515 = vpop.permute.xlu0 %3514
      %3516 = vrot.lane.b32.xlu0 %v3496, 28
      %v3517 = vpop.permute.xlu0 %3516
      %3518 = vrot.lane.b32.xlu0 %v3497, 28
      %v3519 = vpop.permute.xlu0 %3518
      %3520 = vrot.lane.b32.xlu0 %v3498, 28
      %v3521 = vpop.permute.xlu0 %3520
      %3522 = vrot.lane.b32.xlu0 %v3499, 28
      %v3523 = vpop.permute.xlu0 %3522
      %3524 = vrot.lane.b32.xlu0 %v3500, 28
      %v3525 = vpop.permute.xlu0 %3524
      %3526 = vrot.lane.b32.xlu0 %v3501, 28
      %v3527 = vpop.permute.xlu0 %3526
      %3528 = vrot.lane.b32.xlu0 %v3502, 28
      %v3529 = vpop.permute.xlu0 %3528
      %3530 = vrot.lane.b32.xlu0 %v3503, 28
      %v3531 = vpop.permute.xlu0 %3530
      %3532 = vrot.lane.b32.xlu0 %v3504, 28
      %v3533 = vpop.permute.xlu0 %3532
      %3534 = vrot.lane.b32.xlu0 %v3505, 28
      %v3535 = vpop.permute.xlu0 %3534
      %3536 = vrot.lane.b32.xlu0 %v3506, 28
      %v3537 = vpop.permute.xlu0 %3536
      %3538 = vrot.lane.b32.xlu0 %v3507, 28
      %v3539 = vpop.permute.xlu0 %3538
      %vm3556 = vcmask 261344
      %3557 = vst.msk [vmem:[#allocation3] sm:$0xff] %vm3556, %v3509
      %3558 = vst.msk [vmem:[#allocation3 + $0x8] sm:$0xff] %vm3556, %v3511
      %3559 = vst.msk [vmem:[#allocation3 + $0x10] sm:$0xff] %vm3556, %v3513
      %3560 = vst.msk [vmem:[#allocation3 + $0x18] sm:$0xff] %vm3556, %v3515
      %3561 = vst.msk [vmem:[#allocation3 + $0x20] sm:$0xff] %vm3556, %v3517
      %3562 = vst.msk [vmem:[#allocation3 + $0x28] sm:$0xff] %vm3556, %v3519
      %3563 = vst.msk [vmem:[#allocation3 + $0x30] sm:$0xff] %vm3556, %v3521
      %3564 = vst.msk [vmem:[#allocation3 + $0x38] sm:$0xff] %vm3556, %v3523
      %3565 = vst.msk [vmem:[#allocation3 + $0x40] sm:$0xff] %vm3556, %v3525
      %3566 = vst.msk [vmem:[#allocation3 + $0x48] sm:$0xff] %vm3556, %v3527
      %3567 = vst.msk [vmem:[#allocation3 + $0x50] sm:$0xff] %vm3556, %v3529
      %3568 = vst.msk [vmem:[#allocation3 + $0x58] sm:$0xff] %vm3556, %v3531
      %3569 = vst.msk [vmem:[#allocation3 + $0x60] sm:$0xff] %vm3556, %v3533
      %3570 = vst.msk [vmem:[#allocation3 + $0x68] sm:$0xff] %vm3556, %v3535
      %3571 = vst.msk [vmem:[#allocation3 + $0x70] sm:$0xff] %vm3556, %v3537
      %3572 = vst.msk [vmem:[#allocation3 + $0x78] sm:$0xff] %vm3556, %v3539
      %v3573 = vld [vmem:[%s2850] sm:$0xe]
      %v3574 = vld [vmem:[%s2850 + $0x4] sm:$0xf]
      %v3575 = vld [vmem:[%s2850 + $0x8] sm:$0x1]
      %v3576 = vld [vmem:[%s2850 + $0xc] sm:$0xe]
      %v3577 = vld [vmem:[%s2850 + $0x10] sm:$0xf]
      %v3578 = vld [vmem:[%s2850 + $0x14] sm:$0x1]
      %v3579 = vld [vmem:[%s2850 + $0x18] sm:$0xe]
      %v3580 = vld [vmem:[%s2850 + $0x1c] sm:$0xf]
      %v3581 = vld [vmem:[%s2850 + $0x20] sm:$0x1]
      %v3582 = vld [vmem:[%s2850 + $0x24] sm:$0xe]
      %v3583 = vld [vmem:[%s2850 + $0x28] sm:$0xf]
      %v3584 = vld [vmem:[%s2850 + $0x2c] sm:$0x1]
      %v3585 = vld [vmem:[%s2850 + $0x30] sm:$0xe]
      %v3586 = vld [vmem:[%s2850 + $0x34] sm:$0xf]
      %v3587 = vld [vmem:[%s2850 + $0x38] sm:$0x1]
      %v3588 = vld [vmem:[%s2850 + $0x3c] sm:$0xe]
      %v3589 = vld [vmem:[%s2850 + $0x40] sm:$0xf]
      %v3590 = vld [vmem:[%s2850 + $0x44] sm:$0x1]
      %v3591 = vld [vmem:[%s2850 + $0x48] sm:$0xe]
      %v3592 = vld [vmem:[%s2850 + $0x4c] sm:$0xf]
      %v3593 = vld [vmem:[%s2850 + $0x50] sm:$0x1]
      %v3594 = vld [vmem:[%s2850 + $0x54] sm:$0xe]
      %v3595 = vld [vmem:[%s2850 + $0x58] sm:$0xf]
      %v3596 = vld [vmem:[%s2850 + $0x5c] sm:$0x1]
      %v3597 = vld [vmem:[%s2850 + $0x60] sm:$0xe]
      %v3598 = vld [vmem:[%s2850 + $0x64] sm:$0xf]
      %v3599 = vld [vmem:[%s2850 + $0x68] sm:$0x1]
      %v3600 = vld [vmem:[%s2850 + $0x6c] sm:$0xe]
      %v3601 = vld [vmem:[%s2850 + $0x70] sm:$0xf]
      %v3602 = vld [vmem:[%s2850 + $0x74] sm:$0x1]
      %v3603 = vld [vmem:[%s2850 + $0x78] sm:$0xe]
      %v3604 = vld [vmem:[%s2850 + $0x7c] sm:$0xf]
      %v3605 = vld [vmem:[%s2850 + $0x80] sm:$0x1]
      %v3606 = vld [vmem:[%s2850 + $0x84] sm:$0xe]
      %v3607 = vld [vmem:[%s2850 + $0x88] sm:$0xf]
      %v3608 = vld [vmem:[%s2850 + $0x8c] sm:$0x1]
      %v3609 = vld [vmem:[%s2850 + $0x90] sm:$0xe]
      %v3610 = vld [vmem:[%s2850 + $0x94] sm:$0xf]
      %v3611 = vld [vmem:[%s2850 + $0x98] sm:$0x1]
      %v3612 = vld [vmem:[%s2850 + $0x9c] sm:$0xe]
      %v3613 = vld [vmem:[%s2850 + $0xa0] sm:$0xf]
      %v3614 = vld [vmem:[%s2850 + $0xa4] sm:$0x1]
      %v3615 = vld [vmem:[%s2850 + $0xa8] sm:$0xe]
      %v3616 = vld [vmem:[%s2850 + $0xac] sm:$0xf]
      %v3617 = vld [vmem:[%s2850 + $0xb0] sm:$0x1]
      %v3618 = vld [vmem:[%s2850 + $0xb4] sm:$0xe]
      %v3619 = vld [vmem:[%s2850 + $0xb8] sm:$0xf]
      %v3620 = vld [vmem:[%s2850 + $0xbc] sm:$0x1]
      %v3669 = vrot.slane %v3573, 5
      %v3670 = vrot.slane %v3669, 4
      %v3671 = vrot.slane %v3574, 5
      %v3672 = vsel %vm1581, %v3670, %v3671
      %v3673 = vrot.slane %v3671, 4
      %v3674 = vrot.slane %v3575, 5
      %v3675 = vsel %vm1581, %v3673, %v3674
      %v3676 = vrot.slane %v3576, 5
      %v3677 = vrot.slane %v3676, 4
      %v3678 = vrot.slane %v3577, 5
      %v3679 = vsel %vm1581, %v3677, %v3678
      %v3680 = vrot.slane %v3678, 4
      %v3681 = vrot.slane %v3578, 5
      %v3682 = vsel %vm1581, %v3680, %v3681
      %v3683 = vrot.slane %v3579, 5
      %v3684 = vrot.slane %v3683, 4
      %v3685 = vrot.slane %v3580, 5
      %v3686 = vsel %vm1581, %v3684, %v3685
      %v3687 = vrot.slane %v3685, 4
      %v3688 = vrot.slane %v3581, 5
      %v3689 = vsel %vm1581, %v3687, %v3688
      %v3690 = vrot.slane %v3582, 5
      %v3691 = vrot.slane %v3690, 4
      %v3692 = vrot.slane %v3583, 5
      %v3693 = vsel %vm1581, %v3691, %v3692
      %v3694 = vrot.slane %v3692, 4
      %v3695 = vrot.slane %v3584, 5
      %v3696 = vsel %vm1581, %v3694, %v3695
      %v3697 = vrot.slane %v3585, 5
      %v3698 = vrot.slane %v3697, 4
      %v3699 = vrot.slane %v3586, 5
      %v3700 = vsel %vm1581, %v3698, %v3699
      %v3701 = vrot.slane %v3699, 4
      %v3702 = vrot.slane %v3587, 5
      %v3703 = vsel %vm1581, %v3701, %v3702
      %v3704 = vrot.slane %v3588, 5
      %v3705 = vrot.slane %v3704, 4
      %v3706 = vrot.slane %v3589, 5
      %v3707 = vsel %vm1581, %v3705, %v3706
      %v3708 = vrot.slane %v3706, 4
      %v3709 = vrot.slane %v3590, 5
      %v3710 = vsel %vm1581, %v3708, %v3709
      %v3711 = vrot.slane %v3591, 5
      %v3712 = vrot.slane %v3711, 4
      %v3713 = vrot.slane %v3592, 5
      %v3714 = vsel %vm1581, %v3712, %v3713
      %v3715 = vrot.slane %v3713, 4
      %v3716 = vrot.slane %v3593, 5
      %v3717 = vsel %vm1581, %v3715, %v3716
      %v3718 = vrot.slane %v3594, 5
      %v3719 = vrot.slane %v3718, 4
      %v3720 = vrot.slane %v3595, 5
      %v3721 = vsel %vm1581, %v3719, %v3720
      %v3722 = vrot.slane %v3720, 4
      %v3723 = vrot.slane %v3596, 5
      %v3724 = vsel %vm1581, %v3722, %v3723
      %v3725 = vrot.slane %v3597, 5
      %v3726 = vrot.slane %v3725, 4
      %v3727 = vrot.slane %v3598, 5
      %v3728 = vsel %vm1581, %v3726, %v3727
      %v3729 = vrot.slane %v3727, 4
      %v3730 = vrot.slane %v3599, 5
      %v3731 = vsel %vm1581, %v3729, %v3730
      %v3732 = vrot.slane %v3600, 5
      %v3733 = vrot.slane %v3732, 4
      %v3734 = vrot.slane %v3601, 5
      %v3735 = vsel %vm1581, %v3733, %v3734
      %v3736 = vrot.slane %v3734, 4
      %v3737 = vrot.slane %v3602, 5
      %v3738 = vsel %vm1581, %v3736, %v3737
      %v3739 = vrot.slane %v3603, 5
      %v3740 = vrot.slane %v3739, 4
      %v3741 = vrot.slane %v3604, 5
      %v3742 = vsel %vm1581, %v3740, %v3741
      %v3743 = vrot.slane %v3741, 4
      %v3744 = vrot.slane %v3605, 5
      %v3745 = vsel %vm1581, %v3743, %v3744
      %v3746 = vrot.slane %v3606, 5
      %v3747 = vrot.slane %v3746, 4
      %v3748 = vrot.slane %v3607, 5
      %v3749 = vsel %vm1581, %v3747, %v3748
      %v3750 = vrot.slane %v3748, 4
      %v3751 = vrot.slane %v3608, 5
      %v3752 = vsel %vm1581, %v3750, %v3751
      %v3753 = vrot.slane %v3609, 5
      %v3754 = vrot.slane %v3753, 4
      %v3755 = vrot.slane %v3610, 5
      %v3756 = vsel %vm1581, %v3754, %v3755
      %v3757 = vrot.slane %v3755, 4
      %v3758 = vrot.slane %v3611, 5
      %v3759 = vsel %vm1581, %v3757, %v3758
      %v3760 = vrot.slane %v3612, 5
      %v3761 = vrot.slane %v3760, 4
      %v3762 = vrot.slane %v3613, 5
      %v3763 = vsel %vm1581, %v3761, %v3762
      %v3764 = vrot.slane %v3762, 4
      %v3765 = vrot.slane %v3614, 5
      %v3766 = vsel %vm1581, %v3764, %v3765
      %v3767 = vrot.slane %v3615, 5
      %v3768 = vrot.slane %v3767, 4
      %v3769 = vrot.slane %v3616, 5
      %v3770 = vsel %vm1581, %v3768, %v3769
      %v3771 = vrot.slane %v3769, 4
      %v3772 = vrot.slane %v3617, 5
      %v3773 = vsel %vm1581, %v3771, %v3772
      %v3774 = vrot.slane %v3618, 5
      %v3775 = vrot.slane %v3774, 4
      %v3776 = vrot.slane %v3619, 5
      %v3777 = vsel %vm1581, %v3775, %v3776
      %v3778 = vrot.slane %v3776, 4
      %v3779 = vrot.slane %v3620, 5
      %v3780 = vsel %vm1581, %v3778, %v3779
      %v3781 = vunpack.c.l.b16 %v3672
      %v3782 = vunpack.c.l.b16 %v3675
      %v3783 = vunpack.c.l.b16 %v3679
      %v3784 = vunpack.c.l.b16 %v3682
      %v3785 = vunpack.c.l.b16 %v3686
      %v3786 = vunpack.c.l.b16 %v3689
      %v3787 = vunpack.c.l.b16 %v3693
      %v3788 = vunpack.c.l.b16 %v3696
      %v3789 = vunpack.c.l.b16 %v3700
      %v3790 = vunpack.c.l.b16 %v3703
      %v3791 = vunpack.c.l.b16 %v3707
      %v3792 = vunpack.c.l.b16 %v3710
      %v3793 = vunpack.c.l.b16 %v3714
      %v3794 = vunpack.c.l.b16 %v3717
      %v3795 = vunpack.c.l.b16 %v3721
      %v3796 = vunpack.c.l.b16 %v3724
      %v3797 = vunpack.c.l.b16 %v3728
      %v3798 = vunpack.c.l.b16 %v3731
      %v3799 = vunpack.c.l.b16 %v3735
      %v3800 = vunpack.c.l.b16 %v3738
      %v3801 = vunpack.c.l.b16 %v3742
      %v3802 = vunpack.c.l.b16 %v3745
      %v3803 = vunpack.c.l.b16 %v3749
      %v3804 = vunpack.c.l.b16 %v3752
      %v3805 = vunpack.c.l.b16 %v3756
      %v3806 = vunpack.c.l.b16 %v3759
      %v3807 = vunpack.c.l.b16 %v3763
      %v3808 = vunpack.c.l.b16 %v3766
      %v3809 = vunpack.c.l.b16 %v3770
      %v3810 = vunpack.c.l.b16 %v3773
      %v3811 = vunpack.c.l.b16 %v3777
      %v3812 = vunpack.c.l.b16 %v3780
      %v3813 = vpack.c.b16 %v3782, %v3781
      %v3814 = vpack.c.b16 %v3784, %v3783
      %v3815 = vpack.c.b16 %v3786, %v3785
      %v3816 = vpack.c.b16 %v3788, %v3787
      %v3817 = vpack.c.b16 %v3790, %v3789
      %v3818 = vpack.c.b16 %v3792, %v3791
      %v3819 = vpack.c.b16 %v3794, %v3793
      %v3820 = vpack.c.b16 %v3796, %v3795
      %v3821 = vpack.c.b16 %v3798, %v3797
      %v3822 = vpack.c.b16 %v3800, %v3799
      %v3823 = vpack.c.b16 %v3802, %v3801
      %v3824 = vpack.c.b16 %v3804, %v3803
      %v3825 = vpack.c.b16 %v3806, %v3805
      %v3826 = vpack.c.b16 %v3808, %v3807
      %v3827 = vpack.c.b16 %v3810, %v3809
      %v3828 = vpack.c.b16 %v3812, %v3811
      %3829 = vrot.lane.b32.xlu0 %v3813, 32
      %v3830 = vpop.permute.xlu0 %3829
      %3831 = vrot.lane.b32.xlu0 %v3814, 32
      %v3832 = vpop.permute.xlu0 %3831
      %3833 = vrot.lane.b32.xlu0 %v3815, 32
      %v3834 = vpop.permute.xlu0 %3833
      %3835 = vrot.lane.b32.xlu0 %v3816, 32
      %v3836 = vpop.permute.xlu0 %3835
      %3837 = vrot.lane.b32.xlu0 %v3817, 32
      %v3838 = vpop.permute.xlu0 %3837
      %3839 = vrot.lane.b32.xlu0 %v3818, 32
      %v3840 = vpop.permute.xlu0 %3839
      %3841 = vrot.lane.b32.xlu0 %v3819, 32
      %v3842 = vpop.permute.xlu0 %3841
      %3843 = vrot.lane.b32.xlu0 %v3820, 32
      %v3844 = vpop.permute.xlu0 %3843
      %3845 = vrot.lane.b32.xlu0 %v3821, 32
      %v3846 = vpop.permute.xlu0 %3845
      %3847 = vrot.lane.b32.xlu0 %v3822, 32
      %v3848 = vpop.permute.xlu0 %3847
      %3849 = vrot.lane.b32.xlu0 %v3823, 32
      %v3850 = vpop.permute.xlu0 %3849
      %3851 = vrot.lane.b32.xlu0 %v3824, 32
      %v3852 = vpop.permute.xlu0 %3851
      %3853 = vrot.lane.b32.xlu0 %v3825, 32
      %v3854 = vpop.permute.xlu0 %3853
      %3855 = vrot.lane.b32.xlu0 %v3826, 32
      %v3856 = vpop.permute.xlu0 %3855
      %3857 = vrot.lane.b32.xlu0 %v3827, 32
      %v3858 = vpop.permute.xlu0 %3857
      %3859 = vrot.lane.b32.xlu0 %v3828, 32
      %v3860 = vpop.permute.xlu0 %3859
      %vm3877 = vcmask 294144
      %3878 = vst.msk [vmem:[#allocation3] sm:$0xff] %vm3877, %v3830
      %3879 = vst.msk [vmem:[#allocation3 + $0x8] sm:$0xff] %vm3877, %v3832
      %3880 = vst.msk [vmem:[#allocation3 + $0x10] sm:$0xff] %vm3877, %v3834
      %3881 = vst.msk [vmem:[#allocation3 + $0x18] sm:$0xff] %vm3877, %v3836
      %3882 = vst.msk [vmem:[#allocation3 + $0x20] sm:$0xff] %vm3877, %v3838
      %3883 = vst.msk [vmem:[#allocation3 + $0x28] sm:$0xff] %vm3877, %v3840
      %3884 = vst.msk [vmem:[#allocation3 + $0x30] sm:$0xff] %vm3877, %v3842
      %3885 = vst.msk [vmem:[#allocation3 + $0x38] sm:$0xff] %vm3877, %v3844
      %3886 = vst.msk [vmem:[#allocation3 + $0x40] sm:$0xff] %vm3877, %v3846
      %3887 = vst.msk [vmem:[#allocation3 + $0x48] sm:$0xff] %vm3877, %v3848
      %3888 = vst.msk [vmem:[#allocation3 + $0x50] sm:$0xff] %vm3877, %v3850
      %3889 = vst.msk [vmem:[#allocation3 + $0x58] sm:$0xff] %vm3877, %v3852
      %3890 = vst.msk [vmem:[#allocation3 + $0x60] sm:$0xff] %vm3877, %v3854
      %3891 = vst.msk [vmem:[#allocation3 + $0x68] sm:$0xff] %vm3877, %v3856
      %3892 = vst.msk [vmem:[#allocation3 + $0x70] sm:$0xff] %vm3877, %v3858
      %3893 = vst.msk [vmem:[#allocation3 + $0x78] sm:$0xff] %vm3877, %v3860
      %v3894 = vld [vmem:[#allocation3] sm:$0xff]
      %v3895 = vld [vmem:[#allocation3 + $0x8] sm:$0xff]
      %v3896 = vld [vmem:[#allocation3 + $0x10] sm:$0xff]
      %v3897 = vld [vmem:[#allocation3 + $0x18] sm:$0xff]
      %v3898 = vld [vmem:[#allocation3 + $0x20] sm:$0xff]
      %v3899 = vld [vmem:[#allocation3 + $0x28] sm:$0xff]
      %v3900 = vld [vmem:[#allocation3 + $0x30] sm:$0xff]
      %v3901 = vld [vmem:[#allocation3 + $0x38] sm:$0xff]
      %v3902 = vld [vmem:[#allocation3 + $0x40] sm:$0xff]
      %v3903 = vld [vmem:[#allocation3 + $0x48] sm:$0xff]
      %v3904 = vld [vmem:[#allocation3 + $0x50] sm:$0xff]
      %v3905 = vld [vmem:[#allocation3 + $0x58] sm:$0xff]
      %v3906 = vld [vmem:[#allocation3 + $0x60] sm:$0xff]
      %v3907 = vld [vmem:[#allocation3 + $0x68] sm:$0xff]
      %v3908 = vld [vmem:[#allocation3 + $0x70] sm:$0xff]
      %v3909 = vld [vmem:[#allocation3 + $0x78] sm:$0xff]
      %v3910 = vld [vmem:[%s1] sm:$0xf]
      %v3911 = vld [vmem:[%s1 + $0x4] sm:$0xf]
      %v3912 = vld [vmem:[%s1 + $0x8] sm:$0xf]
      %v3913 = vld [vmem:[%s1 + $0xc] sm:$0xf]
      %v3914 = vld [vmem:[%s1 + $0x10] sm:$0x3]
      %v3920 = vunpack.c.l.b16 %v3910
      %v3921 = vunpack.c.l.b16 %v3911
      %v3922 = vunpack.c.l.b16 %v3912
      %v3923 = vunpack.c.l.b16 %v3913
      %v3924 = vunpack.c.l.b16 %v3914
      %v3925 = vpack.c.b16 %v3921, %v3920
      %v3926 = vpack.c.b16 %v3923, %v3922
      %v3927 = vpack.c.b16 %v3924, %v3924
      %vm3930 = vcmask 293888
      %v3932 = vsel %vm3930, %v3894, 0
      %v3935 = vsel %vm3930, %v3895, 0
      %v3938 = vsel %vm3930, %v3896, 0
      %v3941 = vsel %vm3930, %v3897, 0
      %v3944 = vsel %vm3930, %v3898, 0
      %v3947 = vsel %vm3930, %v3899, 0
      %v3950 = vsel %vm3930, %v3900, 0
      %v3953 = vsel %vm3930, %v3901, 0
      %v3956 = vsel %vm3930, %v3902, 0
      %v3959 = vsel %vm3930, %v3903, 0
      %v3962 = vsel %vm3930, %v3904, 0
      %v3965 = vsel %vm3930, %v3905, 0
      %v3968 = vsel %vm3930, %v3906, 0
      %v3971 = vsel %vm3930, %v3907, 0
      %v3974 = vsel %vm3930, %v3908, 0
      %v3977 = vsel %vm3930, %v3909, 0
      %vm3979 = vcmask 1041408
      %v3981 = vsel %vm3979, %v3927, 0
      %3983 = vmatprep.subr.bf16.mxu0 0
      %3984 = vmatpush1.bf16.msra.mxu0 %v3925
      %3985 = vmatprep.subr.bf16.mxu0 0
      %3986 = vmatpush1.bf16.msra.mxu0 %v3926
      %3987 = vmatprep.subr.bf16.mxu0 0
      %3988 = vmatpush1.bf16.msra.mxu0 %v3981
      %3989 = vmatprep.subr.bf16.mxu0 0
      %3990 = vmatpush1.bf16.msra.mxu0 0
      %3991 = vmatprep.subr.bf16.mxu0 0
      %3992 = vmatpush1.bf16.msra.mxu0 0
      %3993 = vmatprep.subr.bf16.mxu0 0
      %3994 = vmatpush1.bf16.msra.mxu0 0
      %3995 = vmatprep.subr.bf16.mxu0 0
      %3996 = vmatpush1.bf16.msra.mxu0 0
      %3997 = vmatprep.subr.bf16.mxu0 0
      %3998 = vmatpush1.bf16.msra.mxu0 0
      %3999 = vmatprep.subr.bf16.mxu0 0
      %4000 = vmatpush1.bf16.msra.mxu0 0
      %4001 = vmatprep.subr.bf16.mxu0 0
      %4002 = vmatpush1.bf16.msra.mxu0 0
      %4003 = vmatprep.subr.bf16.mxu0 0
      %4004 = vmatpush1.bf16.msra.mxu0 0
      %4005 = vmatprep.subr.bf16.mxu0 0
      %4006 = vmatpush1.bf16.msra.mxu0 0
      %4007 = vmatprep.subr.bf16.mxu0 0
      %4008 = vmatpush1.bf16.msra.mxu0 0
      %4009 = vmatprep.subr.bf16.mxu0 0
      %4010 = vmatpush1.bf16.msra.mxu0 0
      %4011 = vmatprep.subr.bf16.mxu0 0
      %4012 = vmatpush1.bf16.msra.mxu0 0
      %4013 = vmatprep.subr.bf16.mxu0 0
      %4014 = vmatpush1.bf16.msra.mxu0 0
      %4015 = vmatprep.mubr.bf16.mxu0 0
      %4016 = vmatmul.mubr.bf16.gmra.mrb[0].mxu0 %v3932
      %v4017 = vpop.f32.mrb[0].mxu0
      %v4018 = vadd.f32 0.0, %v4017
      %v4019 = vpop.f32.mrb[0].mxu0
      %v4020 = vpop.f32.mrb[0].mxu0
      %v4021 = vadd.f32 0.0, %v4020
      %v4022 = vpop.f32.mrb[0].mxu0
      %4023 = vmatprep.mubr.bf16.mxu0 0
      %4024 = vmatmul.mubr.bf16.gmra.mrb[0].mxu0 %v3935
      %v4025 = vpop.f32.mrb[0].mxu0
      %v4026 = vadd.f32 0.0, %v4025
      %v4027 = vpop.f32.mrb[0].mxu0
      %v4028 = vpop.f32.mrb[0].mxu0
      %v4029 = vadd.f32 0.0, %v4028
      %v4030 = vpop.f32.mrb[0].mxu0
      %4031 = vmatprep.mubr.bf16.mxu0 0
      %4032 = vmatmul.mubr.bf16.gmra.mrb[0].mxu0 %v3938
      %v4033 = vpop.f32.mrb[0].mxu0
      %v4034 = vadd.f32 0.0, %v4033
      %v4035 = vpop.f32.mrb[0].mxu0
      %v4036 = vpop.f32.mrb[0].mxu0
      %v4037 = vadd.f32 0.0, %v4036
      %v4038 = vpop.f32.mrb[0].mxu0
      %4039 = vmatprep.mubr.bf16.mxu0 0
      %4040 = vmatmul.mubr.bf16.gmra.mrb[0].mxu0 %v3941
      %v4041 = vpop.f32.mrb[0].mxu0
      %v4042 = vadd.f32 0.0, %v4041
      %v4043 = vpop.f32.mrb[0].mxu0
      %v4044 = vpop.f32.mrb[0].mxu0
      %v4045 = vadd.f32 0.0, %v4044
      %v4046 = vpop.f32.mrb[0].mxu0
      %4047 = vmatprep.mubr.bf16.mxu0 0
      %4048 = vmatmul.mubr.bf16.gmra.mrb[0].mxu0 %v3944
      %v4049 = vpop.f32.mrb[0].mxu0
      %v4050 = vadd.f32 0.0, %v4049
      %v4051 = vpop.f32.mrb[0].mxu0
      %v4052 = vpop.f32.mrb[0].mxu0
      %v4053 = vadd.f32 0.0, %v4052
      %v4054 = vpop.f32.mrb[0].mxu0
      %4055 = vmatprep.mubr.bf16.mxu0 0
      %4056 = vmatmul.mubr.bf16.gmra.mrb[0].mxu0 %v3947
      %v4057 = vpop.f32.mrb[0].mxu0
      %v4058 = vadd.f32 0.0, %v4057
      %v4059 = vpop.f32.mrb[0].mxu0
      %v4060 = vpop.f32.mrb[0].mxu0
      %v4061 = vadd.f32 0.0, %v4060
      %v4062 = vpop.f32.mrb[0].mxu0
      %4063 = vmatprep.mubr.bf16.mxu0 0
      %4064 = vmatmul.mubr.bf16.gmra.mrb[0].mxu0 %v3950
      %v4065 = vpop.f32.mrb[0].mxu0
      %v4066 = vadd.f32 0.0, %v4065
      %v4067 = vpop.f32.mrb[0].mxu0
      %v4068 = vpop.f32.mrb[0].mxu0
      %v4069 = vadd.f32 0.0, %v4068
      %v4070 = vpop.f32.mrb[0].mxu0
      %4071 = vmatprep.mubr.bf16.mxu0 0
      %4072 = vmatmul.mubr.bf16.gmra.mrb[0].mxu0 %v3953
      %v4073 = vpop.f32.mrb[0].mxu0
      %v4074 = vadd.f32 0.0, %v4073
      %v4075 = vpop.f32.mrb[0].mxu0
      %v4076 = vpop.f32.mrb[0].mxu0
      %v4077 = vadd.f32 0.0, %v4076
      %v4078 = vpop.f32.mrb[0].mxu0
      %4079 = vmatprep.mubr.bf16.mxu0 0
      %4080 = vmatmul.mubr.bf16.gmra.mrb[0].mxu0 %v3956
      %v4081 = vpop.f32.mrb[0].mxu0
      %v4082 = vadd.f32 0.0, %v4081
      %v4083 = vpop.f32.mrb[0].mxu0
      %v4084 = vpop.f32.mrb[0].mxu0
      %v4085 = vadd.f32 0.0, %v4084
      %v4086 = vpop.f32.mrb[0].mxu0
      %4087 = vmatprep.mubr.bf16.mxu0 0
      %4088 = vmatmul.mubr.bf16.gmra.mrb[0].mxu0 %v3959
      %v4089 = vpop.f32.mrb[0].mxu0
      %v4090 = vadd.f32 0.0, %v4089
      %v4091 = vpop.f32.mrb[0].mxu0
      %v4092 = vpop.f32.mrb[0].mxu0
      %v4093 = vadd.f32 0.0, %v4092
      %v4094 = vpop.f32.mrb[0].mxu0
      %4095 = vmatprep.mubr.bf16.mxu0 0
      %4096 = vmatmul.mubr.bf16.gmra.mrb[0].mxu0 %v3962
      %v4097 = vpop.f32.mrb[0].mxu0
      %v4098 = vadd.f32 0.0, %v4097
      %v4099 = vpop.f32.mrb[0].mxu0
      %v4100 = vpop.f32.mrb[0].mxu0
      %v4101 = vadd.f32 0.0, %v4100
      %v4102 = vpop.f32.mrb[0].mxu0
      %4103 = vmatprep.mubr.bf16.mxu0 0
      %4104 = vmatmul.mubr.bf16.gmra.mrb[0].mxu0 %v3965
      %v4105 = vpop.f32.mrb[0].mxu0
      %v4106 = vadd.f32 0.0, %v4105
      %v4107 = vpop.f32.mrb[0].mxu0
      %v4108 = vpop.f32.mrb[0].mxu0
      %v4109 = vadd.f32 0.0, %v4108
      %v4110 = vpop.f32.mrb[0].mxu0
      %4111 = vmatprep.mubr.bf16.mxu0 0
      %4112 = vmatmul.mubr.bf16.gmra.mrb[0].mxu0 %v3968
      %v4113 = vpop.f32.mrb[0].mxu0
      %v4114 = vadd.f32 0.0, %v4113
      %v4115 = vpop.f32.mrb[0].mxu0
      %v4116 = vpop.f32.mrb[0].mxu0
      %v4117 = vadd.f32 0.0, %v4116
      %v4118 = vpop.f32.mrb[0].mxu0
      %4119 = vmatprep.mubr.bf16.mxu0 0
      %4120 = vmatmul.mubr.bf16.gmra.mrb[0].mxu0 %v3971
      %v4121 = vpop.f32.mrb[0].mxu0
      %v4122 = vadd.f32 0.0, %v4121
      %v4123 = vpop.f32.mrb[0].mxu0
      %v4124 = vpop.f32.mrb[0].mxu0
      %v4125 = vadd.f32 0.0, %v4124
      %v4126 = vpop.f32.mrb[0].mxu0
      %4127 = vmatprep.mubr.bf16.mxu0 0
      %4128 = vmatmul.mubr.bf16.gmra.mrb[0].mxu0 %v3974
      %v4129 = vpop.f32.mrb[0].mxu0
      %v4130 = vadd.f32 0.0, %v4129
      %v4131 = vpop.f32.mrb[0].mxu0
      %v4132 = vpop.f32.mrb[0].mxu0
      %v4133 = vadd.f32 0.0, %v4132
      %v4134 = vpop.f32.mrb[0].mxu0
      %4135 = vmatprep.mubr.bf16.mxu0 0
      %4136 = vmatmul.mubr.bf16.gmra.mrb[0].mxu0 %v3977
      %v4137 = vpop.f32.mrb[0].mxu0
      %v4138 = vadd.f32 0.0, %v4137
      %v4139 = vpop.f32.mrb[0].mxu0
      %v4140 = vpop.f32.mrb[0].mxu0
      %v4141 = vadd.f32 0.0, %v4140
      %v4142 = vpop.f32.mrb[0].mxu0
      %4143 = vdwg.mxu0
      %v4144 = vld [vmem:[%s2] sm:$0x1]
      %v4146 = vlaneseq
      %v4147 = vshrl.u32 %v4146, 7
      %v4148 = vsub.s32 0, %v4147
      %v4149 = vrot.slane %v4144, %v4148
      %v4151 = vmul.f32 %v4018, %v4149
      %v4152 = vmul.f32 %v4021, %v4149
      %v4153 = vmul.f32 %v4026, %v4149
      %v4154 = vmul.f32 %v4029, %v4149
      %v4155 = vmul.f32 %v4034, %v4149
      %v4156 = vmul.f32 %v4037, %v4149
      %v4157 = vmul.f32 %v4042, %v4149
      %v4158 = vmul.f32 %v4045, %v4149
      %v4159 = vmul.f32 %v4050, %v4149
      %v4160 = vmul.f32 %v4053, %v4149
      %v4161 = vmul.f32 %v4058, %v4149
      %v4162 = vmul.f32 %v4061, %v4149
      %v4163 = vmul.f32 %v4066, %v4149
      %v4164 = vmul.f32 %v4069, %v4149
      %v4165 = vmul.f32 %v4074, %v4149
      %v4166 = vmul.f32 %v4077, %v4149
      %v4167 = vmul.f32 %v4082, %v4149
      %v4168 = vmul.f32 %v4085, %v4149
      %v4169 = vmul.f32 %v4090, %v4149
      %v4170 = vmul.f32 %v4093, %v4149
      %v4171 = vmul.f32 %v4098, %v4149
      %v4172 = vmul.f32 %v4101, %v4149
      %v4173 = vmul.f32 %v4106, %v4149
      %v4174 = vmul.f32 %v4109, %v4149
      %v4175 = vmul.f32 %v4114, %v4149
      %v4176 = vmul.f32 %v4117, %v4149
      %v4177 = vmul.f32 %v4122, %v4149
      %v4178 = vmul.f32 %v4125, %v4149
      %v4179 = vmul.f32 %v4130, %v4149
      %v4180 = vmul.f32 %v4133, %v4149
      %v4181 = vmul.f32 %v4138, %v4149
      %v4182 = vmul.f32 %v4141, %v4149
      %v4183 = vld [vmem:[%s3] sm:$0x1]
      %v4185 = vlaneseq
      %v4186 = vshrl.u32 %v4185, 7
      %v4187 = vsub.s32 0, %v4186
      %v4188 = vrot.slane %v4183, %v4187
      %v4190 = vadd.f32 %v4151, %v4188
      %v4191 = vadd.f32 %v4152, %v4188
      %v4192 = vadd.f32 %v4153, %v4188
      %v4193 = vadd.f32 %v4154, %v4188
      %v4194 = vadd.f32 %v4155, %v4188
      %v4195 = vadd.f32 %v4156, %v4188
      %v4196 = vadd.f32 %v4157, %v4188
      %v4197 = vadd.f32 %v4158, %v4188
      %v4198 = vadd.f32 %v4159, %v4188
      %v4199 = vadd.f32 %v4160, %v4188
      %v4200 = vadd.f32 %v4161, %v4188
      %v4201 = vadd.f32 %v4162, %v4188
      %v4202 = vadd.f32 %v4163, %v4188
      %v4203 = vadd.f32 %v4164, %v4188
      %v4204 = vadd.f32 %v4165, %v4188
      %v4205 = vadd.f32 %v4166, %v4188
      %v4206 = vadd.f32 %v4167, %v4188
      %v4207 = vadd.f32 %v4168, %v4188
      %v4208 = vadd.f32 %v4169, %v4188
      %v4209 = vadd.f32 %v4170, %v4188
      %v4210 = vadd.f32 %v4171, %v4188
      %v4211 = vadd.f32 %v4172, %v4188
      %v4212 = vadd.f32 %v4173, %v4188
      %v4213 = vadd.f32 %v4174, %v4188
      %v4214 = vadd.f32 %v4175, %v4188
      %v4215 = vadd.f32 %v4176, %v4188
      %v4216 = vadd.f32 %v4177, %v4188
      %v4217 = vadd.f32 %v4178, %v4188
      %v4218 = vadd.f32 %v4179, %v4188
      %v4219 = vadd.f32 %v4180, %v4188
      %v4220 = vadd.f32 %v4181, %v4188
      %v4221 = vadd.f32 %v4182, %v4188
      %v4222 = vmax.f32 %v4190, 0.0
      %v4223 = vmax.f32 %v4191, 0.0
      %v4224 = vmax.f32 %v4192, 0.0
      %v4225 = vmax.f32 %v4193, 0.0
      %v4226 = vmax.f32 %v4194, 0.0
      %v4227 = vmax.f32 %v4195, 0.0
      %v4228 = vmax.f32 %v4196, 0.0
      %v4229 = vmax.f32 %v4197, 0.0
      %v4230 = vmax.f32 %v4198, 0.0
      %v4231 = vmax.f32 %v4199, 0.0
      %v4232 = vmax.f32 %v4200, 0.0
      %v4233 = vmax.f32 %v4201, 0.0
      %v4234 = vmax.f32 %v4202, 0.0
      %v4235 = vmax.f32 %v4203, 0.0
      %v4236 = vmax.f32 %v4204, 0.0
      %v4237 = vmax.f32 %v4205, 0.0
      %v4238 = vmax.f32 %v4206, 0.0
      %v4239 = vmax.f32 %v4207, 0.0
      %v4240 = vmax.f32 %v4208, 0.0
      %v4241 = vmax.f32 %v4209, 0.0
      %v4242 = vmax.f32 %v4210, 0.0
      %v4243 = vmax.f32 %v4211, 0.0
      %v4244 = vmax.f32 %v4212, 0.0
      %v4245 = vmax.f32 %v4213, 0.0
      %v4246 = vmax.f32 %v4214, 0.0
      %v4247 = vmax.f32 %v4215, 0.0
      %v4248 = vmax.f32 %v4216, 0.0
      %v4249 = vmax.f32 %v4217, 0.0
      %v4250 = vmax.f32 %v4218, 0.0
      %v4251 = vmax.f32 %v4219, 0.0
      %v4252 = vmax.f32 %v4220, 0.0
      %v4253 = vmax.f32 %v4221, 0.0
      %v4254 = vpack.c.bf16 %v4223, %v4222
      %v4255 = vpack.c.bf16 %v4225, %v4224
      %v4256 = vpack.c.bf16 %v4227, %v4226
      %v4257 = vpack.c.bf16 %v4229, %v4228
      %v4258 = vpack.c.bf16 %v4231, %v4230
      %v4259 = vpack.c.bf16 %v4233, %v4232
      %v4260 = vpack.c.bf16 %v4235, %v4234
      %v4261 = vpack.c.bf16 %v4237, %v4236
      %v4262 = vpack.c.bf16 %v4239, %v4238
      %v4263 = vpack.c.bf16 %v4241, %v4240
      %v4264 = vpack.c.bf16 %v4243, %v4242
      %v4265 = vpack.c.bf16 %v4245, %v4244
      %v4266 = vpack.c.bf16 %v4247, %v4246
      %v4267 = vpack.c.bf16 %v4249, %v4248
      %v4268 = vpack.c.bf16 %v4251, %v4250
      %v4269 = vpack.c.bf16 %v4253, %v4252
      %v4286 = vunpack.c.l.b16 %v4254
      %v4287 = vunpack.c.h.b16 %v4254
      %v4288 = vunpack.c.l.b16 %v4255
      %v4289 = vunpack.c.h.b16 %v4255
      %v4290 = vunpack.c.l.b16 %v4256
      %v4291 = vunpack.c.h.b16 %v4256
      %v4292 = vunpack.c.l.b16 %v4257
      %v4293 = vunpack.c.h.b16 %v4257
      %v4294 = vunpack.c.l.b16 %v4258
      %v4295 = vunpack.c.h.b16 %v4258
      %v4296 = vunpack.c.l.b16 %v4259
      %v4297 = vunpack.c.h.b16 %v4259
      %v4298 = vunpack.c.l.b16 %v4260
      %v4299 = vunpack.c.h.b16 %v4260
      %v4300 = vunpack.c.l.b16 %v4261
      %v4301 = vunpack.c.h.b16 %v4261
      %v4302 = vunpack.c.l.b16 %v4262
      %v4303 = vunpack.c.h.b16 %v4262
      %v4304 = vunpack.c.l.b16 %v4263
      %v4305 = vunpack.c.h.b16 %v4263
      %v4306 = vunpack.c.l.b16 %v4264
      %v4307 = vunpack.c.h.b16 %v4264
      %v4308 = vunpack.c.l.b16 %v4265
      %v4309 = vunpack.c.h.b16 %v4265
      %v4310 = vunpack.c.l.b16 %v4266
      %v4311 = vunpack.c.h.b16 %v4266
      %v4312 = vunpack.c.l.b16 %v4267
      %v4313 = vunpack.c.h.b16 %v4267
      %v4314 = vunpack.c.l.b16 %v4268
      %v4315 = vunpack.c.h.b16 %v4268
      %v4316 = vunpack.c.l.b16 %v4269
      %v4317 = vunpack.c.h.b16 %v4269
      %v4318 = vpack.c.b16 %v4286, %v4286
      %v4319 = vpack.c.b16 %v4287, %v4287
      %v4320 = vpack.c.b16 %v4288, %v4288
      %v4321 = vpack.c.b16 %v4289, %v4289
      %v4322 = vpack.c.b16 %v4290, %v4290
      %v4323 = vpack.c.b16 %v4291, %v4291
      %v4324 = vpack.c.b16 %v4292, %v4292
      %v4325 = vpack.c.b16 %v4293, %v4293
      %v4326 = vpack.c.b16 %v4294, %v4294
      %v4327 = vpack.c.b16 %v4295, %v4295
      %v4328 = vpack.c.b16 %v4296, %v4296
      %v4329 = vpack.c.b16 %v4297, %v4297
      %v4330 = vpack.c.b16 %v4298, %v4298
      %v4331 = vpack.c.b16 %v4299, %v4299
      %v4332 = vpack.c.b16 %v4300, %v4300
      %v4333 = vpack.c.b16 %v4301, %v4301
      %v4334 = vpack.c.b16 %v4302, %v4302
      %v4335 = vpack.c.b16 %v4303, %v4303
      %v4336 = vpack.c.b16 %v4304, %v4304
      %v4337 = vpack.c.b16 %v4305, %v4305
      %v4338 = vpack.c.b16 %v4306, %v4306
      %v4339 = vpack.c.b16 %v4307, %v4307
      %v4340 = vpack.c.b16 %v4308, %v4308
      %v4341 = vpack.c.b16 %v4309, %v4309
      %v4342 = vpack.c.b16 %v4310, %v4310
      %v4343 = vpack.c.b16 %v4311, %v4311
      %v4344 = vpack.c.b16 %v4312, %v4312
      %v4345 = vpack.c.b16 %v4313, %v4313
      %v4346 = vpack.c.b16 %v4314, %v4314
      %v4347 = vpack.c.b16 %v4315, %v4315
      %v4348 = vpack.c.b16 %v4316, %v4316
      %v4349 = vpack.c.b16 %v4317, %v4317
      %vm4382 = vcmask 60416
      %4383 = vst.msk [vmem:[%s197] sm:$0xf] %vm4382, %v4318
      %4384 = vst.msk [vmem:[%s197 + $0x4] sm:$0xf] %vm4382, %v4319
      %4385 = vst.msk [vmem:[%s197 + $0x8] sm:$0xf] %vm4382, %v4320
      %4386 = vst.msk [vmem:[%s197 + $0xc] sm:$0xf] %vm4382, %v4321
      %4387 = vst.msk [vmem:[%s197 + $0x10] sm:$0xf] %vm4382, %v4322
      %4388 = vst.msk [vmem:[%s197 + $0x14] sm:$0xf] %vm4382, %v4323
      %4389 = vst.msk [vmem:[%s197 + $0x18] sm:$0xf] %vm4382, %v4324
      %4390 = vst.msk [vmem:[%s197 + $0x1c] sm:$0xf] %vm4382, %v4325
      %4391 = vst.msk [vmem:[%s197 + $0x20] sm:$0xf] %vm4382, %v4326
      %4392 = vst.msk [vmem:[%s197 + $0x24] sm:$0xf] %vm4382, %v4327
      %4393 = vst.msk [vmem:[%s197 + $0x28] sm:$0xf] %vm4382, %v4328
      %4394 = vst.msk [vmem:[%s197 + $0x2c] sm:$0xf] %vm4382, %v4329
      %4395 = vst.msk [vmem:[%s197 + $0x30] sm:$0xf] %vm4382, %v4330
      %4396 = vst.msk [vmem:[%s197 + $0x34] sm:$0xf] %vm4382, %v4331
      %4397 = vst.msk [vmem:[%s197 + $0x38] sm:$0xf] %vm4382, %v4332
      %4398 = vst.msk [vmem:[%s197 + $0x3c] sm:$0xf] %vm4382, %v4333
      %4399 = vst.msk [vmem:[%s197 + $0x40] sm:$0xf] %vm4382, %v4334
      %4400 = vst.msk [vmem:[%s197 + $0x44] sm:$0xf] %vm4382, %v4335
      %4401 = vst.msk [vmem:[%s197 + $0x48] sm:$0xf] %vm4382, %v4336
      %4402 = vst.msk [vmem:[%s197 + $0x4c] sm:$0xf] %vm4382, %v4337
      %4403 = vst.msk [vmem:[%s197 + $0x50] sm:$0xf] %vm4382, %v4338
      %4404 = vst.msk [vmem:[%s197 + $0x54] sm:$0xf] %vm4382, %v4339
      %4405 = vst.msk [vmem:[%s197 + $0x58] sm:$0xf] %vm4382, %v4340
      %4406 = vst.msk [vmem:[%s197 + $0x5c] sm:$0xf] %vm4382, %v4341
      %4407 = vst.msk [vmem:[%s197 + $0x60] sm:$0xf] %vm4382, %v4342
      %4408 = vst.msk [vmem:[%s197 + $0x64] sm:$0xf] %vm4382, %v4343
      %4409 = vst.msk [vmem:[%s197 + $0x68] sm:$0xf] %vm4382, %v4344
      %4410 = vst.msk [vmem:[%s197 + $0x6c] sm:$0xf] %vm4382, %v4345
      %4411 = vst.msk [vmem:[%s197 + $0x70] sm:$0xf] %vm4382, %v4346
      %4412 = vst.msk [vmem:[%s197 + $0x74] sm:$0xf] %vm4382, %v4347
      %4413 = vst.msk [vmem:[%s197 + $0x78] sm:$0xf] %vm4382, %v4348
      %4414 = vst.msk [vmem:[%s197 + $0x7c] sm:$0xf] %vm4382, %v4349
      %p4415 = scmp.lt.s32.totalorder %s15, 1
      %s4416 = scalar_select %p4415, %s15, 1
      %s4417 = smul.addr %s4416, 32
      %s4418 = smul.addr %s4417, 4
      %s4419 = scalar_lea.vmem %s4, %s4418
      // Predicated region
      $region37: #{tpu_custom_call.1} parent=35 // pred_check
        %p4420 = pneg %p122
      $region38: #{tpu_custom_call.1} parent=35 // pred_check_branch
        %4422 = sbr.rel (%p4420) target = $region40
      $region39: #{tpu_custom_call.1} parent=35 // pred_region
        _
      $region40: #{tpu_custom_call.1} parent=35 // pred_fallthru
        _
    $region36: #{tpu_custom_call.1} parent=5 // pred_fallthru
      _
    %p4423 = scmp.le.s32.totalorder 2, %s10
    // Predicated region
    $region41: #{tpu_custom_call.1} parent=5 // pred_check
      %p4424 = pneg %p4423
    $region42: #{tpu_custom_call.1} parent=5 // pred_check_branch
      %4426 = sbr.rel (%p4424) target = $region44
    $region43: #{tpu_custom_call.1} parent=5 // pred_region
      %s4427 = ssub.s32 %s10, 2
      // Predicated region
      $region45: #{tpu_custom_call.1} parent=43 // pred_check
        %p4428 = pneg %p128
      $region46: #{tpu_custom_call.1} parent=43 // pred_check_branch
        %4430 = sbr.rel (%p4428) target = $region48
      $region47: #{tpu_custom_call.1} parent=43 // pred_region
        %p4431 = scmp.lt.s32.totalorder %s16, 1
        %s4432 = scalar_select %p4431, %s16, 1
        %s4433 = smul.addr %s4432, 32
        %s4434 = smul.addr %s4433, 4
        %s4435 = scalar_lea.vmem %s4, %s4434
      $region48: #{tpu_custom_call.1} parent=43 // pred_fallthru
        _
    $region44: #{tpu_custom_call.1} parent=5 // pred_fallthru
      _
  $region6: #{tpu_custom_call.1} parent=0 // loop_footer
    %s14 = sadd.s32 1, %s10
  $region7: #{tpu_custom_call.1} parent=0 // loop_footer_branch
    %9 = sbr.rel target = $region3
  $region8: #{tpu_custom_call.1} parent=0 // loop_exit
    _

</llo_original>
